<compile_context>
chip_gen: v5e
topology: v5e:2x2
jax: 0.10.0
libtpu: 0.0.40
codegen_flags: <defaults>
</compile_context>

<pallas_src>
import functools

import numpy as np

import jax
import jax.numpy as jnp
from jax.experimental import pallas as pl
from jax.experimental.pallas import tpu as pltpu


# ------------------------------ activations --------------------------------

def _apply_act(x, act: str):
    if act == "lrelu":                       # nn.LeakyReLU default slope 0.01
        return jnp.where(x >= 0, x, 0.01 * x)
    if act == "relu":
        return jnp.maximum(x, 0.0)
    return x


# --------------------- in-kernel reflection padding --------------------------

def _reflect_fill(pad_ref, x, left, right, t):
    """Write ReflectionPad1d((left, right)) of `x` (C, t) into pad_ref (C, t+left+right)."""
    pad_ref[:, left:left + t] = x
    for i in range(left):        # padded col i          <- original col (left - i)
        pad_ref[:, i:i + 1] = x[:, left - i:left - i + 1]
    for i in range(right):       # padded col left+t+i   <- original col (t - 2 - i)
        pad_ref[:, left + t + i:left + t + i + 1] = x[:, t - 2 - i:t - 1 - i]


# ------------------- Stage A: ConvBank + concat + in_conv --------------------

def _bank_in_conv_kernel(x_ref, *refs, bank_ks, c_bank, act, l_max, r_max):
    """Fused ConvBank (+act) + channel concat + 1x1 in_conv (+act), per batch."""
    n_banks = len(bank_ks)
    w_in_ref = refs[2 * n_banks]
    b_in_ref = refs[2 * n_banks + 1]
    o_ref = refs[2 * n_banks + 2]
    pad_ref = refs[2 * n_banks + 3]

    c_h = o_ref.shape[1]
    t = x_ref.shape[2]

    x = x_ref[0].astype(jnp.float32)                       # (c_in, T)
    # One max-halo reflection pad in VMEM serves every bank kernel size.
    _reflect_fill(pad_ref, x, l_max, r_max, t)

    w_in = w_in_ref[...].astype(jnp.float32)               # (c_h, in_channels)
    # Bias folded into the accumulator init.
    acc = jnp.broadcast_to(b_in_ref[...].astype(jnp.float32), (c_h, t))

    for bi, k in enumerate(bank_ks):
        wb_ref = refs[2 * bi]                              # (k, c_bank, c_in)
        bb_ref = refs[2 * bi + 1]                          # (c_bank, 1)
        off = l_max - k // 2
        bacc = jnp.broadcast_to(bb_ref[...].astype(jnp.float32), (c_bank, t))
        for j in range(k):                                  # small static tap loop
            bacc = bacc + jnp.dot(wb_ref[j].astype(jnp.float32),
                                  pad_ref[:, off + j:off + j + t],
                                  preferred_element_type=jnp.float32)
        bout = _apply_act(bacc, act)
        # 1x1 in_conv applied per channel-slice of the (virtual) concat.
        acc = acc + jnp.dot(w_in[:, bi * c_bank:(bi + 1) * c_bank], bout,
                            preferred_element_type=jnp.float32)

    # Identity channels (x is concatenated last in the ConvBank output).
    acc = acc + jnp.dot(w_in[:, n_banks * c_bank:], x,
                        preferred_element_type=jnp.float32)
    o_ref[0] = _apply_act(acc, act).astype(o_ref.dtype)


def bank_in_conv(x, bank_params, w_in, b_in, *, bank_ks, act):
    bsz, c_in, t = x.shape
    c_bank = bank_params[0][0].shape[1]            # weights are (k, c_bank, c_in)
    c_h, in_channels = w_in.shape
    l_max = max(k // 2 for k in bank_ks)
    r_max = max(k // 2 - 1 + k % 2 for k in bank_ks)

    inputs = [x]
    in_specs = [pl.BlockSpec((1, c_in, t), lambda i: (i, 0, 0))]
    for (w, b), k in zip(bank_params, bank_ks):
        inputs += [w, b]
        in_specs += [pl.BlockSpec((k, c_bank, c_in), lambda i: (0, 0, 0)),
                     pl.BlockSpec((c_bank, 1), lambda i: (0, 0))]
    inputs += [w_in, b_in]
    in_specs += [pl.BlockSpec((c_h, in_channels), lambda i: (0, 0)),
                 pl.BlockSpec((c_h, 1), lambda i: (0, 0))]

    flops = 2 * bsz * t * (sum(c_bank * c_in * k for k in bank_ks)
                           + c_h * (len(bank_ks) * c_bank + c_in))
    bytes_acc = 4 * (x.size + w_in.size + b_in.size
                     + sum(w.size + b.size for w, b in bank_params)
                     + bsz * c_h * t)

    kern = functools.partial(_bank_in_conv_kernel, bank_ks=tuple(bank_ks),
                             c_bank=c_bank, act=act, l_max=l_max, r_max=r_max)
    return pl.pallas_call(
        kern,
        out_shape=jax.ShapeDtypeStruct((bsz, c_h, t), x.dtype),
        grid_spec=pltpu.PrefetchScalarGridSpec(
            num_scalar_prefetch=0, grid=(bsz,),
            in_specs=in_specs,
            out_specs=pl.BlockSpec((1, c_h, t), lambda i: (i, 0, 0)),
            scratch_shapes=[pltpu.VMEM((c_in, t + l_max + r_max), jnp.float32)]),
        compiler_params=pltpu.CompilerParams(
            dimension_semantics=("parallel",)),
        cost_estimate=pl.CostEstimate(flops=int(flops), transcendentals=0,
                                      bytes_accessed=int(bytes_acc)),
    )(*inputs)


# --------------------- Stage B: fused residual conv block --------------------

def _conv_block_kernel(x_ref, w1_ref, b1_ref, w2_ref, b2_ref, *rest,
                       ksize, left, right, sub, pool, act):
    """conv1+act -> conv2+act -> (subsample + pooled residual) add, per batch."""
    if sub > 1:
        sel_ref, pol_ref, o_ref, pad_ref = rest
    else:
        o_ref, pad_ref = rest

    c_h = x_ref.shape[1]
    t = x_ref.shape[2]
    x = x_ref[0].astype(jnp.float32)                       # (c_h, T)

    # conv1 (+ bias folded into acc init) + act; padding built in VMEM scratch.
    _reflect_fill(pad_ref, x, left, right, t)
    acc = jnp.broadcast_to(b1_ref[...].astype(jnp.float32), (c_h, t))
    for j in range(ksize):
        acc = acc + jnp.dot(w1_ref[j].astype(jnp.float32),
                            pad_ref[:, j:j + t],
                            preferred_element_type=jnp.float32)
    y1 = _apply_act(acc, act)

    # conv2 (+ bias) + act; the same scratch buffer is reused for y1's padding.
    _reflect_fill(pad_ref, y1, left, right, t)
    acc2 = jnp.broadcast_to(b2_ref[...].astype(jnp.float32), (c_h, t))
    for j in range(ksize):
        acc2 = acc2 + jnp.dot(w2_ref[j].astype(jnp.float32),
                              pad_ref[:, j:j + t],
                              preferred_element_type=jnp.float32)
    y2 = _apply_act(acc2, act)

    # Residual add; for sub>1 the stride-`sub` column pick and the ceil-mode
    # avg-pool of the skip path ride the MXU via tiny precomputed matrices.
    if sub > 1:
        out = (jnp.dot(y2, sel_ref[...].astype(jnp.float32),
                       preferred_element_type=jnp.float32)
               + jnp.dot(x, pol_ref[...].astype(jnp.float32),
                         preferred_element_type=jnp.float32))
    else:
        out = y2 + x

    if pool:
        # Fused AdaptiveAvgPool1d(1): the full activation never leaves VMEM.
        pooled = jnp.sum(out, axis=-1, keepdims=True) * (1.0 / out.shape[1])
        o_ref[0] = pooled.astype(o_ref.dtype)              # (c_h, 1)
    else:
        o_ref[0] = out.astype(o_ref.dtype)


def _subsample_mats(t_in, sub):
    """Selection (stride-`sub` conv columns) and ceil-mode avg_pool1d matrices."""
    m = -(-t_in // sub)
    sel = np.zeros((t_in, m), np.float32)
    sel[np.arange(m) * sub, np.arange(m)] = 1.0
    pol = np.zeros((t_in, m), np.float32)
    for j in range(m):
        lo, hi = j * sub, min((j + 1) * sub, t_in)
        pol[lo:hi, j] = 1.0 / (hi - lo)        # valid-count divisor (ceil_mode)
    return sel, pol


def conv_block(x, w1, b1, w2, b2, *, ksize, sub, act, pool):
    bsz, c_h, t_in = x.shape
    left = ksize // 2
    right = ksize // 2 - 1 + ksize % 2
    m = -(-t_in // sub)

    inputs = [x, w1, b1, w2, b2]
    in_specs = [
        pl.BlockSpec((1, c_h, t_in), lambda i: (i, 0, 0)),
        pl.BlockSpec((ksize, c_h, c_h), lambda i: (0, 0, 0)),
        pl.BlockSpec((c_h, 1), lambda i: (0, 0)),
        pl.BlockSpec((ksize, c_h, c_h), lambda i: (0, 0, 0)),
        pl.BlockSpec((c_h, 1), lambda i: (0, 0)),
    ]
    if sub > 1:
        sel, pol = _subsample_mats(t_in, sub)
        inputs += [jnp.asarray(sel), jnp.asarray(pol)]
        in_specs += [pl.BlockSpec((t_in, m), lambda i: (0, 0)),
                     pl.BlockSpec((t_in, m), lambda i: (0, 0))]

    out_cols = 1 if pool else m
    out_shape = jax.ShapeDtypeStruct((bsz, c_h, out_cols), x.dtype)
    out_spec = pl.BlockSpec((1, c_h, out_cols), lambda i: (i, 0, 0))

    flops = 2 * bsz * (2 * ksize * c_h * c_h * t_in)
    if sub > 1:
        flops += 2 * bsz * 2 * c_h * t_in * m
    bytes_acc = 4 * (x.size + w1.size + b1.size + w2.size + b2.size
                     + bsz * c_h * out_cols)

    kern = functools.partial(_conv_block_kernel, ksize=ksize, left=left,
                             right=right, sub=sub, pool=pool, act=act)
    return pl.pallas_call(
        kern,
        out_shape=out_shape,
        grid_spec=pltpu.PrefetchScalarGridSpec(
            num_scalar_prefetch=0, grid=(bsz,),
            in_specs=in_specs, out_specs=out_spec,
            scratch_shapes=[pltpu.VMEM((c_h, t_in + ksize - 1), jnp.float32)]),
        compiler_params=pltpu.CompilerParams(
            dimension_semantics=("parallel",)),
        cost_estimate=pl.CostEstimate(flops=int(flops), transcendentals=0,
                                      bytes_accessed=int(bytes_acc)),
    )(*inputs)


# -------- global average pool fallback (only used if n_conv_blocks == 0) -----

def _global_avg_pool_kernel(x_ref, o_ref):
    o_ref[...] = jnp.mean(
        x_ref[...].astype(jnp.float32), axis=-1).astype(o_ref.dtype)


def global_avg_pool(x):
    bsz, c, t = x.shape
    return pl.pallas_call(
        _global_avg_pool_kernel,
        out_shape=jax.ShapeDtypeStruct((bsz, c), x.dtype),
        grid_spec=pltpu.PrefetchScalarGridSpec(
            num_scalar_prefetch=0, grid=(1,),
            in_specs=[pl.BlockSpec((bsz, c, t), lambda i: (0, 0, 0))],
            out_specs=pl.BlockSpec((bsz, c), lambda i: (0, 0)),
        ),
    )(x)


# --------------- Stage C: fused dense blocks + output linear -----------------

def _dense_tail_kernel(x_ref, *refs, n_dense, act):
    w_out_ref = refs[4 * n_dense]
    b_out_ref = refs[4 * n_dense + 1]
    o_ref = refs[4 * n_dense + 2]

    h = x_ref[...].astype(jnp.float32)                      # (B, d)
    for i in range(n_dense):
        w1_ref, b1_ref, w2_ref, b2_ref = refs[4 * i:4 * i + 4]
        y = _apply_act(jnp.dot(h, w1_ref[...].astype(jnp.float32),
                               preferred_element_type=jnp.float32)
                       + b1_ref[...].astype(jnp.float32), act)
        y = _apply_act(jnp.dot(y, w2_ref[...].astype(jnp.float32),
                               preferred_element_type=jnp.float32)
                       + b2_ref[...].astype(jnp.float32), act)
        h = y + h
    out = (jnp.dot(h, w_out_ref[...].astype(jnp.float32),
                   preferred_element_type=jnp.float32)
           + b_out_ref[...].astype(jnp.float32))
    o_ref[...] = out.astype(o_ref.dtype)


def dense_tail(x, dense1, dense2, out_wb, *, act):
    bsz, d = x.shape
    w_out, b_out = out_wb
    c_out = w_out.shape[1]

    inputs = [x]
    in_specs = [pl.BlockSpec((bsz, d), lambda i: (0, 0))]
    for (w1, b1), (w2, b2) in zip(dense1, dense2):
        inputs += [w1, b1, w2, b2]
        in_specs += [pl.BlockSpec((d, d), lambda i: (0, 0)),
                     pl.BlockSpec((1, d), lambda i: (0, 0)),
                     pl.BlockSpec((d, d), lambda i: (0, 0)),
                     pl.BlockSpec((1, d), lambda i: (0, 0))]
    inputs += [w_out, b_out]
    in_specs += [pl.BlockSpec((d, c_out), lambda i: (0, 0)),
                 pl.BlockSpec((1, c_out), lambda i: (0, 0))]

    kern = functools.partial(_dense_tail_kernel, n_dense=len(dense1), act=act)
    return pl.pallas_call(
        kern,
        out_shape=jax.ShapeDtypeStruct((bsz, c_out), x.dtype),
        grid_spec=pltpu.PrefetchScalarGridSpec(
            num_scalar_prefetch=0, grid=(1,),
            in_specs=in_specs,
            out_specs=pl.BlockSpec((bsz, c_out), lambda i: (0, 0))),
    )(*inputs)


# ------------------------------ full forward ---------------------------------

def speaker_encoder_forward(x, kp, cfg):
    act = cfg["act"]
    ks = cfg["kernel_size"]
    bank_ks = list(range(cfg["bank_scale"], cfg["bank_size"] + 1, cfg["bank_scale"]))

    # Stage A: ConvBank + concat + 1x1 in_conv + act (fused, one HBM read of x).
    w_in, b_in = kp["in_conv"]
    out = bank_in_conv(x, kp["bank"], w_in, b_in, bank_ks=bank_ks, act=act)

    # Stage B: residual conv blocks; global average pooling fused into the last.
    # TODO(synk): dropout is identity (inference mode); training-mode dropout
    # would draw masks with pltpu.prng_seed / prng_random_bits inside kernels.
    n_blocks = cfg["n_conv_blocks"]
    for idx in range(n_blocks):
        w1, b1 = kp["conv1"][idx]
        w2, b2 = kp["conv2"][idx]
        out = conv_block(out, w1, b1, w2, b2, ksize=ks,
                         sub=cfg["subsample"][idx], act=act,
                         pool=(idx == n_blocks - 1))

    if n_blocks > 0:
        out = out[:, :, 0]               # pooled (B, c_h) emitted by last block
    else:
        out = global_avg_pool(out)

    # Stage C: all residual dense blocks + output linear in one kernel.
    return dense_tail(out, kp["dense1"], kp["dense2"], kp["out"], act=act)


# ----------------- one-time parameter preparation (no per-forward .T) --------

def prepare_params(params):
    """Pre-pack weights for the kernels: conv -> (K, C_out, C_in), dense -> (D_in, D_out)."""
    kp = {}
    kp["bank"] = [(jnp.transpose(w, (2, 0, 1)), b.reshape(-1, 1))
                  for w, b in params["bank"]]
    w_in, b_in = params["in_conv"]
    kp["in_conv"] = (w_in[:, :, 0], b_in.reshape(-1, 1))
    kp["conv1"] = [(jnp.transpose(w, (2, 0, 1)), b.reshape(-1, 1))
                   for w, b in params["conv1"]]
    kp["conv2"] = [(jnp.transpose(w, (2, 0, 1)), b.reshape(-1, 1))
                   for w, b in params["conv2"]]
    kp["dense1"] = [(w.T, b.reshape(1, -1)) for w, b in params["dense1"]]
    kp["dense2"] = [(w.T, b.reshape(1, -1)) for w, b in params["dense2"]]
    w_o, b_o = params["out"]
    kp["out"] = (w_o.T, b_o.reshape(1, -1))
    return kp


# --------------------------- pure-JAX reference ------------------------------

def reflect_pad_1d(x, k):
    """nn.ReflectionPad1d((k//2, k//2 - 1 + k%2)) on the last axis."""
    left = k // 2
    right = k // 2 - 1 + (k % 2)
    if left == 0 and right == 0:
        return x
    return jnp.pad(x, ((0, 0), (0, 0), (left, right)), mode="reflect")


def avg_pool1d_ceil(x, k):
    """F.avg_pool1d(x, k, ceil_mode=True), valid-count divisor for partial windows."""
    bsz, c, t = x.shape
    n_out = -(-t // k)
    pad = n_out * k - t
    xp = jnp.pad(x, ((0, 0), (0, 0), (0, pad)))
    sums = xp.reshape(bsz, c, n_out, k).sum(-1)
    counts = jnp.minimum((jnp.arange(n_out) + 1) * k, t) - jnp.arange(n_out) * k
    return sums / counts.astype(x.dtype)


def _conv1d_ref(x_pad, w, b):
    k_size = w.shape[2]
    t_out = x_pad.shape[2] - k_size + 1
    acc = jnp.zeros((x_pad.shape[0], w.shape[0], t_out), jnp.float32)
    for k in range(k_size):
        acc = acc + jnp.einsum("oi,bit->bot", w[:, :, k], x_pad[:, :, k:k + t_out])
    return acc + b[None, :, None]


def speaker_encoder_ref(x, params, cfg):
    act = cfg["act"]
    ks = cfg["kernel_size"]
    outs = []
    for w, b in params["bank"]:
        k = w.shape[2]
        outs.append(_apply_act(_conv1d_ref(reflect_pad_1d(x, k), w, b), act))
    out = jnp.concatenate(outs + [x], axis=1)
    w, b = params["in_conv"]
    out = _apply_act(_conv1d_ref(out, w, b), act)
    for idx in range(cfg["n_conv_blocks"]):
        w1, b1 = params["conv1"][idx]
        w2, b2 = params["conv2"][idx]
        y = _apply_act(_conv1d_ref(reflect_pad_1d(out, ks), w1, b1), act)
        y = _apply_act(_conv1d_ref(reflect_pad_1d(y, ks), w2, b2), act)
        sub = cfg["subsample"][idx]
        if sub > 1:
            y = y[:, :, ::sub]
            out = avg_pool1d_ceil(out, sub)
        out = y + out
    out = jnp.mean(out, axis=-1)
    for idx in range(cfg["n_dense_blocks"]):
        w1, b1 = params["dense1"][idx]
        w2, b2 = params["dense2"][idx]
        h = _apply_act(out @ w1.T + b1, act)
        h = _apply_act(h @ w2.T + b2, act)
        out = h + out
    w, b = params["out"]
    return out @ w.T + b


# ------------------------------- parameters ----------------------------------

def init_params(key, cfg):
    c_in, c_h, c_out = cfg["c_in"], cfg["c_h"], cfg["c_out"]
    ks = cfg["kernel_size"]
    c_bank = cfg["c_bank"]
    bank_ks = list(range(cfg["bank_scale"], cfg["bank_size"] + 1, cfg["bank_scale"]))
    in_channels = c_bank * len(bank_ks) + c_in

    keys = [key]

    def nxt():
        keys[0], sub = jax.random.split(keys[0])
        return sub

    def conv_w(co, ci, k):
        return 0.1 * jax.random.normal(nxt(), (co, ci, k), jnp.float32)

    def vec(n):
        return 0.1 * jax.random.normal(nxt(), (n,), jnp.float32)

    def lin_w(do, di):
        return 0.1 * jax.random.normal(nxt(), (do, di), jnp.float32)

    params = {
        "bank": [(conv_w(c_bank, c_in, k), vec(c_bank)) for k in bank_ks],
        "in_conv": (conv_w(c_h, in_channels, 1), vec(c_h)),
        "conv1": [(conv_w(c_h, c_h, ks), vec(c_h)) for _ in range(cfg["n_conv_blocks"])],
        "conv2": [(conv_w(c_h, c_h, ks), vec(c_h)) for _ in range(cfg["n_conv_blocks"])],
        "dense1": [(lin_w(c_h, c_h), vec(c_h)) for _ in range(cfg["n_dense_blocks"])],
        "dense2": [(lin_w(c_h, c_h), vec(c_h)) for _ in range(cfg["n_dense_blocks"])],
        "out": (lin_w(c_out, c_h), vec(c_out)),
    }
    return params


# ---------------------------------- main -------------------------------------

if __name__ == "__main__":
    cfg = dict(
        c_in=4, c_h=32, c_out=8,
        kernel_size=3, bank_size=4, bank_scale=2, c_bank=8,
        n_conv_blocks=2, n_dense_blocks=2,
        subsample=[1, 2], act="lrelu", dropout_rate=0.0,
    )
    B, T = 2, 16

    key = jax.random.PRNGKey(0)
    key, xk = jax.random.split(key)
    x = jax.random.normal(xk, (B, cfg["c_in"], T), dtype=jnp.float32)
    params = init_params(key, cfg)
    kparams = prepare_params(params)          # one-time weight pre-packing

    fwd = jax.jit(lambda xx, pp: speaker_encoder_forward(xx, pp, cfg))
    out = jax.block_until_ready(fwd(x, kparams))

    ref = speaker_encoder_ref(x, params, cfg)
    assert out.shape == (B, cfg["c_out"]), out.shape
    assert out.dtype == jnp.float32
    assert bool(jnp.all(jnp.isfinite(out)))
    assert jnp.allclose(out, ref, rtol=2e-2, atol=2e-2), (
        f"max abs err = {float(jnp.max(jnp.abs(out - ref)))}")

    print("KERNEL_OK")
</pallas_src>

<mosaic_0001>
module attributes {stable_mosaic.version = 11 : i64} {
  func.func @_bank_in_conv_kernel(%arg0: i32, %arg1: memref<1x4x16xf32, #tpu.memory_space<vmem>>, %arg2: memref<2x8x4xf32, #tpu.memory_space<vmem>>, %arg3: memref<8x1xf32, #tpu.memory_space<vmem>>, %arg4: memref<4x8x4xf32, #tpu.memory_space<vmem>>, %arg5: memref<8x1xf32, #tpu.memory_space<vmem>>, %arg6: memref<32x20xf32, #tpu.memory_space<vmem>>, %arg7: memref<32x1xf32, #tpu.memory_space<vmem>>, %arg8: memref<1x32x16xf32, #tpu.memory_space<vmem>>, %arg9: memref<4x19xf32, #tpu.memory_space<vmem>>) attributes {dimension_semantics = [#tpu.dimension_semantics<parallel>], iteration_bounds = array<i64: 2>, scalar_prefetch = 0 : i64, scratch_operands = 1 : i64, tpu.core_type = #tpu.core_type<tc>, window_params = [{transform_indices = @transform_0, window_bounds = array<i64: 1, 4, 16>}, {pipeline_mode = #tpu.pipeline_mode<synchronous>, transform_indices = @transform_1, window_bounds = array<i64: 2, 8, 4>}, {pipeline_mode = #tpu.pipeline_mode<synchronous>, transform_indices = @transform_2, window_bounds = array<i64: 8, 1>}, {pipeline_mode = #tpu.pipeline_mode<synchronous>, transform_indices = @transform_3, window_bounds = array<i64: 4, 8, 4>}, {pipeline_mode = #tpu.pipeline_mode<synchronous>, transform_indices = @transform_4, window_bounds = array<i64: 8, 1>}, {pipeline_mode = #tpu.pipeline_mode<synchronous>, transform_indices = @transform_5, window_bounds = array<i64: 32, 20>}, {pipeline_mode = #tpu.pipeline_mode<synchronous>, transform_indices = @transform_6, window_bounds = array<i64: 32, 1>}, {transform_indices = @transform_7, window_bounds = array<i64: 1, 32, 16>}]} {
    %c0 = arith.constant 0 : index
    %c0_0 = arith.constant 0 : index
    %c0_1 = arith.constant 0 : index
    %0 = vector.load %arg1[%c0, %c0_0, %c0_1] : memref<1x4x16xf32, #tpu.memory_space<vmem>>, vector<1x4x16xf32>
    %1 = vector.shape_cast %0 : vector<1x4x16xf32> to vector<4x16xf32>
    %c0_2 = arith.constant 0 : index
    %c2 = arith.constant 2 : index
    %2 = vector.load %arg9[%c0_2, %c2] : memref<4x19xf32, #tpu.memory_space<vmem>>, vector<4x16xf32>
    tpu.vector_store %arg9[%c0_2, %c2], %1 {strides = array<i32>} : memref<4x19xf32, #tpu.memory_space<vmem>>, vector<4x16xf32>,
    %3 = vector.extract_strided_slice %1 {offsets = [0, 2], sizes = [4, 1], strides = [1, 1]} : vector<4x16xf32> to vector<4x1xf32>
    %c0_3 = arith.constant 0 : index
    %c0_4 = arith.constant 0 : index
    %4 = vector.load %arg9[%c0_3, %c0_4] : memref<4x19xf32, #tpu.memory_space<vmem>>, vector<4x1xf32>
    tpu.vector_store %arg9[%c0_3, %c0_4], %3 {strides = array<i32>} : memref<4x19xf32, #tpu.memory_space<vmem>>, vector<4x1xf32>,
    %5 = vector.extract_strided_slice %1 {offsets = [0, 1], sizes = [4, 1], strides = [1, 1]} : vector<4x16xf32> to vector<4x1xf32>
    %c0_5 = arith.constant 0 : index
    %c1 = arith.constant 1 : index
    %6 = vector.load %arg9[%c0_5, %c1] : memref<4x19xf32, #tpu.memory_space<vmem>>, vector<4x1xf32>
    tpu.vector_store %arg9[%c0_5, %c1], %5 {strides = array<i32>} : memref<4x19xf32, #tpu.memory_space<vmem>>, vector<4x1xf32>,
    %7 = vector.extract_strided_slice %1 {offsets = [0, 14], sizes = [4, 1], strides = [1, 1]} : vector<4x16xf32> to vector<4x1xf32>
    %c0_6 = arith.constant 0 : index
    %c18 = arith.constant 18 : index
    %8 = vector.load %arg9[%c0_6, %c18] : memref<4x19xf32, #tpu.memory_space<vmem>>, vector<4x1xf32>
    tpu.vector_store %arg9[%c0_6, %c18], %7 {strides = array<i32>} : memref<4x19xf32, #tpu.memory_space<vmem>>, vector<4x1xf32>,
    %c0_7 = arith.constant 0 : index
    %c0_8 = arith.constant 0 : index
    %9 = vector.load %arg6[%c0_7, %c0_8] : memref<32x20xf32, #tpu.memory_space<vmem>>, vector<32x20xf32>
    %c0_9 = arith.constant 0 : index
    %c0_10 = arith.constant 0 : index
    %10 = vector.load %arg7[%c0_9, %c0_10] : memref<32x1xf32, #tpu.memory_space<vmem>>, vector<32x1xf32>
    %11 = vector.shape_cast %10 : vector<32x1xf32> to vector<32x1xf32>
    %12 = vector.broadcast %11 : vector<32x1xf32> to vector<32x16xf32>
    %c0_11 = arith.constant 0 : index
    %c0_12 = arith.constant 0 : index
    %13 = vector.load %arg3[%c0_11, %c0_12] : memref<8x1xf32, #tpu.memory_space<vmem>>, vector<8x1xf32>
    %14 = vector.shape_cast %13 : vector<8x1xf32> to vector<8x1xf32>
    %15 = vector.broadcast %14 : vector<8x1xf32> to vector<8x16xf32>
    %c0_13 = arith.constant 0 : index
    %c0_14 = arith.constant 0 : index
    %c0_15 = arith.constant 0 : index
    %16 = vector.load %arg2[%c0_13, %c0_14, %c0_15] : memref<2x8x4xf32, #tpu.memory_space<vmem>>, vector<1x8x4xf32>
    %17 = vector.shape_cast %16 : vector<1x8x4xf32> to vector<8x4xf32>
    %c0_16 = arith.constant 0 : index
    %c1_17 = arith.constant 1 : index
    %18 = vector.load %arg9[%c0_16, %c1_17] : memref<4x19xf32, #tpu.memory_space<vmem>>, vector<4x16xf32>
    %cst = arith.constant dense<0.000000e+00> : vector<8x16xf32>
    %19 = tpu.matmul %17, %18, %cst {dimension_numbers = #tpu.dot_dimension_numbers<[1], [0], [0], [1], [0, 0, 1, 1], [], []>} : vector<8x4xf32>, vector<4x16xf32>, vector<8x16xf32> -> vector<8x16xf32>
    %20 = arith.addf %15, %19 : vector<8x16xf32>
    %c1_18 = arith.constant 1 : index
    %c0_19 = arith.constant 0 : index
    %c0_20 = arith.constant 0 : index
    %21 = vector.load %arg2[%c1_18, %c0_19, %c0_20] : memref<2x8x4xf32, #tpu.memory_space<vmem>>, vector<1x8x4xf32>
    %22 = vector.shape_cast %21 : vector<1x8x4xf32> to vector<8x4xf32>
    %c0_21 = arith.constant 0 : index
    %c2_22 = arith.constant 2 : index
    %23 = vector.load %arg9[%c0_21, %c2_22] : memref<4x19xf32, #tpu.memory_space<vmem>>, vector<4x16xf32>
    %cst_23 = arith.constant dense<0.000000e+00> : vector<8x16xf32>
    %24 = tpu.matmul %22, %23, %cst_23 {dimension_numbers = #tpu.dot_dimension_numbers<[1], [0], [0], [1], [0, 0, 1, 1], [], []>} : vector<8x4xf32>, vector<4x16xf32>, vector<8x16xf32> -> vector<8x16xf32>
    %25 = arith.addf %20, %24 : vector<8x16xf32>
    %cst_24 = arith.constant 0.000000e+00 : f32
    %26 = vector.broadcast %cst_24 : f32 to vector<8x16xf32>
    %27 = arith.cmpf oge, %25, %26 : vector<8x16xf32>
    %cst_25 = arith.constant 0.00999999977 : f32
    %28 = vector.broadcast %cst_25 : f32 to vector<8x16xf32>
    %29 = arith.mulf %28, %25 : vector<8x16xf32>
    %30 = arith.select %27, %25, %29 : vector<8x16xi1>, vector<8x16xf32>
    %31 = vector.extract_strided_slice %9 {offsets = [0, 0], sizes = [32, 8], strides = [1, 1]} : vector<32x20xf32> to vector<32x8xf32>
    %cst_26 = arith.constant dense<0.000000e+00> : vector<32x16xf32>
    %32 = tpu.matmul %31, %30, %cst_26 {dimension_numbers = #tpu.dot_dimension_numbers<[1], [0], [0], [1], [0, 0, 1, 1], [], []>} : vector<32x8xf32>, vector<8x16xf32>, vector<32x16xf32> -> vector<32x16xf32>
    %33 = arith.addf %12, %32 : vector<32x16xf32>
    %c0_27 = arith.constant 0 : index
    %c0_28 = arith.constant 0 : index
    %34 = vector.load %arg5[%c0_27, %c0_28] : memref<8x1xf32, #tpu.memory_space<vmem>>, vector<8x1xf32>
    %35 = vector.shape_cast %34 : vector<8x1xf32> to vector<8x1xf32>
    %36 = vector.broadcast %35 : vector<8x1xf32> to vector<8x16xf32>
    %c0_29 = arith.constant 0 : index
    %c0_30 = arith.constant 0 : index
    %c0_31 = arith.constant 0 : index
    %37 = vector.load %arg4[%c0_29, %c0_30, %c0_31] : memref<4x8x4xf32, #tpu.memory_space<vmem>>, vector<1x8x4xf32>
    %38 = vector.shape_cast %37 : vector<1x8x4xf32> to vector<8x4xf32>
    %c0_32 = arith.constant 0 : index
    %c0_33 = arith.constant 0 : index
    %39 = vector.load %arg9[%c0_32, %c0_33] : memref<4x19xf32, #tpu.memory_space<vmem>>, vector<4x16xf32>
    %cst_34 = arith.constant dense<0.000000e+00> : vector<8x16xf32>
    %40 = tpu.matmul %38, %39, %cst_34 {dimension_numbers = #tpu.dot_dimension_numbers<[1], [0], [0], [1], [0, 0, 1, 1], [], []>} : vector<8x4xf32>, vector<4x16xf32>, vector<8x16xf32> -> vector<8x16xf32>
    %41 = arith.addf %36, %40 : vector<8x16xf32>
    %c1_35 = arith.constant 1 : index
    %c0_36 = arith.constant 0 : index
    %c0_37 = arith.constant 0 : index
    %42 = vector.load %arg4[%c1_35, %c0_36, %c0_37] : memref<4x8x4xf32, #tpu.memory_space<vmem>>, vector<1x8x4xf32>
    %43 = vector.shape_cast %42 : vector<1x8x4xf32> to vector<8x4xf32>
    %c0_38 = arith.constant 0 : index
    %c1_39 = arith.constant 1 : index
    %44 = vector.load %arg9[%c0_38, %c1_39] : memref<4x19xf32, #tpu.memory_space<vmem>>, vector<4x16xf32>
    %cst_40 = arith.constant dense<0.000000e+00> : vector<8x16xf32>
    %45 = tpu.matmul %43, %44, %cst_40 {dimension_numbers = #tpu.dot_dimension_numbers<[1], [0], [0], [1], [0, 0, 1, 1], [], []>} : vector<8x4xf32>, vector<4x16xf32>, vector<8x16xf32> -> vector<8x16xf32>
    %46 = arith.addf %41, %45 : vector<8x16xf32>
    %c2_41 = arith.constant 2 : index
    %c0_42 = arith.constant 0 : index
    %c0_43 = arith.constant 0 : index
    %47 = vector.load %arg4[%c2_41, %c0_42, %c0_43] : memref<4x8x4xf32, #tpu.memory_space<vmem>>, vector<1x8x4xf32>
    %48 = vector.shape_cast %47 : vector<1x8x4xf32> to vector<8x4xf32>
    %c0_44 = arith.constant 0 : index
    %c2_45 = arith.constant 2 : index
    %49 = vector.load %arg9[%c0_44, %c2_45] : memref<4x19xf32, #tpu.memory_space<vmem>>, vector<4x16xf32>
    %cst_46 = arith.constant dense<0.000000e+00> : vector<8x16xf32>
    %50 = tpu.matmul %48, %49, %cst_46 {dimension_numbers = #tpu.dot_dimension_numbers<[1], [0], [0], [1], [0, 0, 1, 1], [], []>} : vector<8x4xf32>, vector<4x16xf32>, vector<8x16xf32> -> vector<8x16xf32>
    %51 = arith.addf %46, %50 : vector<8x16xf32>
    %c3 = arith.constant 3 : index
    %c0_47 = arith.constant 0 : index
    %c0_48 = arith.constant 0 : index
    %52 = vector.load %arg4[%c3, %c0_47, %c0_48] : memref<4x8x4xf32, #tpu.memory_space<vmem>>, vector<1x8x4xf32>
    %53 = vector.shape_cast %52 : vector<1x8x4xf32> to vector<8x4xf32>
    %c0_49 = arith.constant 0 : index
    %c3_50 = arith.constant 3 : index
    %54 = vector.load %arg9[%c0_49, %c3_50] : memref<4x19xf32, #tpu.memory_space<vmem>>, vector<4x16xf32>
    %cst_51 = arith.constant dense<0.000000e+00> : vector<8x16xf32>
    %55 = tpu.matmul %53, %54, %cst_51 {dimension_numbers = #tpu.dot_dimension_numbers<[1], [0], [0], [1], [0, 0, 1, 1], [], []>} : vector<8x4xf32>, vector<4x16xf32>, vector<8x16xf32> -> vector<8x16xf32>
    %56 = arith.addf %51, %55 : vector<8x16xf32>
    %cst_52 = arith.constant 0.000000e+00 : f32
    %57 = vector.broadcast %cst_52 : f32 to vector<8x16xf32>
    %58 = arith.cmpf oge, %56, %57 : vector<8x16xf32>
    %cst_53 = arith.constant 0.00999999977 : f32
    %59 = vector.broadcast %cst_53 : f32 to vector<8x16xf32>
    %60 = arith.mulf %59, %56 : vector<8x16xf32>
    %61 = arith.select %58, %56, %60 : vector<8x16xi1>, vector<8x16xf32>
    %62 = vector.extract_strided_slice %9 {offsets = [0, 8], sizes = [32, 8], strides = [1, 1]} : vector<32x20xf32> to vector<32x8xf32>
    %cst_54 = arith.constant dense<0.000000e+00> : vector<32x16xf32>
    %63 = tpu.matmul %62, %61, %cst_54 {dimension_numbers = #tpu.dot_dimension_numbers<[1], [0], [0], [1], [0, 0, 1, 1], [], []>} : vector<32x8xf32>, vector<8x16xf32>, vector<32x16xf32> -> vector<32x16xf32>
    %64 = arith.addf %33, %63 : vector<32x16xf32>
    %65 = vector.extract_strided_slice %9 {offsets = [0, 16], sizes = [32, 4], strides = [1, 1]} : vector<32x20xf32> to vector<32x4xf32>
    %cst_55 = arith.constant dense<0.000000e+00> : vector<32x16xf32>
    %66 = tpu.matmul %65, %1, %cst_55 {dimension_numbers = #tpu.dot_dimension_numbers<[1], [0], [0], [1], [0, 0, 1, 1], [], []>} : vector<32x4xf32>, vector<4x16xf32>, vector<32x16xf32> -> vector<32x16xf32>
    %67 = arith.addf %64, %66 : vector<32x16xf32>
    %cst_56 = arith.constant 0.000000e+00 : f32
    %68 = vector.broadcast %cst_56 : f32 to vector<32x16xf32>
    %69 = arith.cmpf oge, %67, %68 : vector<32x16xf32>
    %cst_57 = arith.constant 0.00999999977 : f32
    %70 = vector.broadcast %cst_57 : f32 to vector<32x16xf32>
    %71 = arith.mulf %70, %67 : vector<32x16xf32>
    %72 = arith.select %69, %67, %71 : vector<32x16xi1>, vector<32x16xf32>
    %c0_58 = arith.constant 0 : index
    %c0_59 = arith.constant 0 : index
    %c0_60 = arith.constant 0 : index
    %73 = vector.load %arg8[%c0_58, %c0_59, %c0_60] : memref<1x32x16xf32, #tpu.memory_space<vmem>>, vector<1x32x16xf32>
    %74 = vector.shape_cast %73 : vector<1x32x16xf32> to vector<32x16xf32>
    %75 = vector.shape_cast %72 : vector<32x16xf32> to vector<1x32x16xf32>
    tpu.vector_store %arg8[%c0_58, %c0_59, %c0_60], %75 {strides = array<i32>} : memref<1x32x16xf32, #tpu.memory_space<vmem>>, vector<1x32x16xf32>,
    return
  }
  func.func @transform_0(%arg0: i32) -> (i32, i32, i32) {
    %c0_i32 = arith.constant 0 : i32
    %c0_i32_0 = arith.constant 0 : i32
    %c0_i32_1 = arith.constant 0 : i32
    return %arg0, %c0_i32, %c0_i32_0 : i32, i32, i32
  }
  func.func @transform_1(%arg0: i32) -> (i32, i32, i32) {
    %c0_i32 = arith.constant 0 : i32
    %c0_i32_0 = arith.constant 0 : i32
    %c0_i32_1 = arith.constant 0 : i32
    %c0_i32_2 = arith.constant 0 : i32
    return %c0_i32, %c0_i32_0, %c0_i32_1 : i32, i32, i32
  }
  func.func @transform_2(%arg0: i32) -> (i32, i32) {
    %c0_i32 = arith.constant 0 : i32
    %c0_i32_0 = arith.constant 0 : i32
    %c0_i32_1 = arith.constant 0 : i32
    return %c0_i32, %c0_i32_0 : i32, i32
  }
  func.func @transform_3(%arg0: i32) -> (i32, i32, i32) {
    %c0_i32 = arith.constant 0 : i32
    %c0_i32_0 = arith.constant 0 : i32
    %c0_i32_1 = arith.constant 0 : i32
    %c0_i32_2 = arith.constant 0 : i32
    return %c0_i32, %c0_i32_0, %c0_i32_1 : i32, i32, i32
  }
  func.func @transform_4(%arg0: i32) -> (i32, i32) {
    %c0_i32 = arith.constant 0 : i32
    %c0_i32_0 = arith.constant 0 : i32
    %c0_i32_1 = arith.constant 0 : i32
    return %c0_i32, %c0_i32_0 : i32, i32
  }
  func.func @transform_5(%arg0: i32) -> (i32, i32) {
    %c0_i32 = arith.constant 0 : i32
    %c0_i32_0 = arith.constant 0 : i32
    %c0_i32_1 = arith.constant 0 : i32
    return %c0_i32, %c0_i32_0 : i32, i32
  }
  func.func @transform_6(%arg0: i32) -> (i32, i32) {
    %c0_i32 = arith.constant 0 : i32
    %c0_i32_0 = arith.constant 0 : i32
    %c0_i32_1 = arith.constant 0 : i32
    return %c0_i32, %c0_i32_0 : i32, i32
  }
  func.func @transform_7(%arg0: i32) -> (i32, i32, i32) {
    %c0_i32 = arith.constant 0 : i32
    %c0_i32_0 = arith.constant 0 : i32
    %c0_i32_1 = arith.constant 0 : i32
    return %arg0, %c0_i32, %c0_i32_0 : i32, i32, i32
  }
}

module attributes {stable_mosaic.version = 11 : i64} {
  func.func @_conv_block_kernel(%arg0: i32, %arg1: memref<1x32x16xf32, #tpu.memory_space<vmem>>, %arg2: memref<3x32x32xf32, #tpu.memory_space<vmem>>, %arg3: memref<32x1xf32, #tpu.memory_space<vmem>>, %arg4: memref<3x32x32xf32, #tpu.memory_space<vmem>>, %arg5: memref<32x1xf32, #tpu.memory_space<vmem>>, %arg6: memref<16x8xf32, #tpu.memory_space<vmem>>, %arg7: memref<16x8xf32, #tpu.memory_space<vmem>>, %arg8: memref<1x32x1xf32, #tpu.memory_space<vmem>>, %arg9: memref<32x18xf32, #tpu.memory_space<vmem>>) attributes {dimension_semantics = [#tpu.dimension_semantics<parallel>], iteration_bounds = array<i64: 2>, scalar_prefetch = 0 : i64, scratch_operands = 1 : i64, tpu.core_type = #tpu.core_type<tc>, window_params = [{transform_indices = @transform_0, window_bounds = array<i64: 1, 32, 16>}, {pipeline_mode = #tpu.pipeline_mode<synchronous>, transform_indices = @transform_1, window_bounds = array<i64: 3, 32, 32>}, {pipeline_mode = #tpu.pipeline_mode<synchronous>, transform_indices = @transform_2, window_bounds = array<i64: 32, 1>}, {pipeline_mode = #tpu.pipeline_mode<synchronous>, transform_indices = @transform_3, window_bounds = array<i64: 3, 32, 32>}, {pipeline_mode = #tpu.pipeline_mode<synchronous>, transform_indices = @transform_4, window_bounds = array<i64: 32, 1>}, {pipeline_mode = #tpu.pipeline_mode<synchronous>, transform_indices = @transform_5, window_bounds = array<i64: 16, 8>}, {pipeline_mode = #tpu.pipeline_mode<synchronous>, transform_indices = @transform_6, window_bounds = array<i64: 16, 8>}, {transform_indices = @transform_7, window_bounds = array<i64: 1, 32, 1>}]} {
    %c0 = arith.constant 0 : index
    %c0_0 = arith.constant 0 : index
    %c0_1 = arith.constant 0 : index
    %0 = vector.load %arg1[%c0, %c0_0, %c0_1] : memref<1x32x16xf32, #tpu.memory_space<vmem>>, vector<1x32x16xf32>
    %1 = vector.shape_cast %0 : vector<1x32x16xf32> to vector<32x16xf32>
    %c0_2 = arith.constant 0 : index
    %c1 = arith.constant 1 : index
    %2 = vector.load %arg9[%c0_2, %c1] : memref<32x18xf32, #tpu.memory_space<vmem>>, vector<32x16xf32>
    tpu.vector_store %arg9[%c0_2, %c1], %1 {strides = array<i32>} : memref<32x18xf32, #tpu.memory_space<vmem>>, vector<32x16xf32>,
    %3 = vector.extract_strided_slice %1 {offsets = [0, 1], sizes = [32, 1], strides = [1, 1]} : vector<32x16xf32> to vector<32x1xf32>
    %c0_3 = arith.constant 0 : index
    %c0_4 = arith.constant 0 : index
    %4 = vector.load %arg9[%c0_3, %c0_4] : memref<32x18xf32, #tpu.memory_space<vmem>>, vector<32x1xf32>
    tpu.vector_store %arg9[%c0_3, %c0_4], %3 {strides = array<i32>} : memref<32x18xf32, #tpu.memory_space<vmem>>, vector<32x1xf32>,
    %5 = vector.extract_strided_slice %1 {offsets = [0, 14], sizes = [32, 1], strides = [1, 1]} : vector<32x16xf32> to vector<32x1xf32>
    %c0_5 = arith.constant 0 : index
    %c17 = arith.constant 17 : index
    %6 = vector.load %arg9[%c0_5, %c17] : memref<32x18xf32, #tpu.memory_space<vmem>>, vector<32x1xf32>
    tpu.vector_store %arg9[%c0_5, %c17], %5 {strides = array<i32>} : memref<32x18xf32, #tpu.memory_space<vmem>>, vector<32x1xf32>,
    %c0_6 = arith.constant 0 : index
    %c0_7 = arith.constant 0 : index
    %7 = vector.load %arg3[%c0_6, %c0_7] : memref<32x1xf32, #tpu.memory_space<vmem>>, vector<32x1xf32>
    %8 = vector.shape_cast %7 : vector<32x1xf32> to vector<32x1xf32>
    %9 = vector.broadcast %8 : vector<32x1xf32> to vector<32x16xf32>
    %c0_8 = arith.constant 0 : index
    %c0_9 = arith.constant 0 : index
    %c0_10 = arith.constant 0 : index
    %10 = vector.load %arg2[%c0_8, %c0_9, %c0_10] : memref<3x32x32xf32, #tpu.memory_space<vmem>>, vector<1x32x32xf32>
    %11 = vector.shape_cast %10 : vector<1x32x32xf32> to vector<32x32xf32>
    %c0_11 = arith.constant 0 : index
    %c0_12 = arith.constant 0 : index
    %12 = vector.load %arg9[%c0_11, %c0_12] : memref<32x18xf32, #tpu.memory_space<vmem>>, vector<32x16xf32>
    %cst = arith.constant dense<0.000000e+00> : vector<32x16xf32>
    %13 = tpu.matmul %11, %12, %cst {dimension_numbers = #tpu.dot_dimension_numbers<[1], [0], [0], [1], [0, 0, 1, 1], [], []>} : vector<32x32xf32>, vector<32x16xf32>, vector<32x16xf32> -> vector<32x16xf32>
    %14 = arith.addf %9, %13 : vector<32x16xf32>
    %c1_13 = arith.constant 1 : index
    %c0_14 = arith.constant 0 : index
    %c0_15 = arith.constant 0 : index
    %15 = vector.load %arg2[%c1_13, %c0_14, %c0_15] : memref<3x32x32xf32, #tpu.memory_space<vmem>>, vector<1x32x32xf32>
    %16 = vector.shape_cast %15 : vector<1x32x32xf32> to vector<32x32xf32>
    %c0_16 = arith.constant 0 : index
    %c1_17 = arith.constant 1 : index
    %17 = vector.load %arg9[%c0_16, %c1_17] : memref<32x18xf32, #tpu.memory_space<vmem>>, vector<32x16xf32>
    %cst_18 = arith.constant dense<0.000000e+00> : vector<32x16xf32>
    %18 = tpu.matmul %16, %17, %cst_18 {dimension_numbers = #tpu.dot_dimension_numbers<[1], [0], [0], [1], [0, 0, 1, 1], [], []>} : vector<32x32xf32>, vector<32x16xf32>, vector<32x16xf32> -> vector<32x16xf32>
    %19 = arith.addf %14, %18 : vector<32x16xf32>
    %c2 = arith.constant 2 : index
    %c0_19 = arith.constant 0 : index
    %c0_20 = arith.constant 0 : index
    %20 = vector.load %arg2[%c2, %c0_19, %c0_20] : memref<3x32x32xf32, #tpu.memory_space<vmem>>, vector<1x32x32xf32>
    %21 = vector.shape_cast %20 : vector<1x32x32xf32> to vector<32x32xf32>
    %c0_21 = arith.constant 0 : index
    %c2_22 = arith.constant 2 : index
    %22 = vector.load %arg9[%c0_21, %c2_22] : memref<32x18xf32, #tpu.memory_space<vmem>>, vector<32x16xf32>
    %cst_23 = arith.constant dense<0.000000e+00> : vector<32x16xf32>
    %23 = tpu.matmul %21, %22, %cst_23 {dimension_numbers = #tpu.dot_dimension_numbers<[1], [0], [0], [1], [0, 0, 1, 1], [], []>} : vector<32x32xf32>, vector<32x16xf32>, vector<32x16xf32> -> vector<32x16xf32>
    %24 = arith.addf %19, %23 : vector<32x16xf32>
    %cst_24 = arith.constant 0.000000e+00 : f32
    %25 = vector.broadcast %cst_24 : f32 to vector<32x16xf32>
    %26 = arith.cmpf oge, %24, %25 : vector<32x16xf32>
    %cst_25 = arith.constant 0.00999999977 : f32
    %27 = vector.broadcast %cst_25 : f32 to vector<32x16xf32>
    %28 = arith.mulf %27, %24 : vector<32x16xf32>
    %29 = arith.select %26, %24, %28 : vector<32x16xi1>, vector<32x16xf32>
    %c0_26 = arith.constant 0 : index
    %c1_27 = arith.constant 1 : index
    %30 = vector.load %arg9[%c0_26, %c1_27] : memref<32x18xf32, #tpu.memory_space<vmem>>, vector<32x16xf32>
    tpu.vector_store %arg9[%c0_26, %c1_27], %29 {strides = array<i32>} : memref<32x18xf32, #tpu.memory_space<vmem>>, vector<32x16xf32>,
    %31 = vector.extract_strided_slice %29 {offsets = [0, 1], sizes = [32, 1], strides = [1, 1]} : vector<32x16xf32> to vector<32x1xf32>
    %c0_28 = arith.constant 0 : index
    %c0_29 = arith.constant 0 : index
    %32 = vector.load %arg9[%c0_28, %c0_29] : memref<32x18xf32, #tpu.memory_space<vmem>>, vector<32x1xf32>
    tpu.vector_store %arg9[%c0_28, %c0_29], %31 {strides = array<i32>} : memref<32x18xf32, #tpu.memory_space<vmem>>, vector<32x1xf32>,
    %33 = vector.extract_strided_slice %29 {offsets = [0, 14], sizes = [32, 1], strides = [1, 1]} : vector<32x16xf32> to vector<32x1xf32>
    %c0_30 = arith.constant 0 : index
    %c17_31 = arith.constant 17 : index
    %34 = vector.load %arg9[%c0_30, %c17_31] : memref<32x18xf32, #tpu.memory_space<vmem>>, vector<32x1xf32>
    tpu.vector_store %arg9[%c0_30, %c17_31], %33 {strides = array<i32>} : memref<32x18xf32, #tpu.memory_space<vmem>>, vector<32x1xf32>,
    %c0_32 = arith.constant 0 : index
    %c0_33 = arith.constant 0 : index
    %35 = vector.load %arg5[%c0_32, %c0_33] : memref<32x1xf32, #tpu.memory_space<vmem>>, vector<32x1xf32>
    %36 = vector.shape_cast %35 : vector<32x1xf32> to vector<32x1xf32>
    %37 = vector.broadcast %36 : vector<32x1xf32> to vector<32x16xf32>
    %c0_34 = arith.constant 0 : index
    %c0_35 = arith.constant 0 : index
    %c0_36 = arith.constant 0 : index
    %38 = vector.load %arg4[%c0_34, %c0_35, %c0_36] : memref<3x32x32xf32, #tpu.memory_space<vmem>>, vector<1x32x32xf32>
    %39 = vector.shape_cast %38 : vector<1x32x32xf32> to vector<32x32xf32>
    %c0_37 = arith.constant 0 : index
    %c0_38 = arith.constant 0 : index
    %40 = vector.load %arg9[%c0_37, %c0_38] : memref<32x18xf32, #tpu.memory_space<vmem>>, vector<32x16xf32>
    %cst_39 = arith.constant dense<0.000000e+00> : vector<32x16xf32>
    %41 = tpu.matmul %39, %40, %cst_39 {dimension_numbers = #tpu.dot_dimension_numbers<[1], [0], [0], [1], [0, 0, 1, 1], [], []>} : vector<32x32xf32>, vector<32x16xf32>, vector<32x16xf32> -> vector<32x16xf32>
    %42 = arith.addf %37, %41 : vector<32x16xf32>
    %c1_40 = arith.constant 1 : index
    %c0_41 = arith.constant 0 : index
    %c0_42 = arith.constant 0 : index
    %43 = vector.load %arg4[%c1_40, %c0_41, %c0_42] : memref<3x32x32xf32, #tpu.memory_space<vmem>>, vector<1x32x32xf32>
    %44 = vector.shape_cast %43 : vector<1x32x32xf32> to vector<32x32xf32>
    %c0_43 = arith.constant 0 : index
    %c1_44 = arith.constant 1 : index
    %45 = vector.load %arg9[%c0_43, %c1_44] : memref<32x18xf32, #tpu.memory_space<vmem>>, vector<32x16xf32>
    %cst_45 = arith.constant dense<0.000000e+00> : vector<32x16xf32>
    %46 = tpu.matmul %44, %45, %cst_45 {dimension_numbers = #tpu.dot_dimension_numbers<[1], [0], [0], [1], [0, 0, 1, 1], [], []>} : vector<32x32xf32>, vector<32x16xf32>, vector<32x16xf32> -> vector<32x16xf32>
    %47 = arith.addf %42, %46 : vector<32x16xf32>
    %c2_46 = arith.constant 2 : index
    %c0_47 = arith.constant 0 : index
    %c0_48 = arith.constant 0 : index
    %48 = vector.load %arg4[%c2_46, %c0_47, %c0_48] : memref<3x32x32xf32, #tpu.memory_space<vmem>>, vector<1x32x32xf32>
    %49 = vector.shape_cast %48 : vector<1x32x32xf32> to vector<32x32xf32>
    %c0_49 = arith.constant 0 : index
    %c2_50 = arith.constant 2 : index
    %50 = vector.load %arg9[%c0_49, %c2_50] : memref<32x18xf32, #tpu.memory_space<vmem>>, vector<32x16xf32>
    %cst_51 = arith.constant dense<0.000000e+00> : vector<32x16xf32>
    %51 = tpu.matmul %49, %50, %cst_51 {dimension_numbers = #tpu.dot_dimension_numbers<[1], [0], [0], [1], [0, 0, 1, 1], [], []>} : vector<32x32xf32>, vector<32x16xf32>, vector<32x16xf32> -> vector<32x16xf32>
    %52 = arith.addf %47, %51 : vector<32x16xf32>
    %cst_52 = arith.constant 0.000000e+00 : f32
    %53 = vector.broadcast %cst_52 : f32 to vector<32x16xf32>
    %54 = arith.cmpf oge, %52, %53 : vector<32x16xf32>
    %cst_53 = arith.constant 0.00999999977 : f32
    %55 = vector.broadcast %cst_53 : f32 to vector<32x16xf32>
    %56 = arith.mulf %55, %52 : vector<32x16xf32>
    %57 = arith.select %54, %52, %56 : vector<32x16xi1>, vector<32x16xf32>
    %c0_54 = arith.constant 0 : index
    %c0_55 = arith.constant 0 : index
    %58 = vector.load %arg6[%c0_54, %c0_55] : memref<16x8xf32, #tpu.memory_space<vmem>>, vector<16x8xf32>
    %cst_56 = arith.constant dense<0.000000e+00> : vector<32x8xf32>
    %59 = tpu.matmul %57, %58, %cst_56 {dimension_numbers = #tpu.dot_dimension_numbers<[1], [0], [0], [1], [0, 0, 1, 1], [], []>} : vector<32x16xf32>, vector<16x8xf32>, vector<32x8xf32> -> vector<32x8xf32>
    %c0_57 = arith.constant 0 : index
    %c0_58 = arith.constant 0 : index
    %60 = vector.load %arg7[%c0_57, %c0_58] : memref<16x8xf32, #tpu.memory_space<vmem>>, vector<16x8xf32>
    %cst_59 = arith.constant dense<0.000000e+00> : vector<32x8xf32>
    %61 = tpu.matmul %1, %60, %cst_59 {dimension_numbers = #tpu.dot_dimension_numbers<[1], [0], [0], [1], [0, 0, 1, 1], [], []>} : vector<32x16xf32>, vector<16x8xf32>, vector<32x8xf32> -> vector<32x8xf32>
    %62 = arith.addf %59, %61 : vector<32x8xf32>
    %cst_60 = arith.constant dense<0.000000e+00> : vector<32xf32>
    %63 = vector.multi_reduction <add>, %62, %cst_60 [1] : vector<32x8xf32> to vector<32xf32>
    %64 = vector.shape_cast %63 : vector<32xf32> to vector<32x1xf32>
    %cst_61 = arith.constant 1.250000e-01 : f32
    %65 = vector.broadcast %cst_61 : f32 to vector<32x1xf32>
    %66 = arith.mulf %64, %65 : vector<32x1xf32>
    %c0_62 = arith.constant 0 : index
    %c0_63 = arith.constant 0 : index
    %c0_64 = arith.constant 0 : index
    %67 = vector.load %arg8[%c0_62, %c0_63, %c0_64] : memref<1x32x1xf32, #tpu.memory_space<vmem>>, vector<1x32x1xf32>
    %68 = vector.shape_cast %67 : vector<1x32x1xf32> to vector<32x1xf32>
    %69 = vector.shape_cast %66 : vector<32x1xf32> to vector<1x32x1xf32>
    tpu.vector_store %arg8[%c0_62, %c0_63, %c0_64], %69 {strides = array<i32>} : memref<1x32x1xf32, #tpu.memory_space<vmem>>, vector<1x32x1xf32>,
    return
  }
  func.func @transform_0(%arg0: i32) -> (i32, i32, i32) {
    %c0_i32 = arith.constant 0 : i32
    %c0_i32_0 = arith.constant 0 : i32
    %c0_i32_1 = arith.constant 0 : i32
    return %arg0, %c0_i32, %c0_i32_0 : i32, i32, i32
  }
  func.func @transform_1(%arg0: i32) -> (i32, i32, i32) {
    %c0_i32 = arith.constant 0 : i32
    %c0_i32_0 = arith.constant 0 : i32
    %c0_i32_1 = arith.constant 0 : i32
    %c0_i32_2 = arith.constant 0 : i32
    return %c0_i32, %c0_i32_0, %c0_i32_1 : i32, i32, i32
  }
  func.func @transform_2(%arg0: i32) -> (i32, i32) {
    %c0_i32 = arith.constant 0 : i32
    %c0_i32_0 = arith.constant 0 : i32
    %c0_i32_1 = arith.constant 0 : i32
    return %c0_i32, %c0_i32_0 : i32, i32
  }
  func.func @transform_3(%arg0: i32) -> (i32, i32, i32) {
    %c0_i32 = arith.constant 0 : i32
    %c0_i32_0 = arith.constant 0 : i32
    %c0_i32_1 = arith.constant 0 : i32
    %c0_i32_2 = arith.constant 0 : i32
    return %c0_i32, %c0_i32_0, %c0_i32_1 : i32, i32, i32
  }
  func.func @transform_4(%arg0: i32) -> (i32, i32) {
    %c0_i32 = arith.constant 0 : i32
    %c0_i32_0 = arith.constant 0 : i32
    %c0_i32_1 = arith.constant 0 : i32
    return %c0_i32, %c0_i32_0 : i32, i32
  }
  func.func @transform_5(%arg0: i32) -> (i32, i32) {
    %c0_i32 = arith.constant 0 : i32
    %c0_i32_0 = arith.constant 0 : i32
    %c0_i32_1 = arith.constant 0 : i32
    return %c0_i32, %c0_i32_0 : i32, i32
  }
  func.func @transform_6(%arg0: i32) -> (i32, i32) {
    %c0_i32 = arith.constant 0 : i32
    %c0_i32_0 = arith.constant 0 : i32
    %c0_i32_1 = arith.constant 0 : i32
    return %c0_i32, %c0_i32_0 : i32, i32
  }
  func.func @transform_7(%arg0: i32) -> (i32, i32, i32) {
    %c0_i32 = arith.constant 0 : i32
    %c0_i32_0 = arith.constant 0 : i32
    %c0_i32_1 = arith.constant 0 : i32
    return %arg0, %c0_i32, %c0_i32_0 : i32, i32, i32
  }
}

module attributes {stable_mosaic.version = 11 : i64} {
  func.func @_conv_block_kernel(%arg0: i32, %arg1: memref<1x32x16xf32, #tpu.memory_space<vmem>>, %arg2: memref<3x32x32xf32, #tpu.memory_space<vmem>>, %arg3: memref<32x1xf32, #tpu.memory_space<vmem>>, %arg4: memref<3x32x32xf32, #tpu.memory_space<vmem>>, %arg5: memref<32x1xf32, #tpu.memory_space<vmem>>, %arg6: memref<1x32x16xf32, #tpu.memory_space<vmem>>, %arg7: memref<32x18xf32, #tpu.memory_space<vmem>>) attributes {dimension_semantics = [#tpu.dimension_semantics<parallel>], iteration_bounds = array<i64: 2>, scalar_prefetch = 0 : i64, scratch_operands = 1 : i64, tpu.core_type = #tpu.core_type<tc>, window_params = [{transform_indices = @transform_0, window_bounds = array<i64: 1, 32, 16>}, {pipeline_mode = #tpu.pipeline_mode<synchronous>, transform_indices = @transform_1, window_bounds = array<i64: 3, 32, 32>}, {pipeline_mode = #tpu.pipeline_mode<synchronous>, transform_indices = @transform_2, window_bounds = array<i64: 32, 1>}, {pipeline_mode = #tpu.pipeline_mode<synchronous>, transform_indices = @transform_3, window_bounds = array<i64: 3, 32, 32>}, {pipeline_mode = #tpu.pipeline_mode<synchronous>, transform_indices = @transform_4, window_bounds = array<i64: 32, 1>}, {transform_indices = @transform_5, window_bounds = array<i64: 1, 32, 16>}]} {
    %c0 = arith.constant 0 : index
    %c0_0 = arith.constant 0 : index
    %c0_1 = arith.constant 0 : index
    %0 = vector.load %arg1[%c0, %c0_0, %c0_1] : memref<1x32x16xf32, #tpu.memory_space<vmem>>, vector<1x32x16xf32>
    %1 = vector.shape_cast %0 : vector<1x32x16xf32> to vector<32x16xf32>
    %c0_2 = arith.constant 0 : index
    %c1 = arith.constant 1 : index
    %2 = vector.load %arg7[%c0_2, %c1] : memref<32x18xf32, #tpu.memory_space<vmem>>, vector<32x16xf32>
    tpu.vector_store %arg7[%c0_2, %c1], %1 {strides = array<i32>} : memref<32x18xf32, #tpu.memory_space<vmem>>, vector<32x16xf32>,
    %3 = vector.extract_strided_slice %1 {offsets = [0, 1], sizes = [32, 1], strides = [1, 1]} : vector<32x16xf32> to vector<32x1xf32>
    %c0_3 = arith.constant 0 : index
    %c0_4 = arith.constant 0 : index
    %4 = vector.load %arg7[%c0_3, %c0_4] : memref<32x18xf32, #tpu.memory_space<vmem>>, vector<32x1xf32>
    tpu.vector_store %arg7[%c0_3, %c0_4], %3 {strides = array<i32>} : memref<32x18xf32, #tpu.memory_space<vmem>>, vector<32x1xf32>,
    %5 = vector.extract_strided_slice %1 {offsets = [0, 14], sizes = [32, 1], strides = [1, 1]} : vector<32x16xf32> to vector<32x1xf32>
    %c0_5 = arith.constant 0 : index
    %c17 = arith.constant 17 : index
    %6 = vector.load %arg7[%c0_5, %c17] : memref<32x18xf32, #tpu.memory_space<vmem>>, vector<32x1xf32>
    tpu.vector_store %arg7[%c0_5, %c17], %5 {strides = array<i32>} : memref<32x18xf32, #tpu.memory_space<vmem>>, vector<32x1xf32>,
    %c0_6 = arith.constant 0 : index
    %c0_7 = arith.constant 0 : index
    %7 = vector.load %arg3[%c0_6, %c0_7] : memref<32x1xf32, #tpu.memory_space<vmem>>, vector<32x1xf32>
    %8 = vector.shape_cast %7 : vector<32x1xf32> to vector<32x1xf32>
    %9 = vector.broadcast %8 : vector<32x1xf32> to vector<32x16xf32>
    %c0_8 = arith.constant 0 : index
    %c0_9 = arith.constant 0 : index
    %c0_10 = arith.constant 0 : index
    %10 = vector.load %arg2[%c0_8, %c0_9, %c0_10] : memref<3x32x32xf32, #tpu.memory_space<vmem>>, vector<1x32x32xf32>
    %11 = vector.shape_cast %10 : vector<1x32x32xf32> to vector<32x32xf32>
    %c0_11 = arith.constant 0 : index
    %c0_12 = arith.constant 0 : index
    %12 = vector.load %arg7[%c0_11, %c0_12] : memref<32x18xf32, #tpu.memory_space<vmem>>, vector<32x16xf32>
    %cst = arith.constant dense<0.000000e+00> : vector<32x16xf32>
    %13 = tpu.matmul %11, %12, %cst {dimension_numbers = #tpu.dot_dimension_numbers<[1], [0], [0], [1], [0, 0, 1, 1], [], []>} : vector<32x32xf32>, vector<32x16xf32>, vector<32x16xf32> -> vector<32x16xf32>
    %14 = arith.addf %9, %13 : vector<32x16xf32>
    %c1_13 = arith.constant 1 : index
    %c0_14 = arith.constant 0 : index
    %c0_15 = arith.constant 0 : index
    %15 = vector.load %arg2[%c1_13, %c0_14, %c0_15] : memref<3x32x32xf32, #tpu.memory_space<vmem>>, vector<1x32x32xf32>
    %16 = vector.shape_cast %15 : vector<1x32x32xf32> to vector<32x32xf32>
    %c0_16 = arith.constant 0 : index
    %c1_17 = arith.constant 1 : index
    %17 = vector.load %arg7[%c0_16, %c1_17] : memref<32x18xf32, #tpu.memory_space<vmem>>, vector<32x16xf32>
    %cst_18 = arith.constant dense<0.000000e+00> : vector<32x16xf32>
    %18 = tpu.matmul %16, %17, %cst_18 {dimension_numbers = #tpu.dot_dimension_numbers<[1], [0], [0], [1], [0, 0, 1, 1], [], []>} : vector<32x32xf32>, vector<32x16xf32>, vector<32x16xf32> -> vector<32x16xf32>
    %19 = arith.addf %14, %18 : vector<32x16xf32>
    %c2 = arith.constant 2 : index
    %c0_19 = arith.constant 0 : index
    %c0_20 = arith.constant 0 : index
    %20 = vector.load %arg2[%c2, %c0_19, %c0_20] : memref<3x32x32xf32, #tpu.memory_space<vmem>>, vector<1x32x32xf32>
    %21 = vector.shape_cast %20 : vector<1x32x32xf32> to vector<32x32xf32>
    %c0_21 = arith.constant 0 : index
    %c2_22 = arith.constant 2 : index
    %22 = vector.load %arg7[%c0_21, %c2_22] : memref<32x18xf32, #tpu.memory_space<vmem>>, vector<32x16xf32>
    %cst_23 = arith.constant dense<0.000000e+00> : vector<32x16xf32>
    %23 = tpu.matmul %21, %22, %cst_23 {dimension_numbers = #tpu.dot_dimension_numbers<[1], [0], [0], [1], [0, 0, 1, 1], [], []>} : vector<32x32xf32>, vector<32x16xf32>, vector<32x16xf32> -> vector<32x16xf32>
    %24 = arith.addf %19, %23 : vector<32x16xf32>
    %cst_24 = arith.constant 0.000000e+00 : f32
    %25 = vector.broadcast %cst_24 : f32 to vector<32x16xf32>
    %26 = arith.cmpf oge, %24, %25 : vector<32x16xf32>
    %cst_25 = arith.constant 0.00999999977 : f32
    %27 = vector.broadcast %cst_25 : f32 to vector<32x16xf32>
    %28 = arith.mulf %27, %24 : vector<32x16xf32>
    %29 = arith.select %26, %24, %28 : vector<32x16xi1>, vector<32x16xf32>
    %c0_26 = arith.constant 0 : index
    %c1_27 = arith.constant 1 : index
    %30 = vector.load %arg7[%c0_26, %c1_27] : memref<32x18xf32, #tpu.memory_space<vmem>>, vector<32x16xf32>
    tpu.vector_store %arg7[%c0_26, %c1_27], %29 {strides = array<i32>} : memref<32x18xf32, #tpu.memory_space<vmem>>, vector<32x16xf32>,
    %31 = vector.extract_strided_slice %29 {offsets = [0, 1], sizes = [32, 1], strides = [1, 1]} : vector<32x16xf32> to vector<32x1xf32>
    %c0_28 = arith.constant 0 : index
    %c0_29 = arith.constant 0 : index
    %32 = vector.load %arg7[%c0_28, %c0_29] : memref<32x18xf32, #tpu.memory_space<vmem>>, vector<32x1xf32>
    tpu.vector_store %arg7[%c0_28, %c0_29], %31 {strides = array<i32>} : memref<32x18xf32, #tpu.memory_space<vmem>>, vector<32x1xf32>,
    %33 = vector.extract_strided_slice %29 {offsets = [0, 14], sizes = [32, 1], strides = [1, 1]} : vector<32x16xf32> to vector<32x1xf32>
    %c0_30 = arith.constant 0 : index
    %c17_31 = arith.constant 17 : index
    %34 = vector.load %arg7[%c0_30, %c17_31] : memref<32x18xf32, #tpu.memory_space<vmem>>, vector<32x1xf32>
    tpu.vector_store %arg7[%c0_30, %c17_31], %33 {strides = array<i32>} : memref<32x18xf32, #tpu.memory_space<vmem>>, vector<32x1xf32>,
    %c0_32 = arith.constant 0 : index
    %c0_33 = arith.constant 0 : index
    %35 = vector.load %arg5[%c0_32, %c0_33] : memref<32x1xf32, #tpu.memory_space<vmem>>, vector<32x1xf32>
    %36 = vector.shape_cast %35 : vector<32x1xf32> to vector<32x1xf32>
    %37 = vector.broadcast %36 : vector<32x1xf32> to vector<32x16xf32>
    %c0_34 = arith.constant 0 : index
    %c0_35 = arith.constant 0 : index
    %c0_36 = arith.constant 0 : index
    %38 = vector.load %arg4[%c0_34, %c0_35, %c0_36] : memref<3x32x32xf32, #tpu.memory_space<vmem>>, vector<1x32x32xf32>
    %39 = vector.shape_cast %38 : vector<1x32x32xf32> to vector<32x32xf32>
    %c0_37 = arith.constant 0 : index
    %c0_38 = arith.constant 0 : index
    %40 = vector.load %arg7[%c0_37, %c0_38] : memref<32x18xf32, #tpu.memory_space<vmem>>, vector<32x16xf32>
    %cst_39 = arith.constant dense<0.000000e+00> : vector<32x16xf32>
    %41 = tpu.matmul %39, %40, %cst_39 {dimension_numbers = #tpu.dot_dimension_numbers<[1], [0], [0], [1], [0, 0, 1, 1], [], []>} : vector<32x32xf32>, vector<32x16xf32>, vector<32x16xf32> -> vector<32x16xf32>
    %42 = arith.addf %37, %41 : vector<32x16xf32>
    %c1_40 = arith.constant 1 : index
    %c0_41 = arith.constant 0 : index
    %c0_42 = arith.constant 0 : index
    %43 = vector.load %arg4[%c1_40, %c0_41, %c0_42] : memref<3x32x32xf32, #tpu.memory_space<vmem>>, vector<1x32x32xf32>
    %44 = vector.shape_cast %43 : vector<1x32x32xf32> to vector<32x32xf32>
    %c0_43 = arith.constant 0 : index
    %c1_44 = arith.constant 1 : index
    %45 = vector.load %arg7[%c0_43, %c1_44] : memref<32x18xf32, #tpu.memory_space<vmem>>, vector<32x16xf32>
    %cst_45 = arith.constant dense<0.000000e+00> : vector<32x16xf32>
    %46 = tpu.matmul %44, %45, %cst_45 {dimension_numbers = #tpu.dot_dimension_numbers<[1], [0], [0], [1], [0, 0, 1, 1], [], []>} : vector<32x32xf32>, vector<32x16xf32>, vector<32x16xf32> -> vector<32x16xf32>
    %47 = arith.addf %42, %46 : vector<32x16xf32>
    %c2_46 = arith.constant 2 : index
    %c0_47 = arith.constant 0 : index
    %c0_48 = arith.constant 0 : index
    %48 = vector.load %arg4[%c2_46, %c0_47, %c0_48] : memref<3x32x32xf32, #tpu.memory_space<vmem>>, vector<1x32x32xf32>
    %49 = vector.shape_cast %48 : vector<1x32x32xf32> to vector<32x32xf32>
    %c0_49 = arith.constant 0 : index
    %c2_50 = arith.constant 2 : index
    %50 = vector.load %arg7[%c0_49, %c2_50] : memref<32x18xf32, #tpu.memory_space<vmem>>, vector<32x16xf32>
    %cst_51 = arith.constant dense<0.000000e+00> : vector<32x16xf32>
    %51 = tpu.matmul %49, %50, %cst_51 {dimension_numbers = #tpu.dot_dimension_numbers<[1], [0], [0], [1], [0, 0, 1, 1], [], []>} : vector<32x32xf32>, vector<32x16xf32>, vector<32x16xf32> -> vector<32x16xf32>
    %52 = arith.addf %47, %51 : vector<32x16xf32>
    %cst_52 = arith.constant 0.000000e+00 : f32
    %53 = vector.broadcast %cst_52 : f32 to vector<32x16xf32>
    %54 = arith.cmpf oge, %52, %53 : vector<32x16xf32>
    %cst_53 = arith.constant 0.00999999977 : f32
    %55 = vector.broadcast %cst_53 : f32 to vector<32x16xf32>
    %56 = arith.mulf %55, %52 : vector<32x16xf32>
    %57 = arith.select %54, %52, %56 : vector<32x16xi1>, vector<32x16xf32>
    %58 = arith.addf %57, %1 : vector<32x16xf32>
    %c0_54 = arith.constant 0 : index
    %c0_55 = arith.constant 0 : index
    %c0_56 = arith.constant 0 : index
    %59 = vector.load %arg6[%c0_54, %c0_55, %c0_56] : memref<1x32x16xf32, #tpu.memory_space<vmem>>, vector<1x32x16xf32>
    %60 = vector.shape_cast %59 : vector<1x32x16xf32> to vector<32x16xf32>
    %61 = vector.shape_cast %58 : vector<32x16xf32> to vector<1x32x16xf32>
    tpu.vector_store %arg6[%c0_54, %c0_55, %c0_56], %61 {strides = array<i32>} : memref<1x32x16xf32, #tpu.memory_space<vmem>>, vector<1x32x16xf32>,
    return
  }
  func.func @transform_0(%arg0: i32) -> (i32, i32, i32) {
    %c0_i32 = arith.constant 0 : i32
    %c0_i32_0 = arith.constant 0 : i32
    %c0_i32_1 = arith.constant 0 : i32
    return %arg0, %c0_i32, %c0_i32_0 : i32, i32, i32
  }
  func.func @transform_1(%arg0: i32) -> (i32, i32, i32) {
    %c0_i32 = arith.constant 0 : i32
    %c0_i32_0 = arith.constant 0 : i32
    %c0_i32_1 = arith.constant 0 : i32
    %c0_i32_2 = arith.constant 0 : i32
    return %c0_i32, %c0_i32_0, %c0_i32_1 : i32, i32, i32
  }
  func.func @transform_2(%arg0: i32) -> (i32, i32) {
    %c0_i32 = arith.constant 0 : i32
    %c0_i32_0 = arith.constant 0 : i32
    %c0_i32_1 = arith.constant 0 : i32
    return %c0_i32, %c0_i32_0 : i32, i32
  }
  func.func @transform_3(%arg0: i32) -> (i32, i32, i32) {
    %c0_i32 = arith.constant 0 : i32
    %c0_i32_0 = arith.constant 0 : i32
    %c0_i32_1 = arith.constant 0 : i32
    %c0_i32_2 = arith.constant 0 : i32
    return %c0_i32, %c0_i32_0, %c0_i32_1 : i32, i32, i32
  }
  func.func @transform_4(%arg0: i32) -> (i32, i32) {
    %c0_i32 = arith.constant 0 : i32
    %c0_i32_0 = arith.constant 0 : i32
    %c0_i32_1 = arith.constant 0 : i32
    return %c0_i32, %c0_i32_0 : i32, i32
  }
  func.func @transform_5(%arg0: i32) -> (i32, i32, i32) {
    %c0_i32 = arith.constant 0 : i32
    %c0_i32_0 = arith.constant 0 : i32
    %c0_i32_1 = arith.constant 0 : i32
    return %arg0, %c0_i32, %c0_i32_0 : i32, i32, i32
  }
}

module attributes {stable_mosaic.version = 11 : i64} {
  func.func @_dense_tail_kernel(%arg0: i32, %arg1: memref<2x32xf32, #tpu.memory_space<vmem>>, %arg2: memref<32x32xf32, #tpu.memory_space<vmem>>, %arg3: memref<1x32xf32, #tpu.memory_space<vmem>>, %arg4: memref<32x32xf32, #tpu.memory_space<vmem>>, %arg5: memref<1x32xf32, #tpu.memory_space<vmem>>, %arg6: memref<32x32xf32, #tpu.memory_space<vmem>>, %arg7: memref<1x32xf32, #tpu.memory_space<vmem>>, %arg8: memref<32x32xf32, #tpu.memory_space<vmem>>, %arg9: memref<1x32xf32, #tpu.memory_space<vmem>>, %arg10: memref<32x8xf32, #tpu.memory_space<vmem>>, %arg11: memref<1x8xf32, #tpu.memory_space<vmem>>, %arg12: memref<2x8xf32, #tpu.memory_space<vmem>>) attributes {dimension_semantics = [#tpu.dimension_semantics<arbitrary>], iteration_bounds = array<i64: 1>, scalar_prefetch = 0 : i64, scratch_operands = 0 : i64, tpu.core_type = #tpu.core_type<tc>, window_params = [{pipeline_mode = #tpu.pipeline_mode<synchronous>, transform_indices = @transform_0, window_bounds = array<i64: 2, 32>}, {pipeline_mode = #tpu.pipeline_mode<synchronous>, transform_indices = @transform_1, window_bounds = array<i64: 32, 32>}, {pipeline_mode = #tpu.pipeline_mode<synchronous>, transform_indices = @transform_2, window_bounds = array<i64: 1, 32>}, {pipeline_mode = #tpu.pipeline_mode<synchronous>, transform_indices = @transform_3, window_bounds = array<i64: 32, 32>}, {pipeline_mode = #tpu.pipeline_mode<synchronous>, transform_indices = @transform_4, window_bounds = array<i64: 1, 32>}, {pipeline_mode = #tpu.pipeline_mode<synchronous>, transform_indices = @transform_5, window_bounds = array<i64: 32, 32>}, {pipeline_mode = #tpu.pipeline_mode<synchronous>, transform_indices = @transform_6, window_bounds = array<i64: 1, 32>}, {pipeline_mode = #tpu.pipeline_mode<synchronous>, transform_indices = @transform_7, window_bounds = array<i64: 32, 32>}, {pipeline_mode = #tpu.pipeline_mode<synchronous>, transform_indices = @transform_8, window_bounds = array<i64: 1, 32>}, {pipeline_mode = #tpu.pipeline_mode<synchronous>, transform_indices = @transform_9, window_bounds = array<i64: 32, 8>}, {pipeline_mode = #tpu.pipeline_mode<synchronous>, transform_indices = @transform_10, window_bounds = array<i64: 1, 8>}, {pipeline_mode = #tpu.pipeline_mode<synchronous>, transform_indices = @transform_11, window_bounds = array<i64: 2, 8>}]} {
    %c0 = arith.constant 0 : index
    %c0_0 = arith.constant 0 : index
    %0 = vector.load %arg1[%c0, %c0_0] : memref<2x32xf32, #tpu.memory_space<vmem>>, vector<2x32xf32>
    %c0_1 = arith.constant 0 : index
    %c0_2 = arith.constant 0 : index
    %1 = vector.load %arg2[%c0_1, %c0_2] : memref<32x32xf32, #tpu.memory_space<vmem>>, vector<32x32xf32>
    %cst = arith.constant dense<0.000000e+00> : vector<2x32xf32>
    %2 = tpu.matmul %0, %1, %cst {dimension_numbers = #tpu.dot_dimension_numbers<[1], [0], [0], [1], [0, 0, 1, 1], [], []>} : vector<2x32xf32>, vector<32x32xf32>, vector<2x32xf32> -> vector<2x32xf32>
    %c0_3 = arith.constant 0 : index
    %c0_4 = arith.constant 0 : index
    %3 = vector.load %arg3[%c0_3, %c0_4] : memref<1x32xf32, #tpu.memory_space<vmem>>, vector<1x32xf32>
    %4 = vector.broadcast %3 : vector<1x32xf32> to vector<2x32xf32>
    %5 = arith.addf %2, %4 : vector<2x32xf32>
    %cst_5 = arith.constant 0.000000e+00 : f32
    %6 = vector.broadcast %cst_5 : f32 to vector<2x32xf32>
    %7 = arith.cmpf oge, %5, %6 : vector<2x32xf32>
    %cst_6 = arith.constant 0.00999999977 : f32
    %8 = vector.broadcast %cst_6 : f32 to vector<2x32xf32>
    %9 = arith.mulf %8, %5 : vector<2x32xf32>
    %10 = arith.select %7, %5, %9 : vector<2x32xi1>, vector<2x32xf32>
    %c0_7 = arith.constant 0 : index
    %c0_8 = arith.constant 0 : index
    %11 = vector.load %arg4[%c0_7, %c0_8] : memref<32x32xf32, #tpu.memory_space<vmem>>, vector<32x32xf32>
    %cst_9 = arith.constant dense<0.000000e+00> : vector<2x32xf32>
    %12 = tpu.matmul %10, %11, %cst_9 {dimension_numbers = #tpu.dot_dimension_numbers<[1], [0], [0], [1], [0, 0, 1, 1], [], []>} : vector<2x32xf32>, vector<32x32xf32>, vector<2x32xf32> -> vector<2x32xf32>
    %c0_10 = arith.constant 0 : index
    %c0_11 = arith.constant 0 : index
    %13 = vector.load %arg5[%c0_10, %c0_11] : memref<1x32xf32, #tpu.memory_space<vmem>>, vector<1x32xf32>
    %14 = vector.broadcast %13 : vector<1x32xf32> to vector<2x32xf32>
    %15 = arith.addf %12, %14 : vector<2x32xf32>
    %cst_12 = arith.constant 0.000000e+00 : f32
    %16 = vector.broadcast %cst_12 : f32 to vector<2x32xf32>
    %17 = arith.cmpf oge, %15, %16 : vector<2x32xf32>
    %cst_13 = arith.constant 0.00999999977 : f32
    %18 = vector.broadcast %cst_13 : f32 to vector<2x32xf32>
    %19 = arith.mulf %18, %15 : vector<2x32xf32>
    %20 = arith.select %17, %15, %19 : vector<2x32xi1>, vector<2x32xf32>
    %21 = arith.addf %20, %0 : vector<2x32xf32>
    %c0_14 = arith.constant 0 : index
    %c0_15 = arith.constant 0 : index
    %22 = vector.load %arg6[%c0_14, %c0_15] : memref<32x32xf32, #tpu.memory_space<vmem>>, vector<32x32xf32>
    %cst_16 = arith.constant dense<0.000000e+00> : vector<2x32xf32>
    %23 = tpu.matmul %21, %22, %cst_16 {dimension_numbers = #tpu.dot_dimension_numbers<[1], [0], [0], [1], [0, 0, 1, 1], [], []>} : vector<2x32xf32>, vector<32x32xf32>, vector<2x32xf32> -> vector<2x32xf32>
    %c0_17 = arith.constant 0 : index
    %c0_18 = arith.constant 0 : index
    %24 = vector.load %arg7[%c0_17, %c0_18] : memref<1x32xf32, #tpu.memory_space<vmem>>, vector<1x32xf32>
    %25 = vector.broadcast %24 : vector<1x32xf32> to vector<2x32xf32>
    %26 = arith.addf %23, %25 : vector<2x32xf32>
    %cst_19 = arith.constant 0.000000e+00 : f32
    %27 = vector.broadcast %cst_19 : f32 to vector<2x32xf32>
    %28 = arith.cmpf oge, %26, %27 : vector<2x32xf32>
    %cst_20 = arith.constant 0.00999999977 : f32
    %29 = vector.broadcast %cst_20 : f32 to vector<2x32xf32>
    %30 = arith.mulf %29, %26 : vector<2x32xf32>
    %31 = arith.select %28, %26, %30 : vector<2x32xi1>, vector<2x32xf32>
    %c0_21 = arith.constant 0 : index
    %c0_22 = arith.constant 0 : index
    %32 = vector.load %arg8[%c0_21, %c0_22] : memref<32x32xf32, #tpu.memory_space<vmem>>, vector<32x32xf32>
    %cst_23 = arith.constant dense<0.000000e+00> : vector<2x32xf32>
    %33 = tpu.matmul %31, %32, %cst_23 {dimension_numbers = #tpu.dot_dimension_numbers<[1], [0], [0], [1], [0, 0, 1, 1], [], []>} : vector<2x32xf32>, vector<32x32xf32>, vector<2x32xf32> -> vector<2x32xf32>
    %c0_24 = arith.constant 0 : index
    %c0_25 = arith.constant 0 : index
    %34 = vector.load %arg9[%c0_24, %c0_25] : memref<1x32xf32, #tpu.memory_space<vmem>>, vector<1x32xf32>
    %35 = vector.broadcast %34 : vector<1x32xf32> to vector<2x32xf32>
    %36 = arith.addf %33, %35 : vector<2x32xf32>
    %cst_26 = arith.constant 0.000000e+00 : f32
    %37 = vector.broadcast %cst_26 : f32 to vector<2x32xf32>
    %38 = arith.cmpf oge, %36, %37 : vector<2x32xf32>
    %cst_27 = arith.constant 0.00999999977 : f32
    %39 = vector.broadcast %cst_27 : f32 to vector<2x32xf32>
    %40 = arith.mulf %39, %36 : vector<2x32xf32>
    %41 = arith.select %38, %36, %40 : vector<2x32xi1>, vector<2x32xf32>
    %42 = arith.addf %41, %21 : vector<2x32xf32>
    %c0_28 = arith.constant 0 : index
    %c0_29 = arith.constant 0 : index
    %43 = vector.load %arg10[%c0_28, %c0_29] : memref<32x8xf32, #tpu.memory_space<vmem>>, vector<32x8xf32>
    %cst_30 = arith.constant dense<0.000000e+00> : vector<2x8xf32>
    %44 = tpu.matmul %42, %43, %cst_30 {dimension_numbers = #tpu.dot_dimension_numbers<[1], [0], [0], [1], [0, 0, 1, 1], [], []>} : vector<2x32xf32>, vector<32x8xf32>, vector<2x8xf32> -> vector<2x8xf32>
    %c0_31 = arith.constant 0 : index
    %c0_32 = arith.constant 0 : index
    %45 = vector.load %arg11[%c0_31, %c0_32] : memref<1x8xf32, #tpu.memory_space<vmem>>, vector<1x8xf32>
    %46 = vector.broadcast %45 : vector<1x8xf32> to vector<2x8xf32>
    %47 = arith.addf %44, %46 : vector<2x8xf32>
    %c0_33 = arith.constant 0 : index
    %c0_34 = arith.constant 0 : index
    %48 = vector.load %arg12[%c0_33, %c0_34] : memref<2x8xf32, #tpu.memory_space<vmem>>, vector<2x8xf32>
    tpu.vector_store %arg12[%c0_33, %c0_34], %47 {strides = array<i32>} : memref<2x8xf32, #tpu.memory_space<vmem>>, vector<2x8xf32>,
    return
  }
  func.func @transform_0(%arg0: i32) -> (i32, i32) {
    %c0_i32 = arith.constant 0 : i32
    %c0_i32_0 = arith.constant 0 : i32
    %c0_i32_1 = arith.constant 0 : i32
    return %c0_i32, %c0_i32_0 : i32, i32
  }
  func.func @transform_1(%arg0: i32) -> (i32, i32) {
    %c0_i32 = arith.constant 0 : i32
    %c0_i32_0 = arith.constant 0 : i32
    %c0_i32_1 = arith.constant 0 : i32
    return %c0_i32, %c0_i32_0 : i32, i32
  }
  func.func @transform_2(%arg0: i32) -> (i32, i32) {
    %c0_i32 = arith.constant 0 : i32
    %c0_i32_0 = arith.constant 0 : i32
    %c0_i32_1 = arith.constant 0 : i32
    return %c0_i32, %c0_i32_0 : i32, i32
  }
  func.func @transform_3(%arg0: i32) -> (i32, i32) {
    %c0_i32 = arith.constant 0 : i32
    %c0_i32_0 = arith.constant 0 : i32
    %c0_i32_1 = arith.constant 0 : i32
    return %c0_i32, %c0_i32_0 : i32, i32
  }
  func.func @transform_4(%arg0: i32) -> (i32, i32) {
    %c0_i32 = arith.constant 0 : i32
    %c0_i32_0 = arith.constant 0 : i32
    %c0_i32_1 = arith.constant 0 : i32
    return %c0_i32, %c0_i32_0 : i32, i32
  }
  func.func @transform_5(%arg0: i32) -> (i32, i32) {
    %c0_i32 = arith.constant 0 : i32
    %c0_i32_0 = arith.constant 0 : i32
    %c0_i32_1 = arith.constant 0 : i32
    return %c0_i32, %c0_i32_0 : i32, i32
  }
  func.func @transform_6(%arg0: i32) -> (i32, i32) {
    %c0_i32 = arith.constant 0 : i32
    %c0_i32_0 = arith.constant 0 : i32
    %c0_i32_1 = arith.constant 0 : i32
    return %c0_i32, %c0_i32_0 : i32, i32
  }
  func.func @transform_7(%arg0: i32) -> (i32, i32) {
    %c0_i32 = arith.constant 0 : i32
    %c0_i32_0 = arith.constant 0 : i32
    %c0_i32_1 = arith.constant 0 : i32
    return %c0_i32, %c0_i32_0 : i32, i32
  }
  func.func @transform_8(%arg0: i32) -> (i32, i32) {
    %c0_i32 = arith.constant 0 : i32
    %c0_i32_0 = arith.constant 0 : i32
    %c0_i32_1 = arith.constant 0 : i32
    return %c0_i32, %c0_i32_0 : i32, i32
  }
  func.func @transform_9(%arg0: i32) -> (i32, i32) {
    %c0_i32 = arith.constant 0 : i32
    %c0_i32_0 = arith.constant 0 : i32
    %c0_i32_1 = arith.constant 0 : i32
    return %c0_i32, %c0_i32_0 : i32, i32
  }
  func.func @transform_10(%arg0: i32) -> (i32, i32) {
    %c0_i32 = arith.constant 0 : i32
    %c0_i32_0 = arith.constant 0 : i32
    %c0_i32_1 = arith.constant 0 : i32
    return %c0_i32, %c0_i32_0 : i32, i32
  }
  func.func @transform_11(%arg0: i32) -> (i32, i32) {
    %c0_i32 = arith.constant 0 : i32
    %c0_i32_0 = arith.constant 0 : i32
    %c0_i32_1 = arith.constant 0 : i32
    return %c0_i32, %c0_i32_0 : i32, i32
  }
}

</mosaic_0001>

<llo_original>
// kernel: _lambda_.7
$region0: #{_lambda_.7}
  #allocation0 [shape = 'u32[]', space=smem, size = 0x4, offset = 0x4, fixed_abs, tag = 'smem constant byte address 0x4 - core index']
  #allocation1 [shape = 'u32[72,128]{1,0:T(1,128)}', space=vmem, size = 0x9000, scoped, tag = 'internal scratch']
  %s0 = inlined_call_operand.vmem [shape: f32[2,32], index: 0, kind: input, shape index: {}]
  %s1 = inlined_call_operand.vmem [shape: f32[32,32], index: 1, kind: input, shape index: {}]
  %s2 = inlined_call_operand.vmem [shape: f32[1,32], index: 2, kind: input, shape index: {}]
  %s3 = inlined_call_operand.vmem [shape: f32[32,32], index: 3, kind: input, shape index: {}]
  %s4 = inlined_call_operand.vmem [shape: f32[1,32], index: 4, kind: input, shape index: {}]
  %s5 = inlined_call_operand.vmem [shape: f32[32,32], index: 5, kind: input, shape index: {}]
  %s6 = inlined_call_operand.vmem [shape: f32[1,32], index: 6, kind: input, shape index: {}]
  %s7 = inlined_call_operand.vmem [shape: f32[32,32], index: 7, kind: input, shape index: {}]
  %s8 = inlined_call_operand.vmem [shape: f32[1,32], index: 8, kind: input, shape index: {}]
  %s9 = inlined_call_operand.vmem [shape: f32[32,8], index: 9, kind: input, shape index: {}]
  %s10 = inlined_call_operand.vmem [shape: f32[1,8], index: 10, kind: input, shape index: {}]
  %s11 = inlined_call_operand.hbm [shape: f32[2,8], index: 11, kind: output, shape index: {}]
  %s12 = sld [smem:[#allocation0]]
  $region54: #{_lambda_.7} parent=0
    _
  %s14 = ssub.s32 1, %s12
  %s15 = scalar_select 0, %s14, %s12
  $region1: #{_lambda_.7} parent=0
    #allocation2 [shape = 'u8[1024]{0}', space=vmem, size = 0x400, scoped, tag = 'output window, operand 0, single buffered']
    #allocation3 [shape = 's32[1]{0}', space=sflag, size = 0x4, scoped, tag = 'scoped memory for _lambda_.7']
    %16 = vsyncpa [#allocation3], 0
    // Predicated region
    $region2: #{_lambda_.7} parent=1 // pred_check
      _
    $region3: #{_lambda_.7} parent=1 // pred_check_branch
      %18 = sbr.rel (0) target = $region5
    $region4: #{_lambda_.7} parent=1 // pred_region
      _
    $region5: #{_lambda_.7} parent=1 // pred_fallthru
      _
    // Predicated region
    $region6: #{_lambda_.7} parent=1 // pred_check
      _
    $region7: #{_lambda_.7} parent=1 // pred_check_branch
      %20 = sbr.rel (0) target = $region9
    $region8: #{_lambda_.7} parent=1 // pred_region
      _
    $region9: #{_lambda_.7} parent=1 // pred_fallthru
      _
    // Predicated region
    $region10: #{_lambda_.7} parent=1 // pred_check
      _
    $region11: #{_lambda_.7} parent=1 // pred_check_branch
      %22 = sbr.rel (0) target = $region13
    $region12: #{_lambda_.7} parent=1 // pred_region
      _
    $region13: #{_lambda_.7} parent=1 // pred_fallthru
      _
    // Predicated region
    $region14: #{_lambda_.7} parent=1 // pred_check
      _
    $region15: #{_lambda_.7} parent=1 // pred_check_branch
      %24 = sbr.rel (0) target = $region17
    $region16: #{_lambda_.7} parent=1 // pred_region
      _
    $region17: #{_lambda_.7} parent=1 // pred_fallthru
      _
    // Predicated region
    $region18: #{_lambda_.7} parent=1 // pred_check
      _
    $region19: #{_lambda_.7} parent=1 // pred_check_branch
      %26 = sbr.rel (0) target = $region21
    $region20: #{_lambda_.7} parent=1 // pred_region
      _
    $region21: #{_lambda_.7} parent=1 // pred_fallthru
      _
    // Predicated region
    $region22: #{_lambda_.7} parent=1 // pred_check
      _
    $region23: #{_lambda_.7} parent=1 // pred_check_branch
      %28 = sbr.rel (0) target = $region25
    $region24: #{_lambda_.7} parent=1 // pred_region
      _
    $region25: #{_lambda_.7} parent=1 // pred_fallthru
      _
    // Predicated region
    $region26: #{_lambda_.7} parent=1 // pred_check
      _
    $region27: #{_lambda_.7} parent=1 // pred_check_branch
      %30 = sbr.rel (0) target = $region29
    $region28: #{_lambda_.7} parent=1 // pred_region
      _
    $region29: #{_lambda_.7} parent=1 // pred_fallthru
      _
    // Predicated region
    $region30: #{_lambda_.7} parent=1 // pred_check
      _
    $region31: #{_lambda_.7} parent=1 // pred_check_branch
      %32 = sbr.rel (0) target = $region33
    $region32: #{_lambda_.7} parent=1 // pred_region
      _
    $region33: #{_lambda_.7} parent=1 // pred_fallthru
      _
    // Predicated region
    $region34: #{_lambda_.7} parent=1 // pred_check
      _
    $region35: #{_lambda_.7} parent=1 // pred_check_branch
      %34 = sbr.rel (0) target = $region37
    $region36: #{_lambda_.7} parent=1 // pred_region
      _
    $region37: #{_lambda_.7} parent=1 // pred_fallthru
      _
    // Predicated region
    $region38: #{_lambda_.7} parent=1 // pred_check
      _
    $region39: #{_lambda_.7} parent=1 // pred_check_branch
      %36 = sbr.rel (0) target = $region41
    $region40: #{_lambda_.7} parent=1 // pred_region
      _
    $region41: #{_lambda_.7} parent=1 // pred_fallthru
      _
    // Predicated region
    $region42: #{_lambda_.7} parent=1 // pred_check
      _
    $region43: #{_lambda_.7} parent=1 // pred_check_branch
      %38 = sbr.rel (0) target = $region45
    $region44: #{_lambda_.7} parent=1 // pred_region
      _
    $region45: #{_lambda_.7} parent=1 // pred_fallthru
      _
    %v39 = vld [vmem:[%s0] sm:$0x3]
    %v40 = vld [vmem:[%s1] sm:$0xff]
    %v41 = vld [vmem:[%s1 + $0x8] sm:$0xff]
    %v42 = vld [vmem:[%s1 + $0x10] sm:$0xff]
    %v43 = vld [vmem:[%s1 + $0x18] sm:$0xff]
    %v44 = vld [vmem:[%s2] sm:$0x1]
    %v46 = vperm.slane %v44, 0
    %vm48 = vcmask 261120
    %v50 = vsel %vm48, %v39, 0
    %52 = vmatpush.msra.mxu0 0.0
    %53 = vmatpush.msra.mxu0 0.0
    %54 = vmatpush.msra.mxu0 0.0
    %55 = vmatpush.msra.mxu0 0.0
    %56 = vmatpush.msra.mxu0 0.0
    %57 = vmatpush.msra.mxu0 0.0
    %58 = vmatpush.msra.mxu0 0.0
    %59 = vmatpush.msra.mxu0 0.0
    %60 = vmatpush.msra.mxu0 0.0
    %61 = vmatpush.msra.mxu0 0.0
    %62 = vmatpush.msra.mxu0 0.0
    %63 = vmatpush.msra.mxu0 0.0
    %64 = vmatpush.msra.mxu0 %v43
    %65 = vmatpush.msra.mxu0 %v42
    %66 = vmatpush.msra.mxu0 %v41
    %67 = vmatpush.msra.mxu0 %v40
    %68 = vmatmul.f32.gmra.mxu0 %v50
    %v69 = vpop.f32.mrf.mxu0
    %v70 = vadd.f32 %v46, %v69
    %71 = vdwg.mxu0
    %vm72 = vcmp.ge.f32.partialorder %v70, 0.0
    %v73 = vmul.f32 %v70, 0.01
    %v74 = vsel %vm72, %v70, %v73
    %v75 = vld [vmem:[%s3] sm:$0xff]
    %v76 = vld [vmem:[%s3 + $0x8] sm:$0xff]
    %v77 = vld [vmem:[%s3 + $0x10] sm:$0xff]
    %v78 = vld [vmem:[%s3 + $0x18] sm:$0xff]
    %v79 = vld [vmem:[%s4] sm:$0x1]
    %v81 = vperm.slane %v79, 0
    %v84 = vsel %vm48, %v74, 0
    %86 = vmatpush.msra.mxu0 0.0
    %87 = vmatpush.msra.mxu0 0.0
    %88 = vmatpush.msra.mxu0 0.0
    %89 = vmatpush.msra.mxu0 0.0
    %90 = vmatpush.msra.mxu0 0.0
    %91 = vmatpush.msra.mxu0 0.0
    %92 = vmatpush.msra.mxu0 0.0
    %93 = vmatpush.msra.mxu0 0.0
    %94 = vmatpush.msra.mxu0 0.0
    %95 = vmatpush.msra.mxu0 0.0
    %96 = vmatpush.msra.mxu0 0.0
    %97 = vmatpush.msra.mxu0 0.0
    %98 = vmatpush.msra.mxu0 %v78
    %99 = vmatpush.msra.mxu0 %v77
    %100 = vmatpush.msra.mxu0 %v76
    %101 = vmatpush.msra.mxu0 %v75
    %102 = vmatmul.f32.gmra.mxu0 %v84
    %v103 = vpop.f32.mrf.mxu0
    %v104 = vadd.f32 %v81, %v103
    %105 = vdwg.mxu0
    %vm106 = vcmp.ge.f32.partialorder %v104, 0.0
    %v107 = vmul.f32 %v104, 0.01
    %v108 = vsel %vm106, %v104, %v107
    %v109 = vadd.f32 %v108, %v39
    %v110 = vld [vmem:[%s5] sm:$0xff]
    %v111 = vld [vmem:[%s5 + $0x8] sm:$0xff]
    %v112 = vld [vmem:[%s5 + $0x10] sm:$0xff]
    %v113 = vld [vmem:[%s5 + $0x18] sm:$0xff]
    %v114 = vld [vmem:[%s6] sm:$0x1]
    %v116 = vperm.slane %v114, 0
    %v119 = vsel %vm48, %v109, 0
    %121 = vmatpush.msra.mxu0 0.0
    %122 = vmatpush.msra.mxu0 0.0
    %123 = vmatpush.msra.mxu0 0.0
    %124 = vmatpush.msra.mxu0 0.0
    %125 = vmatpush.msra.mxu0 0.0
    %126 = vmatpush.msra.mxu0 0.0
    %127 = vmatpush.msra.mxu0 0.0
    %128 = vmatpush.msra.mxu0 0.0
    %129 = vmatpush.msra.mxu0 0.0
    %130 = vmatpush.msra.mxu0 0.0
    %131 = vmatpush.msra.mxu0 0.0
    %132 = vmatpush.msra.mxu0 0.0
    %133 = vmatpush.msra.mxu0 %v113
    %134 = vmatpush.msra.mxu0 %v112
    %135 = vmatpush.msra.mxu0 %v111
    %136 = vmatpush.msra.mxu0 %v110
    %137 = vmatmul.f32.gmra.mxu0 %v119
    %v138 = vpop.f32.mrf.mxu0
    %v139 = vadd.f32 %v116, %v138
    %140 = vdwg.mxu0
    %vm141 = vcmp.ge.f32.partialorder %v139, 0.0
    %v142 = vmul.f32 %v139, 0.01
    %v143 = vsel %vm141, %v139, %v142
    %v144 = vld [vmem:[%s7] sm:$0xff]
    %v145 = vld [vmem:[%s7 + $0x8] sm:$0xff]
    %v146 = vld [vmem:[%s7 + $0x10] sm:$0xff]
    %v147 = vld [vmem:[%s7 + $0x18] sm:$0xff]
    %v148 = vld [vmem:[%s8] sm:$0x1]
    %v150 = vperm.slane %v148, 0
    %v153 = vsel %vm48, %v143, 0
    %155 = vmatpush.msra.mxu0 0.0
    %156 = vmatpush.msra.mxu0 0.0
    %157 = vmatpush.msra.mxu0 0.0
    %158 = vmatpush.msra.mxu0 0.0
    %159 = vmatpush.msra.mxu0 0.0
    %160 = vmatpush.msra.mxu0 0.0
    %161 = vmatpush.msra.mxu0 0.0
    %162 = vmatpush.msra.mxu0 0.0
    %163 = vmatpush.msra.mxu0 0.0
    %164 = vmatpush.msra.mxu0 0.0
    %165 = vmatpush.msra.mxu0 0.0
    %166 = vmatpush.msra.mxu0 0.0
    %167 = vmatpush.msra.mxu0 %v147
    %168 = vmatpush.msra.mxu0 %v146
    %169 = vmatpush.msra.mxu0 %v145
    %170 = vmatpush.msra.mxu0 %v144
    %171 = vmatmul.f32.gmra.mxu0 %v153
    %v172 = vpop.f32.mrf.mxu0
    %v173 = vadd.f32 %v150, %v172
    %174 = vdwg.mxu0
    %vm175 = vcmp.ge.f32.partialorder %v173, 0.0
    %v176 = vmul.f32 %v173, 0.01
    %v177 = vsel %vm175, %v173, %v176
    %v178 = vadd.f32 %v177, %v109
    %v179 = vld [vmem:[%s9] sm:$0xff]
    %v180 = vld [vmem:[%s9 + $0x8] sm:$0xff]
    %v181 = vld [vmem:[%s9 + $0x10] sm:$0xff]
    %v182 = vld [vmem:[%s9 + $0x18] sm:$0xff]
    %v183 = vld [vmem:[%s10] sm:$0x1]
    %v185 = vperm.slane %v183, 0
    %v188 = vsel %vm48, %v178, 0
    %190 = vmatpush.msra.mxu0 0.0
    %191 = vmatpush.msra.mxu0 0.0
    %192 = vmatpush.msra.mxu0 0.0
    %193 = vmatpush.msra.mxu0 0.0
    %194 = vmatpush.msra.mxu0 0.0
    %195 = vmatpush.msra.mxu0 0.0
    %196 = vmatpush.msra.mxu0 0.0
    %197 = vmatpush.msra.mxu0 0.0
    %198 = vmatpush.msra.mxu0 0.0
    %199 = vmatpush.msra.mxu0 0.0
    %200 = vmatpush.msra.mxu0 0.0
    %201 = vmatpush.msra.mxu0 0.0
    %202 = vmatpush.msra.mxu0 %v182
    %203 = vmatpush.msra.mxu0 %v181
    %204 = vmatpush.msra.mxu0 %v180
    %205 = vmatpush.msra.mxu0 %v179
    %206 = vmatmul.f32.gmra.mxu0 %v188
    %v207 = vpop.f32.mrf.mxu0
    %v208 = vadd.f32 %v185, %v207
    %209 = vdwg.mxu0
    %vm210 = vcmask 58368
    %211 = vst.msk [vmem:[#allocation2] sm:$0x3] %vm210, %v208
    // Predicated region
    $region46: #{_lambda_.7} parent=1 // pred_check
      _
    $region47: #{_lambda_.7} parent=1 // pred_check_branch
      %213 = sbr.rel (0) target = $region49
    $region48: #{_lambda_.7} parent=1 // pred_region
      %215 = vsyncadd [#allocation3], 0
      %s217 = sshll.u32 [#allocation2], 4
      %s218 = int_to_ptr.vmem [resolvable:$true] %s217
      %s219 = sshll.u32 %s11, 4
      %s220 = int_to_ptr.hbm [resolvable:$true] %s219
      %222 = dma.vmem_to_hbm [thread:$0]  %s218, 32, %s220, [#allocation3]
    $region49: #{_lambda_.7} parent=1 // pred_fallthru
      _
    // Predicated region
    $region50: #{_lambda_.7} parent=1 // pred_check
      _
    $region51: #{_lambda_.7} parent=1 // pred_check_branch
      %224 = sbr.rel (0) target = $region53
    $region52: #{_lambda_.7} parent=1 // pred_region
      %226 = dma.done [#allocation3], 32
    $region53: #{_lambda_.7} parent=1 // pred_fallthru
      _
    %227 = vsyncpa [#allocation3], 1

// kernel: _lambda_.4
$region0: #{_lambda_.4}
  #allocation0 [shape = 'u32[]', space=smem, size = 0x4, offset = 0x4, fixed_abs, tag = 'smem constant byte address 0x4 - core index']
  #allocation1 [shape = 'u32[72,128]{1,0:T(1,128)}', space=vmem, size = 0x9000, scoped, tag = 'internal scratch']
  #allocation2 [shape = 'f32[4,19]{1,0:T(4,128)}', space=vmem, size = 0x800, scoped, tag = 'scratch operand']
  %s0 = inlined_call_operand.vmem [shape: f32[2,4,16], index: 0, kind: input, shape index: {}]
  %s1 = inlined_call_operand.vmem [shape: f32[2,8,4], index: 1, kind: input, shape index: {}]
  %s2 = inlined_call_operand.vmem [shape: f32[8,1], index: 2, kind: input, shape index: {}]
  %s3 = inlined_call_operand.vmem [shape: f32[4,8,4], index: 3, kind: input, shape index: {}]
  %s4 = inlined_call_operand.vmem [shape: f32[8,1], index: 4, kind: input, shape index: {}]
  %s5 = inlined_call_operand.vmem [shape: f32[32,20], index: 5, kind: input, shape index: {}]
  %s6 = inlined_call_operand.vmem [shape: f32[32,1], index: 6, kind: input, shape index: {}]
  %s7 = inlined_call_operand.vmem [shape: f32[2,32,16], index: 7, kind: output, shape index: {}]
  %s8 = sld [smem:[#allocation0]]
  $region61: #{_lambda_.4} parent=0
    _
  %s10 = ssub.s32 1, %s8
  %s11 = scalar_select 0, %s10, %s8
  loop: start=0, step=1, limit=4
  $region2: #{_lambda_.4} parent=0 // loop_pre_header
    _
  $region3: #{_lambda_.4} parent=0 // loop_header
    %s13 = sphi 0, %s17
    %p14 = scmp.ge.s32.totalorder %s13, 4
    %s23 = sphi 0, %s25
    %s26 = sphi 0, %s23
    %s27 = sphi 0, %s26
    %s43 = sphi 0, %s27
    %s47 = sphi 0, %s47
    %s49 = sphi 0, %s47
    %s50 = sphi 0, %s49
    %s64 = sphi 0, %s50
    %s68 = sphi 0, %s68
    %s70 = sphi 0, %s68
    %s71 = sphi 0, %s70
    %s85 = sphi 0, %s71
    %s89 = sphi 0, %s89
    %s91 = sphi 0, %s89
    %s92 = sphi 0, %s91
    %s106 = sphi 0, %s92
    %s110 = sphi 0, %s110
    %s112 = sphi 0, %s110
    %s113 = sphi 0, %s112
    %s127 = sphi 0, %s113
    %s131 = sphi 0, %s131
    %s133 = sphi 0, %s131
    %s134 = sphi 0, %s133
    %s148 = sphi 0, %s134
    %s152 = sphi 0, %s152
    %s154 = sphi 0, %s152
    %s155 = sphi 0, %s154
    %s169 = sphi 0, %s155
    %s175 = sphi 0, %s177
    %s178 = sphi 0, %s175
    %s179 = sphi 0, %s178
    %s195 = sphi 0, %s179
  $region4: #{_lambda_.4} parent=0 // loop_header_branch
    %16 = sbr.rel (%p14) target = $region8
  $region5: #{_lambda_.4} parent=0 // loop_body
    %s18 = ssub.s32 %s13, 1
    %s19 = ssub.s32 %s13, 2
    %s20 = sadd.s32 %s13, 1
    %s21 = ssub.s32 %s13, %s20
    %p22 = scmp.eq.s32.totalorder %s21, 0
    %s24 = sadd.s32 %s23, 1
    %s25 = scalar_select %p22, %s23, %s24
    %p28 = pneg %p22
    %p29 = scmp.eq.s32.totalorder %s13, 1
    %p30 = por %p28, %p29
    %p31 = scmp.ne.s32.totalorder %s23, %s26
    %p32 = scmp.eq.s32.totalorder %s13, 0
    %p33 = por %p31, %p32
    %p34 = scmp.ne.s32.totalorder %s23, %s26
    %p35 = scmp.eq.s32.totalorder %s18, 1
    %p36 = por %p34, %p35
    %p37 = scmp.ne.s32.totalorder %s26, %s27
    %p38 = scmp.eq.s32.totalorder %s18, 0
    %p39 = por %p37, %p38
    %p40 = scmp.ne.s32.totalorder %s26, %s27
    %p41 = scmp.eq.s32.totalorder %s19, 1
    %p42 = por %p40, %p41
    %p44 = scmp.ne.s32.totalorder %s27, %s43
    %p45 = scmp.eq.s32.totalorder %s19, 0
    %p46 = por %p44, %p45
    %s48 = sadd.s32 %s47, 1
    %p51 = scmp.eq.s32.totalorder %s13, 1
    %p52 = scmp.ne.s32.totalorder %s47, %s49
    %p53 = scmp.eq.s32.totalorder %s13, 0
    %p54 = por %p52, %p53
    %p55 = scmp.ne.s32.totalorder %s47, %s49
    %p56 = scmp.eq.s32.totalorder %s18, 1
    %p57 = por %p55, %p56
    %p58 = scmp.ne.s32.totalorder %s49, %s50
    %p59 = scmp.eq.s32.totalorder %s18, 0
    %p60 = por %p58, %p59
    %p61 = scmp.ne.s32.totalorder %s49, %s50
    %p62 = scmp.eq.s32.totalorder %s19, 1
    %p63 = por %p61, %p62
    %p65 = scmp.ne.s32.totalorder %s50, %s64
    %p66 = scmp.eq.s32.totalorder %s19, 0
    %p67 = por %p65, %p66
    %s69 = sadd.s32 %s68, 1
    %p72 = scmp.eq.s32.totalorder %s13, 1
    %p73 = scmp.ne.s32.totalorder %s68, %s70
    %p74 = scmp.eq.s32.totalorder %s13, 0
    %p75 = por %p73, %p74
    %p76 = scmp.ne.s32.totalorder %s68, %s70
    %p77 = scmp.eq.s32.totalorder %s18, 1
    %p78 = por %p76, %p77
    %p79 = scmp.ne.s32.totalorder %s70, %s71
    %p80 = scmp.eq.s32.totalorder %s18, 0
    %p81 = por %p79, %p80
    %p82 = scmp.ne.s32.totalorder %s70, %s71
    %p83 = scmp.eq.s32.totalorder %s19, 1
    %p84 = por %p82, %p83
    %p86 = scmp.ne.s32.totalorder %s71, %s85
    %p87 = scmp.eq.s32.totalorder %s19, 0
    %p88 = por %p86, %p87
    %s90 = sadd.s32 %s89, 1
    %p93 = scmp.eq.s32.totalorder %s13, 1
    %p94 = scmp.ne.s32.totalorder %s89, %s91
    %p95 = scmp.eq.s32.totalorder %s13, 0
    %p96 = por %p94, %p95
    %p97 = scmp.ne.s32.totalorder %s89, %s91
    %p98 = scmp.eq.s32.totalorder %s18, 1
    %p99 = por %p97, %p98
    %p100 = scmp.ne.s32.totalorder %s91, %s92
    %p101 = scmp.eq.s32.totalorder %s18, 0
    %p102 = por %p100, %p101
    %p103 = scmp.ne.s32.totalorder %s91, %s92
    %p104 = scmp.eq.s32.totalorder %s19, 1
    %p105 = por %p103, %p104
    %p107 = scmp.ne.s32.totalorder %s92, %s106
    %p108 = scmp.eq.s32.totalorder %s19, 0
    %p109 = por %p107, %p108
    %s111 = sadd.s32 %s110, 1
    %p114 = scmp.eq.s32.totalorder %s13, 1
    %p115 = scmp.ne.s32.totalorder %s110, %s112
    %p116 = scmp.eq.s32.totalorder %s13, 0
    %p117 = por %p115, %p116
    %p118 = scmp.ne.s32.totalorder %s110, %s112
    %p119 = scmp.eq.s32.totalorder %s18, 1
    %p120 = por %p118, %p119
    %p121 = scmp.ne.s32.totalorder %s112, %s113
    %p122 = scmp.eq.s32.totalorder %s18, 0
    %p123 = por %p121, %p122
    %p124 = scmp.ne.s32.totalorder %s112, %s113
    %p125 = scmp.eq.s32.totalorder %s19, 1
    %p126 = por %p124, %p125
    %p128 = scmp.ne.s32.totalorder %s113, %s127
    %p129 = scmp.eq.s32.totalorder %s19, 0
    %p130 = por %p128, %p129
    %s132 = sadd.s32 %s131, 1
    %p135 = scmp.eq.s32.totalorder %s13, 1
    %p136 = scmp.ne.s32.totalorder %s131, %s133
    %p137 = scmp.eq.s32.totalorder %s13, 0
    %p138 = por %p136, %p137
    %p139 = scmp.ne.s32.totalorder %s131, %s133
    %p140 = scmp.eq.s32.totalorder %s18, 1
    %p141 = por %p139, %p140
    %p142 = scmp.ne.s32.totalorder %s133, %s134
    %p143 = scmp.eq.s32.totalorder %s18, 0
    %p144 = por %p142, %p143
    %p145 = scmp.ne.s32.totalorder %s133, %s134
    %p146 = scmp.eq.s32.totalorder %s19, 1
    %p147 = por %p145, %p146
    %p149 = scmp.ne.s32.totalorder %s134, %s148
    %p150 = scmp.eq.s32.totalorder %s19, 0
    %p151 = por %p149, %p150
    %s153 = sadd.s32 %s152, 1
    %p156 = scmp.eq.s32.totalorder %s13, 1
    %p157 = scmp.ne.s32.totalorder %s152, %s154
    %p158 = scmp.eq.s32.totalorder %s13, 0
    %p159 = por %p157, %p158
    %p160 = scmp.ne.s32.totalorder %s152, %s154
    %p161 = scmp.eq.s32.totalorder %s18, 1
    %p162 = por %p160, %p161
    %p163 = scmp.ne.s32.totalorder %s154, %s155
    %p164 = scmp.eq.s32.totalorder %s18, 0
    %p165 = por %p163, %p164
    %p166 = scmp.ne.s32.totalorder %s154, %s155
    %p167 = scmp.eq.s32.totalorder %s19, 1
    %p168 = por %p166, %p167
    %p170 = scmp.ne.s32.totalorder %s155, %s169
    %p171 = scmp.eq.s32.totalorder %s19, 0
    %p172 = por %p170, %p171
    %s173 = ssub.s32 %s13, %s20
    %p174 = scmp.eq.s32.totalorder %s173, 0
    %s176 = sadd.s32 %s175, 1
    %s177 = scalar_select %p174, %s175, %s176
    %p180 = pneg %p174
    %p181 = scmp.eq.s32.totalorder %s13, 1
    %p182 = por %p180, %p181
    %p183 = scmp.ne.s32.totalorder %s175, %s178
    %p184 = scmp.eq.s32.totalorder %s13, 0
    %p185 = por %p183, %p184
    %p186 = scmp.ne.s32.totalorder %s175, %s178
    %p187 = scmp.eq.s32.totalorder %s18, 1
    %p188 = por %p186, %p187
    %p189 = scmp.ne.s32.totalorder %s178, %s179
    %p190 = scmp.eq.s32.totalorder %s18, 0
    %p191 = por %p189, %p190
    %p192 = scmp.ne.s32.totalorder %s178, %s179
    %p193 = scmp.eq.s32.totalorder %s19, 1
    %p194 = por %p192, %p193
    %p196 = scmp.ne.s32.totalorder %s179, %s195
    %p197 = scmp.eq.s32.totalorder %s19, 0
    %p198 = por %p196, %p197
    %p199 = scmp.le.s32.totalorder 1, %s13
    %p200 = scmp.lt.s32.totalorder %s13, 3
    %p201 = pnand %p199, %p200
    %p202 = pneg %p201
    // Predicated region
    $region9: #{_lambda_.4} parent=5 // pred_check
      _
    $region10: #{_lambda_.4} parent=5 // pred_check_branch
      %204 = sbr.rel (%p201) target = $region12
    $region11: #{_lambda_.4} parent=5 // pred_region
      %s205 = ssub.s32 %s13, 1
      // Predicated region
      $region13: #{_lambda_.4} parent=11 // pred_check
        %p206 = pneg %p60
      $region14: #{_lambda_.4} parent=11 // pred_check_branch
        %208 = sbr.rel (%p206) target = $region16
      $region15: #{_lambda_.4} parent=11 // pred_region
        _
      $region16: #{_lambda_.4} parent=11 // pred_fallthru
        _
      // Predicated region
      $region17: #{_lambda_.4} parent=11 // pred_check
        %p209 = pneg %p81
      $region18: #{_lambda_.4} parent=11 // pred_check_branch
        %211 = sbr.rel (%p209) target = $region20
      $region19: #{_lambda_.4} parent=11 // pred_region
        _
      $region20: #{_lambda_.4} parent=11 // pred_fallthru
        _
      // Predicated region
      $region21: #{_lambda_.4} parent=11 // pred_check
        %p212 = pneg %p102
      $region22: #{_lambda_.4} parent=11 // pred_check_branch
        %214 = sbr.rel (%p212) target = $region24
      $region23: #{_lambda_.4} parent=11 // pred_region
        _
      $region24: #{_lambda_.4} parent=11 // pred_fallthru
        _
      // Predicated region
      $region25: #{_lambda_.4} parent=11 // pred_check
        %p215 = pneg %p123
      $region26: #{_lambda_.4} parent=11 // pred_check_branch
        %217 = sbr.rel (%p215) target = $region28
      $region27: #{_lambda_.4} parent=11 // pred_region
        _
      $region28: #{_lambda_.4} parent=11 // pred_fallthru
        _
      // Predicated region
      $region29: #{_lambda_.4} parent=11 // pred_check
        %p218 = pneg %p144
      $region30: #{_lambda_.4} parent=11 // pred_check_branch
        %220 = sbr.rel (%p218) target = $region32
      $region31: #{_lambda_.4} parent=11 // pred_region
        _
      $region32: #{_lambda_.4} parent=11 // pred_fallthru
        _
      // Predicated region
      $region33: #{_lambda_.4} parent=11 // pred_check
        %p221 = pneg %p165
      $region34: #{_lambda_.4} parent=11 // pred_check_branch
        %223 = sbr.rel (%p221) target = $region36
      $region35: #{_lambda_.4} parent=11 // pred_region
        _
      $region36: #{_lambda_.4} parent=11 // pred_fallthru
        _
    $region12: #{_lambda_.4} parent=5 // pred_fallthru
      _
    %p224 = scmp.lt.s32.totalorder %s13, 2
    // Predicated region
    $region37: #{_lambda_.4} parent=5 // pred_check
      %p225 = pneg %p224
    $region38: #{_lambda_.4} parent=5 // pred_check_branch
      %227 = sbr.rel (%p225) target = $region40
    $region39: #{_lambda_.4} parent=5 // pred_region
      // Predicated region
      $region41: #{_lambda_.4} parent=39 // pred_check
        %p228 = pneg %p33
      $region42: #{_lambda_.4} parent=39 // pred_check_branch
        %230 = sbr.rel (%p228) target = $region44
      $region43: #{_lambda_.4} parent=39 // pred_region
        %p231 = scmp.lt.s32.totalorder %s13, 1
        %s232 = scalar_select %p231, %s13, 1
        %s233 = smul.addr %s232, 4
        %s234 = scalar_lea.vmem %s0, %s233
      $region44: #{_lambda_.4} parent=39 // pred_fallthru
        _
    $region40: #{_lambda_.4} parent=5 // pred_fallthru
      _
    %p235 = scmp.le.s32.totalorder 1, %s13
    %p236 = scmp.lt.s32.totalorder %s13, 3
    %p237 = pnand %p235, %p236
    %p238 = pneg %p237
    // Predicated region
    $region45: #{_lambda_.4} parent=5 // pred_check
      _
    $region46: #{_lambda_.4} parent=5 // pred_check_branch
      %240 = sbr.rel (%p237) target = $region48
    $region47: #{_lambda_.4} parent=5 // pred_region
      %s241 = ssub.s32 %s13, 1
      %p242 = scmp.lt.s32.totalorder %s18, 1
      %s243 = scalar_select %p242, %s18, 1
      %s244 = smul.addr %s243, 4
      %s245 = scalar_lea.vmem %s0, %s244
      %p246 = pneg %p39
      %p247 = pneg %p36
      %p248 = pneg %p60
      %p249 = pneg %p57
      %p250 = pneg %p81
      %p251 = pneg %p78
      %p252 = pneg %p102
      %p253 = pneg %p99
      %p254 = pneg %p123
      %p255 = pneg %p120
      %p256 = pneg %p144
      %p257 = pneg %p141
      %p258 = pneg %p165
      %p259 = pneg %p162
      %p260 = pneg %p191
      %p261 = pneg %p188
      %p262 = scmp.lt.s32.totalorder %s18, 1
      %s263 = scalar_select %p262, %s18, 1
      %s264 = smul.addr %s263, 4
      %s265 = smul.addr %s264, 8
      %s266 = scalar_lea.vmem %s7, %s265
      %p267 = scmp.lt.s32.totalorder %s18, 1
      %s268 = scalar_select %p267, %s18, 1
      %s269 = smul.addr %s268, 4
      %s270 = scalar_lea.vmem %s0, %s269
      %p271 = scmp.lt.s32.totalorder %s18, 1
      %s272 = scalar_select %p271, %s18, 1
      %s273 = smul.addr %s272, 4
      %s274 = smul.addr %s273, 8
      %s275 = scalar_lea.vmem %s7, %s274
      %v276 = vld [vmem:[%s270] sm:$0xf]
      %278 = vrot.lane.b32.xlu0 %v276, 2
      %v279 = vpop.permute.xlu0 %278
      %vm281 = vcmask 142352
      %282 = vst.msk [vmem:[#allocation2] sm:$0xf] %vm281, %v279
      %283 = vrot.lane.b32.xlu0 %v276, 126
      %v284 = vpop.permute.xlu0 %283
      %vm286 = vcmask 3072
      %287 = vst.msk [vmem:[#allocation2] sm:$0xf] %vm286, %v284
      %vm288 = vcmask 11272
      %289 = vst.msk [vmem:[#allocation2] sm:$0xf] %vm288, %v276
      %290 = vrot.lane.b32.xlu0 %v276, 4
      %v291 = vpop.permute.xlu0 %290
      %vm293 = vcmask 150672
      %294 = vst.msk [vmem:[#allocation2] sm:$0xf] %vm293, %v291
      %v295 = vld [vmem:[%s5] sm:$0xff]
      %v296 = vld [vmem:[%s5 + $0x8] sm:$0xff]
      %v297 = vld [vmem:[%s5 + $0x10] sm:$0xff]
      %v298 = vld [vmem:[%s5 + $0x18] sm:$0xff]
      %v299 = vld [vmem:[%s6] sm:$0xff]
      %v300 = vld [vmem:[%s6 + $0x8] sm:$0xff]
      %v301 = vld [vmem:[%s6 + $0x10] sm:$0xff]
      %v302 = vld [vmem:[%s6 + $0x18] sm:$0xff]
      %304 = vset.pattern.permute.xlu0 0
      %305 = vperm.xlu0 %304, %v299
      %v306 = vpop.permute.xlu0 %305
      %309 = vset.pattern.permute.xlu0 0
      %310 = vperm.xlu0 %309, %v300
      %v311 = vpop.permute.xlu0 %310
      %314 = vset.pattern.permute.xlu0 0
      %315 = vperm.xlu0 %314, %v301
      %v316 = vpop.permute.xlu0 %315
      %319 = vset.pattern.permute.xlu0 0
      %320 = vperm.xlu0 %319, %v302
      %v321 = vpop.permute.xlu0 %320
      %v323 = vld [vmem:[%s2] sm:$0xff]
      %325 = vset.pattern.permute.xlu0 0
      %326 = vperm.xlu0 %325, %v323
      %v327 = vpop.permute.xlu0 %326
      %v329 = vld [vmem:[%s1] sm:$0xff]
      %v330 = vld [vmem:[#allocation2] sm:$0xf]
      %332 = vrot.lane.b32.xlu0 %v330, 127
      %v333 = vpop.permute.xlu0 %332
      %vm334 = vcmask 31744
      %v336 = vsel %vm334, %v329, 0
      %vm338 = vcmask 1043456
      %v339 = vsel %vm338, %v333, 0
      %341 = vmatpush.msra.mxu0 0.0
      %342 = vmatpush.msra.mxu0 0.0
      %343 = vmatpush.msra.mxu0 0.0
      %344 = vmatpush.msra.mxu0 0.0
      %345 = vmatpush.msra.mxu0 0.0
      %346 = vmatpush.msra.mxu0 0.0
      %347 = vmatpush.msra.mxu0 0.0
      %348 = vmatpush.msra.mxu0 0.0
      %349 = vmatpush.msra.mxu0 0.0
      %350 = vmatpush.msra.mxu0 0.0
      %351 = vmatpush.msra.mxu0 0.0
      %352 = vmatpush.msra.mxu0 0.0
      %353 = vmatpush.msra.mxu0 0.0
      %354 = vmatpush.msra.mxu0 0.0
      %355 = vmatpush.msra.mxu0 0.0
      %356 = vmatpush.msra.mxu0 %v339
      %357 = vmatmul.f32.gmra.mxu0 %v336
      %v358 = vpop.f32.mrf.mxu0
      %v359 = vadd.f32 0.0, %v358
      %360 = vdwg.mxu0
      %v361 = vadd.f32 %v327, %v359
      %s362 = scalar_lea.vmem %s1, 8
      %v363 = vld [vmem:[%s362] sm:$0xff]
      %364 = vrot.lane.b32.xlu0 %v330, 126
      %v365 = vpop.permute.xlu0 %364
      %v367 = vsel %vm334, %v363, 0
      %v369 = vsel %vm338, %v365, 0
      %371 = vmatpush.msra.mxu0 0.0
      %372 = vmatpush.msra.mxu0 0.0
      %373 = vmatpush.msra.mxu0 0.0
      %374 = vmatpush.msra.mxu0 0.0
      %375 = vmatpush.msra.mxu0 0.0
      %376 = vmatpush.msra.mxu0 0.0
      %377 = vmatpush.msra.mxu0 0.0
      %378 = vmatpush.msra.mxu0 0.0
      %379 = vmatpush.msra.mxu0 0.0
      %380 = vmatpush.msra.mxu0 0.0
      %381 = vmatpush.msra.mxu0 0.0
      %382 = vmatpush.msra.mxu0 0.0
      %383 = vmatpush.msra.mxu0 0.0
      %384 = vmatpush.msra.mxu0 0.0
      %385 = vmatpush.msra.mxu0 0.0
      %386 = vmatpush.msra.mxu0 %v369
      %387 = vmatmul.f32.gmra.mxu0 %v367
      %v388 = vpop.f32.mrf.mxu0
      %v389 = vadd.f32 0.0, %v388
      %390 = vdwg.mxu0
      %v391 = vadd.f32 %v361, %v389
      %vm392 = vcmp.ge.f32.partialorder %v391, 0.0
      %v393 = vmul.f32 %v391, 0.01
      %v394 = vsel %vm392, %v391, %v393
      %vm395 = vcmask 64512
      %v397 = vsel %vm395, %v295, 0
      %v400 = vsel %vm395, %v296, 0
      %v403 = vsel %vm395, %v297, 0
      %v406 = vsel %vm395, %v298, 0
      %408 = vmatpush.msra.mxu0 0.0
      %409 = vmatpush.msra.mxu0 0.0
      %410 = vmatpush.msra.mxu0 0.0
      %411 = vmatpush.msra.mxu0 0.0
      %412 = vmatpush.msra.mxu0 0.0
      %413 = vmatpush.msra.mxu0 0.0
      %414 = vmatpush.msra.mxu0 0.0
      %415 = vmatpush.msra.mxu0 0.0
      %416 = vmatpush.msra.mxu0 0.0
      %417 = vmatpush.msra.mxu0 0.0
      %418 = vmatpush.msra.mxu0 0.0
      %419 = vmatpush.msra.mxu0 0.0
      %420 = vmatpush.msra.mxu0 0.0
      %421 = vmatpush.msra.mxu0 0.0
      %422 = vmatpush.msra.mxu0 0.0
      %423 = vmatpush.msra.mxu0 %v394
      %424 = vmatmul.f32.gmra.mxu0 %v397
      %v425 = vpop.f32.mrf.mxu0
      %v426 = vadd.f32 0.0, %v425
      %427 = vmatmul.f32.gmra.mxu0 %v400
      %v428 = vpop.f32.mrf.mxu0
      %v429 = vadd.f32 0.0, %v428
      %430 = vmatmul.f32.gmra.mxu0 %v403
      %v431 = vpop.f32.mrf.mxu0
      %v432 = vadd.f32 0.0, %v431
      %433 = vmatmul.f32.gmra.mxu0 %v406
      %v434 = vpop.f32.mrf.mxu0
      %v435 = vadd.f32 0.0, %v434
      %436 = vdwg.mxu0
      %v437 = vadd.f32 %v306, %v426
      %v438 = vadd.f32 %v311, %v429
      %v439 = vadd.f32 %v316, %v432
      %v440 = vadd.f32 %v321, %v435
      %v441 = vld [vmem:[%s4] sm:$0xff]
      %443 = vset.pattern.permute.xlu0 0
      %444 = vperm.xlu0 %443, %v441
      %v445 = vpop.permute.xlu0 %444
      %v447 = vld [vmem:[%s3] sm:$0xff]
      %v449 = vsel %vm334, %v447, 0
      %v451 = vsel %vm338, %v330, 0
      %453 = vmatpush.msra.mxu0 0.0
      %454 = vmatpush.msra.mxu0 0.0
      %455 = vmatpush.msra.mxu0 0.0
      %456 = vmatpush.msra.mxu0 0.0
      %457 = vmatpush.msra.mxu0 0.0
      %458 = vmatpush.msra.mxu0 0.0
      %459 = vmatpush.msra.mxu0 0.0
      %460 = vmatpush.msra.mxu0 0.0
      %461 = vmatpush.msra.mxu0 0.0
      %462 = vmatpush.msra.mxu0 0.0
      %463 = vmatpush.msra.mxu0 0.0
      %464 = vmatpush.msra.mxu0 0.0
      %465 = vmatpush.msra.mxu0 0.0
      %466 = vmatpush.msra.mxu0 0.0
      %467 = vmatpush.msra.mxu0 0.0
      %468 = vmatpush.msra.mxu0 %v451
      %469 = vmatmul.f32.gmra.mxu0 %v449
      %v470 = vpop.f32.mrf.mxu0
      %v471 = vadd.f32 0.0, %v470
      %472 = vdwg.mxu0
      %v473 = vadd.f32 %v445, %v471
      %s474 = scalar_lea.vmem %s3, 8
      %v475 = vld [vmem:[%s474] sm:$0xff]
      %v477 = vsel %vm334, %v475, 0
      %479 = vmatpush.msra.mxu0 0.0
      %480 = vmatpush.msra.mxu0 0.0
      %481 = vmatpush.msra.mxu0 0.0
      %482 = vmatpush.msra.mxu0 0.0
      %483 = vmatpush.msra.mxu0 0.0
      %484 = vmatpush.msra.mxu0 0.0
      %485 = vmatpush.msra.mxu0 0.0
      %486 = vmatpush.msra.mxu0 0.0
      %487 = vmatpush.msra.mxu0 0.0
      %488 = vmatpush.msra.mxu0 0.0
      %489 = vmatpush.msra.mxu0 0.0
      %490 = vmatpush.msra.mxu0 0.0
      %491 = vmatpush.msra.mxu0 0.0
      %492 = vmatpush.msra.mxu0 0.0
      %493 = vmatpush.msra.mxu0 0.0
      %494 = vmatpush.msra.mxu0 %v339
      %495 = vmatmul.f32.gmra.mxu0 %v477
      %v496 = vpop.f32.mrf.mxu0
      %v497 = vadd.f32 0.0, %v496
      %498 = vdwg.mxu0
      %v499 = vadd.f32 %v473, %v497
      %s500 = scalar_lea.vmem %s3, 16
      %v501 = vld [vmem:[%s500] sm:$0xff]
      %v503 = vsel %vm334, %v501, 0
      %505 = vmatpush.msra.mxu0 0.0
      %506 = vmatpush.msra.mxu0 0.0
      %507 = vmatpush.msra.mxu0 0.0
      %508 = vmatpush.msra.mxu0 0.0
      %509 = vmatpush.msra.mxu0 0.0
      %510 = vmatpush.msra.mxu0 0.0
      %511 = vmatpush.msra.mxu0 0.0
      %512 = vmatpush.msra.mxu0 0.0
      %513 = vmatpush.msra.mxu0 0.0
      %514 = vmatpush.msra.mxu0 0.0
      %515 = vmatpush.msra.mxu0 0.0
      %516 = vmatpush.msra.mxu0 0.0
      %517 = vmatpush.msra.mxu0 0.0
      %518 = vmatpush.msra.mxu0 0.0
      %519 = vmatpush.msra.mxu0 0.0
      %520 = vmatpush.msra.mxu0 %v369
      %521 = vmatmul.f32.gmra.mxu0 %v503
      %v522 = vpop.f32.mrf.mxu0
      %v523 = vadd.f32 0.0, %v522
      %524 = vdwg.mxu0
      %v525 = vadd.f32 %v499, %v523
      %s526 = scalar_lea.vmem %s3, 24
      %v527 = vld [vmem:[%s526] sm:$0xff]
      %528 = vrot.lane.b32.xlu0 %v330, 125
      %v529 = vpop.permute.xlu0 %528
      %v531 = vsel %vm334, %v527, 0
      %v533 = vsel %vm338, %v529, 0
      %535 = vmatpush.msra.mxu0 0.0
      %536 = vmatpush.msra.mxu0 0.0
      %537 = vmatpush.msra.mxu0 0.0
      %538 = vmatpush.msra.mxu0 0.0
      %539 = vmatpush.msra.mxu0 0.0
      %540 = vmatpush.msra.mxu0 0.0
      %541 = vmatpush.msra.mxu0 0.0
      %542 = vmatpush.msra.mxu0 0.0
      %543 = vmatpush.msra.mxu0 0.0
      %544 = vmatpush.msra.mxu0 0.0
      %545 = vmatpush.msra.mxu0 0.0
      %546 = vmatpush.msra.mxu0 0.0
      %547 = vmatpush.msra.mxu0 0.0
      %548 = vmatpush.msra.mxu0 0.0
      %549 = vmatpush.msra.mxu0 0.0
      %550 = vmatpush.msra.mxu0 %v533
      %551 = vmatmul.f32.gmra.mxu0 %v531
      %v552 = vpop.f32.mrf.mxu0
      %v553 = vadd.f32 0.0, %v552
      %554 = vdwg.mxu0
      %v555 = vadd.f32 %v525, %v553
      %vm556 = vcmp.ge.f32.partialorder %v555, 0.0
      %v557 = vmul.f32 %v555, 0.01
      %v558 = vsel %vm556, %v555, %v557
      %559 = vrot.lane.b32.xlu0 %v295, 120
      %v560 = vpop.permute.xlu0 %559
      %561 = vrot.lane.b32.xlu0 %v296, 120
      %v562 = vpop.permute.xlu0 %561
      %563 = vrot.lane.b32.xlu0 %v297, 120
      %v564 = vpop.permute.xlu0 %563
      %565 = vrot.lane.b32.xlu0 %v298, 120
      %v566 = vpop.permute.xlu0 %565
      %v567 = vsel %vm395, %v560, 0
      %v569 = vsel %vm395, %v562, 0
      %v571 = vsel %vm395, %v564, 0
      %v573 = vsel %vm395, %v566, 0
      %575 = vmatpush.msra.mxu0 0.0
      %576 = vmatpush.msra.mxu0 0.0
      %577 = vmatpush.msra.mxu0 0.0
      %578 = vmatpush.msra.mxu0 0.0
      %579 = vmatpush.msra.mxu0 0.0
      %580 = vmatpush.msra.mxu0 0.0
      %581 = vmatpush.msra.mxu0 0.0
      %582 = vmatpush.msra.mxu0 0.0
      %583 = vmatpush.msra.mxu0 0.0
      %584 = vmatpush.msra.mxu0 0.0
      %585 = vmatpush.msra.mxu0 0.0
      %586 = vmatpush.msra.mxu0 0.0
      %587 = vmatpush.msra.mxu0 0.0
      %588 = vmatpush.msra.mxu0 0.0
      %589 = vmatpush.msra.mxu0 0.0
      %590 = vmatpush.msra.mxu0 %v558
      %591 = vmatmul.f32.gmra.mxu0 %v567
      %v592 = vpop.f32.mrf.mxu0
      %v593 = vadd.f32 0.0, %v592
      %594 = vmatmul.f32.gmra.mxu0 %v569
      %v595 = vpop.f32.mrf.mxu0
      %v596 = vadd.f32 0.0, %v595
      %597 = vmatmul.f32.gmra.mxu0 %v571
      %v598 = vpop.f32.mrf.mxu0
      %v599 = vadd.f32 0.0, %v598
      %600 = vmatmul.f32.gmra.mxu0 %v573
      %v601 = vpop.f32.mrf.mxu0
      %v602 = vadd.f32 0.0, %v601
      %603 = vdwg.mxu0
      %v604 = vadd.f32 %v437, %v593
      %v605 = vadd.f32 %v438, %v596
      %v606 = vadd.f32 %v439, %v599
      %v607 = vadd.f32 %v440, %v602
      %608 = vrot.lane.b32.xlu0 %v295, 112
      %v609 = vpop.permute.xlu0 %608
      %610 = vrot.lane.b32.xlu0 %v296, 112
      %v611 = vpop.permute.xlu0 %610
      %612 = vrot.lane.b32.xlu0 %v297, 112
      %v613 = vpop.permute.xlu0 %612
      %614 = vrot.lane.b32.xlu0 %v298, 112
      %v615 = vpop.permute.xlu0 %614
      %v616 = vsel %vm334, %v609, 0
      %v618 = vsel %vm334, %v611, 0
      %v620 = vsel %vm334, %v613, 0
      %v622 = vsel %vm334, %v615, 0
      %v624 = vsel %vm338, %v276, 0
      %626 = vmatpush.msra.mxu0 0.0
      %627 = vmatpush.msra.mxu0 0.0
      %628 = vmatpush.msra.mxu0 0.0
      %629 = vmatpush.msra.mxu0 0.0
      %630 = vmatpush.msra.mxu0 0.0
      %631 = vmatpush.msra.mxu0 0.0
      %632 = vmatpush.msra.mxu0 0.0
      %633 = vmatpush.msra.mxu0 0.0
      %634 = vmatpush.msra.mxu0 0.0
      %635 = vmatpush.msra.mxu0 0.0
      %636 = vmatpush.msra.mxu0 0.0
      %637 = vmatpush.msra.mxu0 0.0
      %638 = vmatpush.msra.mxu0 0.0
      %639 = vmatpush.msra.mxu0 0.0
      %640 = vmatpush.msra.mxu0 0.0
      %641 = vmatpush.msra.mxu0 %v624
      %642 = vmatmul.f32.gmra.mxu0 %v616
      %v643 = vpop.f32.mrf.mxu0
      %v644 = vadd.f32 0.0, %v643
      %645 = vmatmul.f32.gmra.mxu0 %v618
      %v646 = vpop.f32.mrf.mxu0
      %v647 = vadd.f32 0.0, %v646
      %648 = vmatmul.f32.gmra.mxu0 %v620
      %v649 = vpop.f32.mrf.mxu0
      %v650 = vadd.f32 0.0, %v649
      %651 = vmatmul.f32.gmra.mxu0 %v622
      %v652 = vpop.f32.mrf.mxu0
      %v653 = vadd.f32 0.0, %v652
      %654 = vdwg.mxu0
      %v655 = vadd.f32 %v604, %v644
      %v656 = vadd.f32 %v605, %v647
      %v657 = vadd.f32 %v606, %v650
      %v658 = vadd.f32 %v607, %v653
      %vm659 = vcmp.ge.f32.partialorder %v655, 0.0
      %vm660 = vcmp.ge.f32.partialorder %v656, 0.0
      %vm661 = vcmp.ge.f32.partialorder %v657, 0.0
      %vm662 = vcmp.ge.f32.partialorder %v658, 0.0
      %v663 = vmul.f32 %v655, 0.01
      %v664 = vmul.f32 %v656, 0.01
      %v665 = vmul.f32 %v657, 0.01
      %v666 = vmul.f32 %v658, 0.01
      %v667 = vsel %vm659, %v655, %v663
      %v668 = vsel %vm660, %v656, %v664
      %v669 = vsel %vm661, %v657, %v665
      %v670 = vsel %vm662, %v658, %v666
      %vm671 = vcmask 130048
      %672 = vst.msk [vmem:[%s275] sm:$0xff] %vm671, %v667
      %673 = vst.msk [vmem:[%s275 + $0x8] sm:$0xff] %vm671, %v668
      %674 = vst.msk [vmem:[%s275 + $0x10] sm:$0xff] %vm671, %v669
      %675 = vst.msk [vmem:[%s275 + $0x18] sm:$0xff] %vm671, %v670
      %p676 = scmp.lt.s32.totalorder %s18, 1
      %s677 = scalar_select %p676, %s18, 1
      %s678 = smul.addr %s677, 4
      %s679 = smul.addr %s678, 8
      %s680 = scalar_lea.vmem %s7, %s679
      // Predicated region
      $region49: #{_lambda_.4} parent=47 // pred_check
        %p681 = pneg %p188
      $region50: #{_lambda_.4} parent=47 // pred_check_branch
        %683 = sbr.rel (%p681) target = $region52
      $region51: #{_lambda_.4} parent=47 // pred_region
        _
      $region52: #{_lambda_.4} parent=47 // pred_fallthru
        _
    $region48: #{_lambda_.4} parent=5 // pred_fallthru
      _
    %p684 = scmp.le.s32.totalorder 2, %s13
    // Predicated region
    $region53: #{_lambda_.4} parent=5 // pred_check
      %p685 = pneg %p684
    $region54: #{_lambda_.4} parent=5 // pred_check_branch
      %687 = sbr.rel (%p685) target = $region56
    $region55: #{_lambda_.4} parent=5 // pred_region
      %s688 = ssub.s32 %s13, 2
      // Predicated region
      $region57: #{_lambda_.4} parent=55 // pred_check
        %p689 = pneg %p194
      $region58: #{_lambda_.4} parent=55 // pred_check_branch
        %691 = sbr.rel (%p689) target = $region60
      $region59: #{_lambda_.4} parent=55 // pred_region
        %p692 = scmp.lt.s32.totalorder %s19, 1
        %s693 = scalar_select %p692, %s19, 1
        %s694 = smul.addr %s693, 4
        %s695 = smul.addr %s694, 8
        %s696 = scalar_lea.vmem %s7, %s695
      $region60: #{_lambda_.4} parent=55 // pred_fallthru
        _
    $region56: #{_lambda_.4} parent=5 // pred_fallthru
      _
  $region6: #{_lambda_.4} parent=0 // loop_footer
    %s17 = sadd.s32 1, %s13
  $region7: #{_lambda_.4} parent=0 // loop_footer_branch
    %12 = sbr.rel target = $region3
  $region8: #{_lambda_.4} parent=0 // loop_exit
    _

// kernel: _lambda_.6
$region0: #{_lambda_.6}
  #allocation0 [shape = 'u32[]', space=smem, size = 0x4, offset = 0x4, fixed_abs, tag = 'smem constant byte address 0x4 - core index']
  #allocation1 [shape = 'u32[72,128]{1,0:T(1,128)}', space=vmem, size = 0x9000, scoped, tag = 'internal scratch']
  #allocation2 [shape = 'f32[32,18]{1,0:T(8,128)}', space=vmem, size = 0x4000, scoped, tag = 'scratch operand']
  %s0 = inlined_call_operand.vmem [shape: f32[2,32,16], index: 0, kind: input, shape index: {}]
  %s1 = inlined_call_operand.vmem [shape: f32[3,32,32], index: 1, kind: input, shape index: {}]
  %s2 = inlined_call_operand.vmem [shape: f32[32,1], index: 2, kind: input, shape index: {}]
  %s3 = inlined_call_operand.hbm [shape: f32[3,32,32], index: 3, kind: input, shape index: {}]
  %s4 = inlined_call_operand.vmem [shape: f32[32,1], index: 4, kind: input, shape index: {}]
  %s5 = inlined_call_operand.vmem [shape: f32[16,8], index: 5, kind: input, shape index: {}]
  %s6 = inlined_call_operand.vmem [shape: f32[16,8], index: 6, kind: input, shape index: {}]
  %s7 = inlined_call_operand.vmem [shape: f32[2,32,1], index: 7, kind: output, shape index: {}]
  %s8 = sld [smem:[#allocation0]]
  $region65: #{_lambda_.6} parent=0
    _
  %s10 = ssub.s32 1, %s8
  %s11 = scalar_select 0, %s10, %s8
  $region1: #{_lambda_.6} parent=0
    #allocation3 [shape = 'u8[49152]{0}', space=vmem, size = 0xc000, scoped, tag = 'input window, operand 3, single buffered']
    #allocation4 [shape = 's32[2]{0}', space=sflag, size = 0x8, scoped, tag = 'scoped memory for _lambda_.6']
    %12 = vsyncpa [#allocation4], 0
    loop: start=0, step=1, limit=4
    $region2: #{_lambda_.6} parent=1 // loop_pre_header
      _
    $region3: #{_lambda_.6} parent=1 // loop_header
      %s14 = sphi 0, %s18
      %p15 = scmp.ge.s32.totalorder %s14, 4
      %s24 = sphi 0, %s26
      %s27 = sphi 0, %s24
      %s28 = sphi 0, %s27
      %s44 = sphi 0, %s28
      %s48 = sphi 0, %s48
      %s50 = sphi 0, %s48
      %s51 = sphi 0, %s50
      %s65 = sphi 0, %s51
      %s69 = sphi 0, %s69
      %s71 = sphi 0, %s69
      %s72 = sphi 0, %s71
      %s86 = sphi 0, %s72
      %s90 = sphi 0, %s90
      %s92 = sphi 0, %s90
      %s93 = sphi 0, %s92
      %s107 = sphi 0, %s93
      %s111 = sphi 0, %s111
      %s113 = sphi 0, %s111
      %s114 = sphi 0, %s113
      %s128 = sphi 0, %s114
      %s132 = sphi 0, %s132
      %s134 = sphi 0, %s132
      %s135 = sphi 0, %s134
      %s149 = sphi 0, %s135
      %s153 = sphi 0, %s153
      %s155 = sphi 0, %s153
      %s156 = sphi 0, %s155
      %s170 = sphi 0, %s156
      %s176 = sphi 0, %s178
      %s179 = sphi 0, %s176
      %s180 = sphi 0, %s179
      %s196 = sphi 0, %s180
    $region4: #{_lambda_.6} parent=1 // loop_header_branch
      %17 = sbr.rel (%p15) target = $region8
    $region5: #{_lambda_.6} parent=1 // loop_body
      %s19 = ssub.s32 %s14, 1
      %s20 = ssub.s32 %s14, 2
      %s21 = sadd.s32 %s14, 1
      %s22 = ssub.s32 %s14, %s21
      %p23 = scmp.eq.s32.totalorder %s22, 0
      %s25 = sadd.s32 %s24, 1
      %s26 = scalar_select %p23, %s24, %s25
      %p29 = pneg %p23
      %p30 = scmp.eq.s32.totalorder %s14, 1
      %p31 = por %p29, %p30
      %p32 = scmp.ne.s32.totalorder %s24, %s27
      %p33 = scmp.eq.s32.totalorder %s14, 0
      %p34 = por %p32, %p33
      %p35 = scmp.ne.s32.totalorder %s24, %s27
      %p36 = scmp.eq.s32.totalorder %s19, 1
      %p37 = por %p35, %p36
      %p38 = scmp.ne.s32.totalorder %s27, %s28
      %p39 = scmp.eq.s32.totalorder %s19, 0
      %p40 = por %p38, %p39
      %p41 = scmp.ne.s32.totalorder %s27, %s28
      %p42 = scmp.eq.s32.totalorder %s20, 1
      %p43 = por %p41, %p42
      %p45 = scmp.ne.s32.totalorder %s28, %s44
      %p46 = scmp.eq.s32.totalorder %s20, 0
      %p47 = por %p45, %p46
      %s49 = sadd.s32 %s48, 1
      %p52 = scmp.eq.s32.totalorder %s14, 1
      %p53 = scmp.ne.s32.totalorder %s48, %s50
      %p54 = scmp.eq.s32.totalorder %s14, 0
      %p55 = por %p53, %p54
      %p56 = scmp.ne.s32.totalorder %s48, %s50
      %p57 = scmp.eq.s32.totalorder %s19, 1
      %p58 = por %p56, %p57
      %p59 = scmp.ne.s32.totalorder %s50, %s51
      %p60 = scmp.eq.s32.totalorder %s19, 0
      %p61 = por %p59, %p60
      %p62 = scmp.ne.s32.totalorder %s50, %s51
      %p63 = scmp.eq.s32.totalorder %s20, 1
      %p64 = por %p62, %p63
      %p66 = scmp.ne.s32.totalorder %s51, %s65
      %p67 = scmp.eq.s32.totalorder %s20, 0
      %p68 = por %p66, %p67
      %s70 = sadd.s32 %s69, 1
      %p73 = scmp.eq.s32.totalorder %s14, 1
      %p74 = scmp.ne.s32.totalorder %s69, %s71
      %p75 = scmp.eq.s32.totalorder %s14, 0
      %p76 = por %p74, %p75
      %p77 = scmp.ne.s32.totalorder %s69, %s71
      %p78 = scmp.eq.s32.totalorder %s19, 1
      %p79 = por %p77, %p78
      %p80 = scmp.ne.s32.totalorder %s71, %s72
      %p81 = scmp.eq.s32.totalorder %s19, 0
      %p82 = por %p80, %p81
      %p83 = scmp.ne.s32.totalorder %s71, %s72
      %p84 = scmp.eq.s32.totalorder %s20, 1
      %p85 = por %p83, %p84
      %p87 = scmp.ne.s32.totalorder %s72, %s86
      %p88 = scmp.eq.s32.totalorder %s20, 0
      %p89 = por %p87, %p88
      %s91 = sadd.s32 %s90, 1
      %p94 = scmp.eq.s32.totalorder %s14, 1
      %p95 = scmp.ne.s32.totalorder %s90, %s92
      %p96 = scmp.eq.s32.totalorder %s14, 0
      %p97 = por %p95, %p96
      %p98 = scmp.ne.s32.totalorder %s90, %s92
      %p99 = scmp.eq.s32.totalorder %s19, 1
      %p100 = por %p98, %p99
      %p101 = scmp.ne.s32.totalorder %s92, %s93
      %p102 = scmp.eq.s32.totalorder %s19, 0
      %p103 = por %p101, %p102
      %p104 = scmp.ne.s32.totalorder %s92, %s93
      %p105 = scmp.eq.s32.totalorder %s20, 1
      %p106 = por %p104, %p105
      %p108 = scmp.ne.s32.totalorder %s93, %s107
      %p109 = scmp.eq.s32.totalorder %s20, 0
      %p110 = por %p108, %p109
      %s112 = sadd.s32 %s111, 1
      %p115 = scmp.eq.s32.totalorder %s14, 1
      %p116 = scmp.ne.s32.totalorder %s111, %s113
      %p117 = scmp.eq.s32.totalorder %s14, 0
      %p118 = por %p116, %p117
      %p119 = scmp.ne.s32.totalorder %s111, %s113
      %p120 = scmp.eq.s32.totalorder %s19, 1
      %p121 = por %p119, %p120
      %p122 = scmp.ne.s32.totalorder %s113, %s114
      %p123 = scmp.eq.s32.totalorder %s19, 0
      %p124 = por %p122, %p123
      %p125 = scmp.ne.s32.totalorder %s113, %s114
      %p126 = scmp.eq.s32.totalorder %s20, 1
      %p127 = por %p125, %p126
      %p129 = scmp.ne.s32.totalorder %s114, %s128
      %p130 = scmp.eq.s32.totalorder %s20, 0
      %p131 = por %p129, %p130
      %s133 = sadd.s32 %s132, 1
      %p136 = scmp.eq.s32.totalorder %s14, 1
      %p137 = scmp.ne.s32.totalorder %s132, %s134
      %p138 = scmp.eq.s32.totalorder %s14, 0
      %p139 = por %p137, %p138
      %p140 = scmp.ne.s32.totalorder %s132, %s134
      %p141 = scmp.eq.s32.totalorder %s19, 1
      %p142 = por %p140, %p141
      %p143 = scmp.ne.s32.totalorder %s134, %s135
      %p144 = scmp.eq.s32.totalorder %s19, 0
      %p145 = por %p143, %p144
      %p146 = scmp.ne.s32.totalorder %s134, %s135
      %p147 = scmp.eq.s32.totalorder %s20, 1
      %p148 = por %p146, %p147
      %p150 = scmp.ne.s32.totalorder %s135, %s149
      %p151 = scmp.eq.s32.totalorder %s20, 0
      %p152 = por %p150, %p151
      %s154 = sadd.s32 %s153, 1
      %p157 = scmp.eq.s32.totalorder %s14, 1
      %p158 = scmp.ne.s32.totalorder %s153, %s155
      %p159 = scmp.eq.s32.totalorder %s14, 0
      %p160 = por %p158, %p159
      %p161 = scmp.ne.s32.totalorder %s153, %s155
      %p162 = scmp.eq.s32.totalorder %s19, 1
      %p163 = por %p161, %p162
      %p164 = scmp.ne.s32.totalorder %s155, %s156
      %p165 = scmp.eq.s32.totalorder %s19, 0
      %p166 = por %p164, %p165
      %p167 = scmp.ne.s32.totalorder %s155, %s156
      %p168 = scmp.eq.s32.totalorder %s20, 1
      %p169 = por %p167, %p168
      %p171 = scmp.ne.s32.totalorder %s156, %s170
      %p172 = scmp.eq.s32.totalorder %s20, 0
      %p173 = por %p171, %p172
      %s174 = ssub.s32 %s14, %s21
      %p175 = scmp.eq.s32.totalorder %s174, 0
      %s177 = sadd.s32 %s176, 1
      %s178 = scalar_select %p175, %s176, %s177
      %p181 = pneg %p175
      %p182 = scmp.eq.s32.totalorder %s14, 1
      %p183 = por %p181, %p182
      %p184 = scmp.ne.s32.totalorder %s176, %s179
      %p185 = scmp.eq.s32.totalorder %s14, 0
      %p186 = por %p184, %p185
      %p187 = scmp.ne.s32.totalorder %s176, %s179
      %p188 = scmp.eq.s32.totalorder %s19, 1
      %p189 = por %p187, %p188
      %p190 = scmp.ne.s32.totalorder %s179, %s180
      %p191 = scmp.eq.s32.totalorder %s19, 0
      %p192 = por %p190, %p191
      %p193 = scmp.ne.s32.totalorder %s179, %s180
      %p194 = scmp.eq.s32.totalorder %s20, 1
      %p195 = por %p193, %p194
      %p197 = scmp.ne.s32.totalorder %s180, %s196
      %p198 = scmp.eq.s32.totalorder %s20, 0
      %p199 = por %p197, %p198
      %p200 = scmp.le.s32.totalorder 1, %s14
      %p201 = scmp.lt.s32.totalorder %s14, 3
      %p202 = pnand %p200, %p201
      %p203 = pneg %p202
      // Predicated region
      $region9: #{_lambda_.6} parent=5 // pred_check
        _
      $region10: #{_lambda_.6} parent=5 // pred_check_branch
        %205 = sbr.rel (%p202) target = $region12
      $region11: #{_lambda_.6} parent=5 // pred_region
        %s206 = ssub.s32 %s14, 1
        // Predicated region
        $region13: #{_lambda_.6} parent=11 // pred_check
          %p207 = pneg %p61
        $region14: #{_lambda_.6} parent=11 // pred_check_branch
          %209 = sbr.rel (%p207) target = $region16
        $region15: #{_lambda_.6} parent=11 // pred_region
          _
        $region16: #{_lambda_.6} parent=11 // pred_fallthru
          _
        // Predicated region
        $region17: #{_lambda_.6} parent=11 // pred_check
          %p210 = pneg %p82
        $region18: #{_lambda_.6} parent=11 // pred_check_branch
          %212 = sbr.rel (%p210) target = $region20
        $region19: #{_lambda_.6} parent=11 // pred_region
          _
        $region20: #{_lambda_.6} parent=11 // pred_fallthru
          _
        // Predicated region
        $region21: #{_lambda_.6} parent=11 // pred_check
          %p213 = pneg %p103
        $region22: #{_lambda_.6} parent=11 // pred_check_branch
          %215 = sbr.rel (%p213) target = $region24
        $region23: #{_lambda_.6} parent=11 // pred_region
          %217 = vsyncadd [#allocation4], 0
          %s218 = sshll.u32 %s3, 4
          %s219 = int_to_ptr.hbm [resolvable:$true] %s218
          %s220 = sshll.u32 [#allocation3], 4
          %s221 = int_to_ptr.vmem [resolvable:$true] %s220
          %226 = dma.hbm_to_vmem [thread:$0]  %s219, 1536, %s221, [#allocation4], 128, 128, 8
        $region24: #{_lambda_.6} parent=11 // pred_fallthru
          _
        // Predicated region
        $region25: #{_lambda_.6} parent=11 // pred_check
          %p227 = pneg %p124
        $region26: #{_lambda_.6} parent=11 // pred_check_branch
          %229 = sbr.rel (%p227) target = $region28
        $region27: #{_lambda_.6} parent=11 // pred_region
          _
        $region28: #{_lambda_.6} parent=11 // pred_fallthru
          _
        // Predicated region
        $region29: #{_lambda_.6} parent=11 // pred_check
          %p230 = pneg %p145
        $region30: #{_lambda_.6} parent=11 // pred_check_branch
          %232 = sbr.rel (%p230) target = $region32
        $region31: #{_lambda_.6} parent=11 // pred_region
          _
        $region32: #{_lambda_.6} parent=11 // pred_fallthru
          _
        // Predicated region
        $region33: #{_lambda_.6} parent=11 // pred_check
          %p233 = pneg %p166
        $region34: #{_lambda_.6} parent=11 // pred_check_branch
          %235 = sbr.rel (%p233) target = $region36
        $region35: #{_lambda_.6} parent=11 // pred_region
          _
        $region36: #{_lambda_.6} parent=11 // pred_fallthru
          _
      $region12: #{_lambda_.6} parent=5 // pred_fallthru
        _
      %p236 = scmp.lt.s32.totalorder %s14, 2
      // Predicated region
      $region37: #{_lambda_.6} parent=5 // pred_check
        %p237 = pneg %p236
      $region38: #{_lambda_.6} parent=5 // pred_check_branch
        %239 = sbr.rel (%p237) target = $region40
      $region39: #{_lambda_.6} parent=5 // pred_region
        // Predicated region
        $region41: #{_lambda_.6} parent=39 // pred_check
          %p240 = pneg %p34
        $region42: #{_lambda_.6} parent=39 // pred_check_branch
          %242 = sbr.rel (%p240) target = $region44
        $region43: #{_lambda_.6} parent=39 // pred_region
          %p243 = scmp.lt.s32.totalorder %s14, 1
          %s244 = scalar_select %p243, %s14, 1
          %s245 = smul.addr %s244, 4
          %s246 = smul.addr %s245, 8
          %s247 = scalar_lea.vmem %s0, %s246
        $region44: #{_lambda_.6} parent=39 // pred_fallthru
          _
      $region40: #{_lambda_.6} parent=5 // pred_fallthru
        _
      %p248 = scmp.le.s32.totalorder 1, %s14
      %p249 = scmp.lt.s32.totalorder %s14, 3
      %p250 = pnand %p248, %p249
      %p251 = pneg %p250
      // Predicated region
      $region45: #{_lambda_.6} parent=5 // pred_check
        _
      $region46: #{_lambda_.6} parent=5 // pred_check_branch
        %253 = sbr.rel (%p250) target = $region48
      $region47: #{_lambda_.6} parent=5 // pred_region
        %s254 = ssub.s32 %s14, 1
        // Predicated region
        $region49: #{_lambda_.6} parent=47 // pred_check
          %p255 = pneg %p103
        $region50: #{_lambda_.6} parent=47 // pred_check_branch
          %257 = sbr.rel (%p255) target = $region52
        $region51: #{_lambda_.6} parent=47 // pred_region
          %259 = dma.done [#allocation4], 1536
        $region52: #{_lambda_.6} parent=47 // pred_fallthru
          _
        %p260 = scmp.lt.s32.totalorder %s19, 1
        %s261 = scalar_select %p260, %s19, 1
        %s262 = smul.addr %s261, 4
        %s263 = smul.addr %s262, 8
        %s264 = scalar_lea.vmem %s0, %s263
        %p265 = pneg %p40
        %p266 = pneg %p37
        %p267 = pneg %p61
        %p268 = pneg %p58
        %p269 = pneg %p82
        %p270 = pneg %p79
        %p271 = pneg %p103
        %p272 = pneg %p100
        %p273 = pneg %p124
        %p274 = pneg %p121
        %p275 = pneg %p145
        %p276 = pneg %p142
        %p277 = pneg %p166
        %p278 = pneg %p163
        %p279 = pneg %p192
        %p280 = pneg %p189
        %p281 = scmp.lt.s32.totalorder %s19, 1
        %s282 = scalar_select %p281, %s19, 1
        %s283 = smul.addr %s282, 4
        %s284 = smul.addr %s283, 8
        %s285 = scalar_lea.vmem %s7, %s284
        %p286 = scmp.lt.s32.totalorder %s19, 1
        %s287 = scalar_select %p286, %s19, 1
        %s288 = smul.addr %s287, 4
        %s289 = smul.addr %s288, 8
        %s290 = scalar_lea.vmem %s0, %s289
        %p291 = scmp.lt.s32.totalorder %s19, 1
        %s292 = scalar_select %p291, %s19, 1
        %s293 = smul.addr %s292, 4
        %s294 = smul.addr %s293, 8
        %s295 = scalar_lea.vmem %s7, %s294
        %v296 = vld [vmem:[%s290] sm:$0xff]
        %v297 = vld [vmem:[%s290 + $0x8] sm:$0xff]
        %v298 = vld [vmem:[%s290 + $0x10] sm:$0xff]
        %v299 = vld [vmem:[%s290 + $0x18] sm:$0xff]
        %304 = vrot.lane.b32.xlu0 %v296, 1
        %v305 = vpop.permute.xlu0 %304
        %306 = vrot.lane.b32.xlu0 %v297, 1
        %v307 = vpop.permute.xlu0 %306
        %308 = vrot.lane.b32.xlu0 %v298, 1
        %v309 = vpop.permute.xlu0 %308
        %310 = vrot.lane.b32.xlu0 %v299, 1
        %v311 = vpop.permute.xlu0 %310
        %vm316 = vcmask 138248
        %317 = vst.msk [vmem:[#allocation2] sm:$0xff] %vm316, %v305
        %318 = vst.msk [vmem:[#allocation2 + $0x8] sm:$0xff] %vm316, %v307
        %319 = vst.msk [vmem:[#allocation2 + $0x10] sm:$0xff] %vm316, %v309
        %320 = vst.msk [vmem:[#allocation2 + $0x18] sm:$0xff] %vm316, %v311
        %321 = vrot.lane.b32.xlu0 %v296, 127
        %v322 = vpop.permute.xlu0 %321
        %323 = vrot.lane.b32.xlu0 %v297, 127
        %v324 = vpop.permute.xlu0 %323
        %325 = vrot.lane.b32.xlu0 %v298, 127
        %v326 = vpop.permute.xlu0 %325
        %327 = vrot.lane.b32.xlu0 %v299, 127
        %v328 = vpop.permute.xlu0 %327
        %vm333 = vcmask 7168
        %334 = vst.msk [vmem:[#allocation2] sm:$0xff] %vm333, %v322
        %335 = vst.msk [vmem:[#allocation2 + $0x8] sm:$0xff] %vm333, %v324
        %336 = vst.msk [vmem:[#allocation2 + $0x10] sm:$0xff] %vm333, %v326
        %337 = vst.msk [vmem:[#allocation2 + $0x18] sm:$0xff] %vm333, %v328
        %338 = vrot.lane.b32.xlu0 %v296, 3
        %v339 = vpop.permute.xlu0 %338
        %340 = vrot.lane.b32.xlu0 %v297, 3
        %v341 = vpop.permute.xlu0 %340
        %342 = vrot.lane.b32.xlu0 %v298, 3
        %v343 = vpop.permute.xlu0 %342
        %344 = vrot.lane.b32.xlu0 %v299, 3
        %v345 = vpop.permute.xlu0 %344
        %vm350 = vcmask 146568
        %351 = vst.msk [vmem:[#allocation2] sm:$0xff] %vm350, %v339
        %352 = vst.msk [vmem:[#allocation2 + $0x8] sm:$0xff] %vm350, %v341
        %353 = vst.msk [vmem:[#allocation2 + $0x10] sm:$0xff] %vm350, %v343
        %354 = vst.msk [vmem:[#allocation2 + $0x18] sm:$0xff] %vm350, %v345
        %v355 = vld [vmem:[%s2] sm:$0xff]
        %v356 = vld [vmem:[%s2 + $0x8] sm:$0xff]
        %v357 = vld [vmem:[%s2 + $0x10] sm:$0xff]
        %v358 = vld [vmem:[%s2 + $0x18] sm:$0xff]
        %360 = vset.pattern.permute.xlu0 0
        %361 = vperm.xlu0 %360, %v355
        %v362 = vpop.permute.xlu0 %361
        %365 = vset.pattern.permute.xlu0 0
        %366 = vperm.xlu0 %365, %v356
        %v367 = vpop.permute.xlu0 %366
        %370 = vset.pattern.permute.xlu0 0
        %371 = vperm.xlu0 %370, %v357
        %v372 = vpop.permute.xlu0 %371
        %375 = vset.pattern.permute.xlu0 0
        %376 = vperm.xlu0 %375, %v358
        %v377 = vpop.permute.xlu0 %376
        %v379 = vld [vmem:[%s1] sm:$0xff]
        %v380 = vld [vmem:[%s1 + $0x8] sm:$0xff]
        %v381 = vld [vmem:[%s1 + $0x10] sm:$0xff]
        %v382 = vld [vmem:[%s1 + $0x18] sm:$0xff]
        %v383 = vld [vmem:[#allocation2] sm:$0xff]
        %v384 = vld [vmem:[#allocation2 + $0x8] sm:$0xff]
        %v385 = vld [vmem:[#allocation2 + $0x10] sm:$0xff]
        %v386 = vld [vmem:[#allocation2 + $0x18] sm:$0xff]
        %vm387 = vcmask 261120
        %v389 = vsel %vm387, %v379, 0
        %v392 = vsel %vm387, %v380, 0
        %v395 = vsel %vm387, %v381, 0
        %v398 = vsel %vm387, %v382, 0
        %400 = vmatpush.msra.mxu0 0.0
        %401 = vmatpush.msra.mxu0 0.0
        %402 = vmatpush.msra.mxu0 0.0
        %403 = vmatpush.msra.mxu0 0.0
        %404 = vmatpush.msra.mxu0 0.0
        %405 = vmatpush.msra.mxu0 0.0
        %406 = vmatpush.msra.mxu0 0.0
        %407 = vmatpush.msra.mxu0 0.0
        %408 = vmatpush.msra.mxu0 0.0
        %409 = vmatpush.msra.mxu0 0.0
        %410 = vmatpush.msra.mxu0 0.0
        %411 = vmatpush.msra.mxu0 0.0
        %412 = vmatpush.msra.mxu0 %v386
        %413 = vmatpush.msra.mxu0 %v385
        %414 = vmatpush.msra.mxu0 %v384
        %415 = vmatpush.msra.mxu0 %v383
        %416 = vmatmul.f32.gmra.mxu0 %v389
        %v417 = vpop.f32.mrf.mxu0
        %v418 = vadd.f32 0.0, %v417
        %419 = vmatmul.f32.gmra.mxu0 %v392
        %v420 = vpop.f32.mrf.mxu0
        %v421 = vadd.f32 0.0, %v420
        %422 = vmatmul.f32.gmra.mxu0 %v395
        %v423 = vpop.f32.mrf.mxu0
        %v424 = vadd.f32 0.0, %v423
        %425 = vmatmul.f32.gmra.mxu0 %v398
        %v426 = vpop.f32.mrf.mxu0
        %v427 = vadd.f32 0.0, %v426
        %428 = vdwg.mxu0
        %v429 = vadd.f32 %v362, %v418
        %v430 = vadd.f32 %v367, %v421
        %v431 = vadd.f32 %v372, %v424
        %v432 = vadd.f32 %v377, %v427
        %s433 = scalar_lea.vmem %s1, 32
        %v434 = vld [vmem:[%s433] sm:$0xff]
        %v435 = vld [vmem:[%s433 + $0x8] sm:$0xff]
        %v436 = vld [vmem:[%s433 + $0x10] sm:$0xff]
        %v437 = vld [vmem:[%s433 + $0x18] sm:$0xff]
        %442 = vrot.lane.b32.xlu0 %v383, 127
        %v443 = vpop.permute.xlu0 %442
        %444 = vrot.lane.b32.xlu0 %v384, 127
        %v445 = vpop.permute.xlu0 %444
        %446 = vrot.lane.b32.xlu0 %v385, 127
        %v447 = vpop.permute.xlu0 %446
        %448 = vrot.lane.b32.xlu0 %v386, 127
        %v449 = vpop.permute.xlu0 %448
        %v455 = vsel %vm387, %v434, 0
        %v458 = vsel %vm387, %v435, 0
        %v461 = vsel %vm387, %v436, 0
        %v464 = vsel %vm387, %v437, 0
        %466 = vmatpush.msra.mxu0 0.0
        %467 = vmatpush.msra.mxu0 0.0
        %468 = vmatpush.msra.mxu0 0.0
        %469 = vmatpush.msra.mxu0 0.0
        %470 = vmatpush.msra.mxu0 0.0
        %471 = vmatpush.msra.mxu0 0.0
        %472 = vmatpush.msra.mxu0 0.0
        %473 = vmatpush.msra.mxu0 0.0
        %474 = vmatpush.msra.mxu0 0.0
        %475 = vmatpush.msra.mxu0 0.0
        %476 = vmatpush.msra.mxu0 0.0
        %477 = vmatpush.msra.mxu0 0.0
        %478 = vmatpush.msra.mxu0 %v449
        %479 = vmatpush.msra.mxu0 %v447
        %480 = vmatpush.msra.mxu0 %v445
        %481 = vmatpush.msra.mxu0 %v443
        %482 = vmatmul.f32.gmra.mxu0 %v455
        %v483 = vpop.f32.mrf.mxu0
        %v484 = vadd.f32 0.0, %v483
        %485 = vmatmul.f32.gmra.mxu0 %v458
        %v486 = vpop.f32.mrf.mxu0
        %v487 = vadd.f32 0.0, %v486
        %488 = vmatmul.f32.gmra.mxu0 %v461
        %v489 = vpop.f32.mrf.mxu0
        %v490 = vadd.f32 0.0, %v489
        %491 = vmatmul.f32.gmra.mxu0 %v464
        %v492 = vpop.f32.mrf.mxu0
        %v493 = vadd.f32 0.0, %v492
        %494 = vdwg.mxu0
        %v495 = vadd.f32 %v429, %v484
        %v496 = vadd.f32 %v430, %v487
        %v497 = vadd.f32 %v431, %v490
        %v498 = vadd.f32 %v432, %v493
        %s499 = scalar_lea.vmem %s1, 64
        %v500 = vld [vmem:[%s499] sm:$0xff]
        %v501 = vld [vmem:[%s499 + $0x8] sm:$0xff]
        %v502 = vld [vmem:[%s499 + $0x10] sm:$0xff]
        %v503 = vld [vmem:[%s499 + $0x18] sm:$0xff]
        %504 = vrot.lane.b32.xlu0 %v383, 126
        %v505 = vpop.permute.xlu0 %504
        %506 = vrot.lane.b32.xlu0 %v384, 126
        %v507 = vpop.permute.xlu0 %506
        %508 = vrot.lane.b32.xlu0 %v385, 126
        %v509 = vpop.permute.xlu0 %508
        %510 = vrot.lane.b32.xlu0 %v386, 126
        %v511 = vpop.permute.xlu0 %510
        %v517 = vsel %vm387, %v500, 0
        %v520 = vsel %vm387, %v501, 0
        %v523 = vsel %vm387, %v502, 0
        %v526 = vsel %vm387, %v503, 0
        %528 = vmatpush.msra.mxu0 0.0
        %529 = vmatpush.msra.mxu0 0.0
        %530 = vmatpush.msra.mxu0 0.0
        %531 = vmatpush.msra.mxu0 0.0
        %532 = vmatpush.msra.mxu0 0.0
        %533 = vmatpush.msra.mxu0 0.0
        %534 = vmatpush.msra.mxu0 0.0
        %535 = vmatpush.msra.mxu0 0.0
        %536 = vmatpush.msra.mxu0 0.0
        %537 = vmatpush.msra.mxu0 0.0
        %538 = vmatpush.msra.mxu0 0.0
        %539 = vmatpush.msra.mxu0 0.0
        %540 = vmatpush.msra.mxu0 %v511
        %541 = vmatpush.msra.mxu0 %v509
        %542 = vmatpush.msra.mxu0 %v507
        %543 = vmatpush.msra.mxu0 %v505
        %544 = vmatmul.f32.gmra.mxu0 %v517
        %v545 = vpop.f32.mrf.mxu0
        %v546 = vadd.f32 0.0, %v545
        %547 = vmatmul.f32.gmra.mxu0 %v520
        %v548 = vpop.f32.mrf.mxu0
        %v549 = vadd.f32 0.0, %v548
        %550 = vmatmul.f32.gmra.mxu0 %v523
        %v551 = vpop.f32.mrf.mxu0
        %v552 = vadd.f32 0.0, %v551
        %553 = vmatmul.f32.gmra.mxu0 %v526
        %v554 = vpop.f32.mrf.mxu0
        %v555 = vadd.f32 0.0, %v554
        %556 = vdwg.mxu0
        %v557 = vadd.f32 %v495, %v546
        %v558 = vadd.f32 %v496, %v549
        %v559 = vadd.f32 %v497, %v552
        %v560 = vadd.f32 %v498, %v555
        %vm561 = vcmp.ge.f32.partialorder %v557, 0.0
        %vm562 = vcmp.ge.f32.partialorder %v558, 0.0
        %vm563 = vcmp.ge.f32.partialorder %v559, 0.0
        %vm564 = vcmp.ge.f32.partialorder %v560, 0.0
        %v565 = vmul.f32 %v557, 0.01
        %v566 = vmul.f32 %v558, 0.01
        %v567 = vmul.f32 %v559, 0.01
        %v568 = vmul.f32 %v560, 0.01
        %v569 = vsel %vm561, %v557, %v565
        %v570 = vsel %vm562, %v558, %v566
        %v571 = vsel %vm563, %v559, %v567
        %v572 = vsel %vm564, %v560, %v568
        %577 = vrot.lane.b32.xlu0 %v569, 1
        %v578 = vpop.permute.xlu0 %577
        %579 = vrot.lane.b32.xlu0 %v570, 1
        %v580 = vpop.permute.xlu0 %579
        %581 = vrot.lane.b32.xlu0 %v571, 1
        %v582 = vpop.permute.xlu0 %581
        %583 = vrot.lane.b32.xlu0 %v572, 1
        %v584 = vpop.permute.xlu0 %583
        %589 = vst.msk [vmem:[#allocation2] sm:$0xff] %vm316, %v578
        %590 = vst.msk [vmem:[#allocation2 + $0x8] sm:$0xff] %vm316, %v580
        %591 = vst.msk [vmem:[#allocation2 + $0x10] sm:$0xff] %vm316, %v582
        %592 = vst.msk [vmem:[#allocation2 + $0x18] sm:$0xff] %vm316, %v584
        %593 = vrot.lane.b32.xlu0 %v569, 127
        %v594 = vpop.permute.xlu0 %593
        %595 = vrot.lane.b32.xlu0 %v570, 127
        %v596 = vpop.permute.xlu0 %595
        %597 = vrot.lane.b32.xlu0 %v571, 127
        %v598 = vpop.permute.xlu0 %597
        %599 = vrot.lane.b32.xlu0 %v572, 127
        %v600 = vpop.permute.xlu0 %599
        %605 = vst.msk [vmem:[#allocation2] sm:$0xff] %vm333, %v594
        %606 = vst.msk [vmem:[#allocation2 + $0x8] sm:$0xff] %vm333, %v596
        %607 = vst.msk [vmem:[#allocation2 + $0x10] sm:$0xff] %vm333, %v598
        %608 = vst.msk [vmem:[#allocation2 + $0x18] sm:$0xff] %vm333, %v600
        %609 = vrot.lane.b32.xlu0 %v569, 3
        %v610 = vpop.permute.xlu0 %609
        %611 = vrot.lane.b32.xlu0 %v570, 3
        %v612 = vpop.permute.xlu0 %611
        %613 = vrot.lane.b32.xlu0 %v571, 3
        %v614 = vpop.permute.xlu0 %613
        %615 = vrot.lane.b32.xlu0 %v572, 3
        %v616 = vpop.permute.xlu0 %615
        %621 = vst.msk [vmem:[#allocation2] sm:$0xff] %vm350, %v610
        %622 = vst.msk [vmem:[#allocation2 + $0x8] sm:$0xff] %vm350, %v612
        %623 = vst.msk [vmem:[#allocation2 + $0x10] sm:$0xff] %vm350, %v614
        %624 = vst.msk [vmem:[#allocation2 + $0x18] sm:$0xff] %vm350, %v616
        %v625 = vld [vmem:[%s4] sm:$0xff]
        %v626 = vld [vmem:[%s4 + $0x8] sm:$0xff]
        %v627 = vld [vmem:[%s4 + $0x10] sm:$0xff]
        %v628 = vld [vmem:[%s4 + $0x18] sm:$0xff]
        %630 = vset.pattern.permute.xlu0 0
        %631 = vperm.xlu0 %630, %v625
        %v632 = vpop.permute.xlu0 %631
        %635 = vset.pattern.permute.xlu0 0
        %636 = vperm.xlu0 %635, %v626
        %v637 = vpop.permute.xlu0 %636
        %640 = vset.pattern.permute.xlu0 0
        %641 = vperm.xlu0 %640, %v627
        %v642 = vpop.permute.xlu0 %641
        %645 = vset.pattern.permute.xlu0 0
        %646 = vperm.xlu0 %645, %v628
        %v647 = vpop.permute.xlu0 %646
        %v649 = vld [vmem:[#allocation3] sm:$0xff]
        %v650 = vld [vmem:[#allocation3 + $0x8] sm:$0xff]
        %v651 = vld [vmem:[#allocation3 + $0x10] sm:$0xff]
        %v652 = vld [vmem:[#allocation3 + $0x18] sm:$0xff]
        %v653 = vld [vmem:[#allocation2] sm:$0xff]
        %v654 = vld [vmem:[#allocation2 + $0x8] sm:$0xff]
        %v655 = vld [vmem:[#allocation2 + $0x10] sm:$0xff]
        %v656 = vld [vmem:[#allocation2 + $0x18] sm:$0xff]
        %v658 = vsel %vm387, %v649, 0
        %v661 = vsel %vm387, %v650, 0
        %v664 = vsel %vm387, %v651, 0
        %v667 = vsel %vm387, %v652, 0
        %669 = vmatpush.msra.mxu0 0.0
        %670 = vmatpush.msra.mxu0 0.0
        %671 = vmatpush.msra.mxu0 0.0
        %672 = vmatpush.msra.mxu0 0.0
        %673 = vmatpush.msra.mxu0 0.0
        %674 = vmatpush.msra.mxu0 0.0
        %675 = vmatpush.msra.mxu0 0.0
        %676 = vmatpush.msra.mxu0 0.0
        %677 = vmatpush.msra.mxu0 0.0
        %678 = vmatpush.msra.mxu0 0.0
        %679 = vmatpush.msra.mxu0 0.0
        %680 = vmatpush.msra.mxu0 0.0
        %681 = vmatpush.msra.mxu0 %v656
        %682 = vmatpush.msra.mxu0 %v655
        %683 = vmatpush.msra.mxu0 %v654
        %684 = vmatpush.msra.mxu0 %v653
        %685 = vmatmul.f32.gmra.mxu0 %v658
        %v686 = vpop.f32.mrf.mxu0
        %v687 = vadd.f32 0.0, %v686
        %688 = vmatmul.f32.gmra.mxu0 %v661
        %v689 = vpop.f32.mrf.mxu0
        %v690 = vadd.f32 0.0, %v689
        %691 = vmatmul.f32.gmra.mxu0 %v664
        %v692 = vpop.f32.mrf.mxu0
        %v693 = vadd.f32 0.0, %v692
        %694 = vmatmul.f32.gmra.mxu0 %v667
        %v695 = vpop.f32.mrf.mxu0
        %v696 = vadd.f32 0.0, %v695
        %697 = vdwg.mxu0
        %v698 = vadd.f32 %v632, %v687
        %v699 = vadd.f32 %v637, %v690
        %v700 = vadd.f32 %v642, %v693
        %v701 = vadd.f32 %v647, %v696
        %s702 = scalar_lea.vmem [#allocation3], 32
        %v703 = vld [vmem:[%s702] sm:$0xff]
        %v704 = vld [vmem:[%s702 + $0x8] sm:$0xff]
        %v705 = vld [vmem:[%s702 + $0x10] sm:$0xff]
        %v706 = vld [vmem:[%s702 + $0x18] sm:$0xff]
        %711 = vrot.lane.b32.xlu0 %v653, 127
        %v712 = vpop.permute.xlu0 %711
        %713 = vrot.lane.b32.xlu0 %v654, 127
        %v714 = vpop.permute.xlu0 %713
        %715 = vrot.lane.b32.xlu0 %v655, 127
        %v716 = vpop.permute.xlu0 %715
        %717 = vrot.lane.b32.xlu0 %v656, 127
        %v718 = vpop.permute.xlu0 %717
        %v724 = vsel %vm387, %v703, 0
        %v727 = vsel %vm387, %v704, 0
        %v730 = vsel %vm387, %v705, 0
        %v733 = vsel %vm387, %v706, 0
        %735 = vmatpush.msra.mxu0 0.0
        %736 = vmatpush.msra.mxu0 0.0
        %737 = vmatpush.msra.mxu0 0.0
        %738 = vmatpush.msra.mxu0 0.0
        %739 = vmatpush.msra.mxu0 0.0
        %740 = vmatpush.msra.mxu0 0.0
        %741 = vmatpush.msra.mxu0 0.0
        %742 = vmatpush.msra.mxu0 0.0
        %743 = vmatpush.msra.mxu0 0.0
        %744 = vmatpush.msra.mxu0 0.0
        %745 = vmatpush.msra.mxu0 0.0
        %746 = vmatpush.msra.mxu0 0.0
        %747 = vmatpush.msra.mxu0 %v718
        %748 = vmatpush.msra.mxu0 %v716
        %749 = vmatpush.msra.mxu0 %v714
        %750 = vmatpush.msra.mxu0 %v712
        %751 = vmatmul.f32.gmra.mxu0 %v724
        %v752 = vpop.f32.mrf.mxu0
        %v753 = vadd.f32 0.0, %v752
        %754 = vmatmul.f32.gmra.mxu0 %v727
        %v755 = vpop.f32.mrf.mxu0
        %v756 = vadd.f32 0.0, %v755
        %757 = vmatmul.f32.gmra.mxu0 %v730
        %v758 = vpop.f32.mrf.mxu0
        %v759 = vadd.f32 0.0, %v758
        %760 = vmatmul.f32.gmra.mxu0 %v733
        %v761 = vpop.f32.mrf.mxu0
        %v762 = vadd.f32 0.0, %v761
        %763 = vdwg.mxu0
        %v764 = vadd.f32 %v698, %v753
        %v765 = vadd.f32 %v699, %v756
        %v766 = vadd.f32 %v700, %v759
        %v767 = vadd.f32 %v701, %v762
        %s768 = scalar_lea.vmem [#allocation3], 64
        %v769 = vld [vmem:[%s768] sm:$0xff]
        %v770 = vld [vmem:[%s768 + $0x8] sm:$0xff]
        %v771 = vld [vmem:[%s768 + $0x10] sm:$0xff]
        %v772 = vld [vmem:[%s768 + $0x18] sm:$0xff]
        %773 = vrot.lane.b32.xlu0 %v653, 126
        %v774 = vpop.permute.xlu0 %773
        %775 = vrot.lane.b32.xlu0 %v654, 126
        %v776 = vpop.permute.xlu0 %775
        %777 = vrot.lane.b32.xlu0 %v655, 126
        %v778 = vpop.permute.xlu0 %777
        %779 = vrot.lane.b32.xlu0 %v656, 126
        %v780 = vpop.permute.xlu0 %779
        %v786 = vsel %vm387, %v769, 0
        %v789 = vsel %vm387, %v770, 0
        %v792 = vsel %vm387, %v771, 0
        %v795 = vsel %vm387, %v772, 0
        %797 = vmatpush.msra.mxu0 0.0
        %798 = vmatpush.msra.mxu0 0.0
        %799 = vmatpush.msra.mxu0 0.0
        %800 = vmatpush.msra.mxu0 0.0
        %801 = vmatpush.msra.mxu0 0.0
        %802 = vmatpush.msra.mxu0 0.0
        %803 = vmatpush.msra.mxu0 0.0
        %804 = vmatpush.msra.mxu0 0.0
        %805 = vmatpush.msra.mxu0 0.0
        %806 = vmatpush.msra.mxu0 0.0
        %807 = vmatpush.msra.mxu0 0.0
        %808 = vmatpush.msra.mxu0 0.0
        %809 = vmatpush.msra.mxu0 %v780
        %810 = vmatpush.msra.mxu0 %v778
        %811 = vmatpush.msra.mxu0 %v776
        %812 = vmatpush.msra.mxu0 %v774
        %813 = vmatmul.f32.gmra.mxu0 %v786
        %v814 = vpop.f32.mrf.mxu0
        %v815 = vadd.f32 0.0, %v814
        %816 = vmatmul.f32.gmra.mxu0 %v789
        %v817 = vpop.f32.mrf.mxu0
        %v818 = vadd.f32 0.0, %v817
        %819 = vmatmul.f32.gmra.mxu0 %v792
        %v820 = vpop.f32.mrf.mxu0
        %v821 = vadd.f32 0.0, %v820
        %822 = vmatmul.f32.gmra.mxu0 %v795
        %v823 = vpop.f32.mrf.mxu0
        %v824 = vadd.f32 0.0, %v823
        %825 = vdwg.mxu0
        %v826 = vadd.f32 %v764, %v815
        %v827 = vadd.f32 %v765, %v818
        %v828 = vadd.f32 %v766, %v821
        %v829 = vadd.f32 %v767, %v824
        %vm830 = vcmp.ge.f32.partialorder %v826, 0.0
        %vm831 = vcmp.ge.f32.partialorder %v827, 0.0
        %vm832 = vcmp.ge.f32.partialorder %v828, 0.0
        %vm833 = vcmp.ge.f32.partialorder %v829, 0.0
        %v834 = vmul.f32 %v826, 0.01
        %v835 = vmul.f32 %v827, 0.01
        %v836 = vmul.f32 %v828, 0.01
        %v837 = vmul.f32 %v829, 0.01
        %v838 = vsel %vm830, %v826, %v834
        %v839 = vsel %vm831, %v827, %v835
        %v840 = vsel %vm832, %v828, %v836
        %v841 = vsel %vm833, %v829, %v837
        %v842 = vld [vmem:[%s5] sm:$0xff]
        %v843 = vld [vmem:[%s5 + $0x8] sm:$0xff]
        %v844 = vld [vmem:[%s6] sm:$0xff]
        %v845 = vld [vmem:[%s6 + $0x8] sm:$0xff]
        %vm846 = vcmask 130048
        %v847 = vsel %vm846, %v296, 0
        %v849 = vsel %vm846, %v297, 0
        %v851 = vsel %vm846, %v298, 0
        %v853 = vsel %vm846, %v299, 0
        %855 = vmatpush.msra.mxu0 0.0
        %856 = vmatpush.msra.mxu0 0.0
        %857 = vmatpush.msra.mxu0 0.0
        %858 = vmatpush.msra.mxu0 0.0
        %859 = vmatpush.msra.mxu0 0.0
        %860 = vmatpush.msra.mxu0 0.0
        %861 = vmatpush.msra.mxu0 0.0
        %862 = vmatpush.msra.mxu0 0.0
        %863 = vmatpush.msra.mxu0 0.0
        %864 = vmatpush.msra.mxu0 0.0
        %865 = vmatpush.msra.mxu0 0.0
        %866 = vmatpush.msra.mxu0 0.0
        %867 = vmatpush.msra.mxu0 0.0
        %868 = vmatpush.msra.mxu0 0.0
        %869 = vmatpush.msra.mxu0 %v845
        %870 = vmatpush.msra.mxu0 %v844
        %871 = vmatmul.f32.gmra.mxu0 %v847
        %v872 = vpop.f32.mrf.mxu0
        %v873 = vadd.f32 0.0, %v872
        %874 = vmatmul.f32.gmra.mxu0 %v849
        %v875 = vpop.f32.mrf.mxu0
        %v876 = vadd.f32 0.0, %v875
        %877 = vmatmul.f32.gmra.mxu0 %v851
        %v878 = vpop.f32.mrf.mxu0
        %v879 = vadd.f32 0.0, %v878
        %880 = vmatmul.f32.gmra.mxu0 %v853
        %v881 = vpop.f32.mrf.mxu0
        %v882 = vadd.f32 0.0, %v881
        %883 = vdwg.mxu0
        %v885 = vsel %vm846, %v838, 0
        %v888 = vsel %vm846, %v839, 0
        %v891 = vsel %vm846, %v840, 0
        %v894 = vsel %vm846, %v841, 0
        %896 = vmatpush.msra.mxu0 0.0
        %897 = vmatpush.msra.mxu0 0.0
        %898 = vmatpush.msra.mxu0 0.0
        %899 = vmatpush.msra.mxu0 0.0
        %900 = vmatpush.msra.mxu0 0.0
        %901 = vmatpush.msra.mxu0 0.0
        %902 = vmatpush.msra.mxu0 0.0
        %903 = vmatpush.msra.mxu0 0.0
        %904 = vmatpush.msra.mxu0 0.0
        %905 = vmatpush.msra.mxu0 0.0
        %906 = vmatpush.msra.mxu0 0.0
        %907 = vmatpush.msra.mxu0 0.0
        %908 = vmatpush.msra.mxu0 0.0
        %909 = vmatpush.msra.mxu0 0.0
        %910 = vmatpush.msra.mxu0 %v843
        %911 = vmatpush.msra.mxu0 %v842
        %912 = vmatmul.f32.gmra.mxu0 %v885
        %v913 = vpop.f32.mrf.mxu0
        %v914 = vadd.f32 %v873, %v913
        %915 = vmatmul.f32.gmra.mxu0 %v888
        %v916 = vpop.f32.mrf.mxu0
        %v917 = vadd.f32 %v876, %v916
        %918 = vmatmul.f32.gmra.mxu0 %v891
        %v919 = vpop.f32.mrf.mxu0
        %v920 = vadd.f32 %v879, %v919
        %921 = vmatmul.f32.gmra.mxu0 %v894
        %v922 = vpop.f32.mrf.mxu0
        %v923 = vadd.f32 %v882, %v922
        %924 = vdwg.mxu0
        %vm925 = vcmask 64512
        %v926 = vsel %vm925, %v914, 0.0
        %927 = vadd.xlane.f32.xlu0 %v926
        %v928 = vpop.xlane.xlu0 %927
        %v929 = vsel %vm925, %v917, 0.0
        %930 = vadd.xlane.f32.xlu0 %v929
        %v931 = vpop.xlane.xlu0 %930
        %v932 = vsel %vm925, %v920, 0.0
        %933 = vadd.xlane.f32.xlu0 %v932
        %v934 = vpop.xlane.xlu0 %933
        %v935 = vsel %vm925, %v923, 0.0
        %936 = vadd.xlane.f32.xlu0 %v935
        %v937 = vpop.xlane.xlu0 %936
        %v938 = vmul.f32 %v928, 0.125
        %v939 = vmul.f32 %v931, 0.125
        %v940 = vmul.f32 %v934, 0.125
        %v941 = vmul.f32 %v937, 0.125
        %942 = vst.msk [vmem:[%s295] sm:$0xff] %vm333, %v938
        %943 = vst.msk [vmem:[%s295 + $0x8] sm:$0xff] %vm333, %v939
        %944 = vst.msk [vmem:[%s295 + $0x10] sm:$0xff] %vm333, %v940
        %945 = vst.msk [vmem:[%s295 + $0x18] sm:$0xff] %vm333, %v941
        %p946 = scmp.lt.s32.totalorder %s19, 1
        %s947 = scalar_select %p946, %s19, 1
        %s948 = smul.addr %s947, 4
        %s949 = smul.addr %s948, 8
        %s950 = scalar_lea.vmem %s7, %s949
        // Predicated region
        $region53: #{_lambda_.6} parent=47 // pred_check
          %p951 = pneg %p189
        $region54: #{_lambda_.6} parent=47 // pred_check_branch
          %953 = sbr.rel (%p951) target = $region56
        $region55: #{_lambda_.6} parent=47 // pred_region
          _
        $region56: #{_lambda_.6} parent=47 // pred_fallthru
          _
      $region48: #{_lambda_.6} parent=5 // pred_fallthru
        _
      %p954 = scmp.le.s32.totalorder 2, %s14
      // Predicated region
      $region57: #{_lambda_.6} parent=5 // pred_check
        %p955 = pneg %p954
      $region58: #{_lambda_.6} parent=5 // pred_check_branch
        %957 = sbr.rel (%p955) target = $region60
      $region59: #{_lambda_.6} parent=5 // pred_region
        %s958 = ssub.s32 %s14, 2
        // Predicated region
        $region61: #{_lambda_.6} parent=59 // pred_check
          %p959 = pneg %p195
        $region62: #{_lambda_.6} parent=59 // pred_check_branch
          %961 = sbr.rel (%p959) target = $region64
        $region63: #{_lambda_.6} parent=59 // pred_region
          %p962 = scmp.lt.s32.totalorder %s20, 1
          %s963 = scalar_select %p962, %s20, 1
          %s964 = smul.addr %s963, 4
          %s965 = smul.addr %s964, 8
          %s966 = scalar_lea.vmem %s7, %s965
        $region64: #{_lambda_.6} parent=59 // pred_fallthru
          _
      $region60: #{_lambda_.6} parent=5 // pred_fallthru
        _
    $region6: #{_lambda_.6} parent=1 // loop_footer
      %s18 = sadd.s32 1, %s14
    $region7: #{_lambda_.6} parent=1 // loop_footer_branch
      %13 = sbr.rel target = $region3
    $region8: #{_lambda_.6} parent=1 // loop_exit
      _
    %967 = vsyncpa [#allocation4], 1
    %s968 = scalar_lea.sflag [#allocation4], 1
    %969 = vsyncpa %s968, 1

// kernel: _lambda_.5
$region0: #{_lambda_.5}
  #allocation0 [shape = 'u32[]', space=smem, size = 0x4, offset = 0x4, fixed_abs, tag = 'smem constant byte address 0x4 - core index']
  #allocation1 [shape = 'u32[72,128]{1,0:T(1,128)}', space=vmem, size = 0x9000, scoped, tag = 'internal scratch']
  #allocation2 [shape = 'f32[32,18]{1,0:T(8,128)}', space=vmem, size = 0x4000, scoped, tag = 'scratch operand']
  %s0 = inlined_call_operand.vmem [shape: f32[2,32,16], index: 0, kind: input, shape index: {}]
  %s1 = inlined_call_operand.vmem [shape: f32[3,32,32], index: 1, kind: input, shape index: {}]
  %s2 = inlined_call_operand.vmem [shape: f32[32,1], index: 2, kind: input, shape index: {}]
  %s3 = inlined_call_operand.vmem [shape: f32[3,32,32], index: 3, kind: input, shape index: {}]
  %s4 = inlined_call_operand.vmem [shape: f32[32,1], index: 4, kind: input, shape index: {}]
  %s5 = inlined_call_operand.vmem [shape: f32[2,32,16], index: 5, kind: output, shape index: {}]
  %s6 = sld [smem:[#allocation0]]
  $region53: #{_lambda_.5} parent=0
    _
  %s8 = ssub.s32 1, %s6
  %s9 = scalar_select 0, %s8, %s6
  loop: start=0, step=1, limit=4
  $region2: #{_lambda_.5} parent=0 // loop_pre_header
    _
  $region3: #{_lambda_.5} parent=0 // loop_header
    %s11 = sphi 0, %s15
    %p12 = scmp.ge.s32.totalorder %s11, 4
    %s21 = sphi 0, %s23
    %s24 = sphi 0, %s21
    %s25 = sphi 0, %s24
    %s41 = sphi 0, %s25
    %s45 = sphi 0, %s45
    %s47 = sphi 0, %s45
    %s48 = sphi 0, %s47
    %s62 = sphi 0, %s48
    %s66 = sphi 0, %s66
    %s68 = sphi 0, %s66
    %s69 = sphi 0, %s68
    %s83 = sphi 0, %s69
    %s87 = sphi 0, %s87
    %s89 = sphi 0, %s87
    %s90 = sphi 0, %s89
    %s104 = sphi 0, %s90
    %s108 = sphi 0, %s108
    %s110 = sphi 0, %s108
    %s111 = sphi 0, %s110
    %s125 = sphi 0, %s111
    %s131 = sphi 0, %s133
    %s134 = sphi 0, %s131
    %s135 = sphi 0, %s134
    %s151 = sphi 0, %s135
  $region4: #{_lambda_.5} parent=0 // loop_header_branch
    %14 = sbr.rel (%p12) target = $region8
  $region5: #{_lambda_.5} parent=0 // loop_body
    %s16 = ssub.s32 %s11, 1
    %s17 = ssub.s32 %s11, 2
    %s18 = sadd.s32 %s11, 1
    %s19 = ssub.s32 %s11, %s18
    %p20 = scmp.eq.s32.totalorder %s19, 0
    %s22 = sadd.s32 %s21, 1
    %s23 = scalar_select %p20, %s21, %s22
    %p26 = pneg %p20
    %p27 = scmp.eq.s32.totalorder %s11, 1
    %p28 = por %p26, %p27
    %p29 = scmp.ne.s32.totalorder %s21, %s24
    %p30 = scmp.eq.s32.totalorder %s11, 0
    %p31 = por %p29, %p30
    %p32 = scmp.ne.s32.totalorder %s21, %s24
    %p33 = scmp.eq.s32.totalorder %s16, 1
    %p34 = por %p32, %p33
    %p35 = scmp.ne.s32.totalorder %s24, %s25
    %p36 = scmp.eq.s32.totalorder %s16, 0
    %p37 = por %p35, %p36
    %p38 = scmp.ne.s32.totalorder %s24, %s25
    %p39 = scmp.eq.s32.totalorder %s17, 1
    %p40 = por %p38, %p39
    %p42 = scmp.ne.s32.totalorder %s25, %s41
    %p43 = scmp.eq.s32.totalorder %s17, 0
    %p44 = por %p42, %p43
    %s46 = sadd.s32 %s45, 1
    %p49 = scmp.eq.s32.totalorder %s11, 1
    %p50 = scmp.ne.s32.totalorder %s45, %s47
    %p51 = scmp.eq.s32.totalorder %s11, 0
    %p52 = por %p50, %p51
    %p53 = scmp.ne.s32.totalorder %s45, %s47
    %p54 = scmp.eq.s32.totalorder %s16, 1
    %p55 = por %p53, %p54
    %p56 = scmp.ne.s32.totalorder %s47, %s48
    %p57 = scmp.eq.s32.totalorder %s16, 0
    %p58 = por %p56, %p57
    %p59 = scmp.ne.s32.totalorder %s47, %s48
    %p60 = scmp.eq.s32.totalorder %s17, 1
    %p61 = por %p59, %p60
    %p63 = scmp.ne.s32.totalorder %s48, %s62
    %p64 = scmp.eq.s32.totalorder %s17, 0
    %p65 = por %p63, %p64
    %s67 = sadd.s32 %s66, 1
    %p70 = scmp.eq.s32.totalorder %s11, 1
    %p71 = scmp.ne.s32.totalorder %s66, %s68
    %p72 = scmp.eq.s32.totalorder %s11, 0
    %p73 = por %p71, %p72
    %p74 = scmp.ne.s32.totalorder %s66, %s68
    %p75 = scmp.eq.s32.totalorder %s16, 1
    %p76 = por %p74, %p75
    %p77 = scmp.ne.s32.totalorder %s68, %s69
    %p78 = scmp.eq.s32.totalorder %s16, 0
    %p79 = por %p77, %p78
    %p80 = scmp.ne.s32.totalorder %s68, %s69
    %p81 = scmp.eq.s32.totalorder %s17, 1
    %p82 = por %p80, %p81
    %p84 = scmp.ne.s32.totalorder %s69, %s83
    %p85 = scmp.eq.s32.totalorder %s17, 0
    %p86 = por %p84, %p85
    %s88 = sadd.s32 %s87, 1
    %p91 = scmp.eq.s32.totalorder %s11, 1
    %p92 = scmp.ne.s32.totalorder %s87, %s89
    %p93 = scmp.eq.s32.totalorder %s11, 0
    %p94 = por %p92, %p93
    %p95 = scmp.ne.s32.totalorder %s87, %s89
    %p96 = scmp.eq.s32.totalorder %s16, 1
    %p97 = por %p95, %p96
    %p98 = scmp.ne.s32.totalorder %s89, %s90
    %p99 = scmp.eq.s32.totalorder %s16, 0
    %p100 = por %p98, %p99
    %p101 = scmp.ne.s32.totalorder %s89, %s90
    %p102 = scmp.eq.s32.totalorder %s17, 1
    %p103 = por %p101, %p102
    %p105 = scmp.ne.s32.totalorder %s90, %s104
    %p106 = scmp.eq.s32.totalorder %s17, 0
    %p107 = por %p105, %p106
    %s109 = sadd.s32 %s108, 1
    %p112 = scmp.eq.s32.totalorder %s11, 1
    %p113 = scmp.ne.s32.totalorder %s108, %s110
    %p114 = scmp.eq.s32.totalorder %s11, 0
    %p115 = por %p113, %p114
    %p116 = scmp.ne.s32.totalorder %s108, %s110
    %p117 = scmp.eq.s32.totalorder %s16, 1
    %p118 = por %p116, %p117
    %p119 = scmp.ne.s32.totalorder %s110, %s111
    %p120 = scmp.eq.s32.totalorder %s16, 0
    %p121 = por %p119, %p120
    %p122 = scmp.ne.s32.totalorder %s110, %s111
    %p123 = scmp.eq.s32.totalorder %s17, 1
    %p124 = por %p122, %p123
    %p126 = scmp.ne.s32.totalorder %s111, %s125
    %p127 = scmp.eq.s32.totalorder %s17, 0
    %p128 = por %p126, %p127
    %s129 = ssub.s32 %s11, %s18
    %p130 = scmp.eq.s32.totalorder %s129, 0
    %s132 = sadd.s32 %s131, 1
    %s133 = scalar_select %p130, %s131, %s132
    %p136 = pneg %p130
    %p137 = scmp.eq.s32.totalorder %s11, 1
    %p138 = por %p136, %p137
    %p139 = scmp.ne.s32.totalorder %s131, %s134
    %p140 = scmp.eq.s32.totalorder %s11, 0
    %p141 = por %p139, %p140
    %p142 = scmp.ne.s32.totalorder %s131, %s134
    %p143 = scmp.eq.s32.totalorder %s16, 1
    %p144 = por %p142, %p143
    %p145 = scmp.ne.s32.totalorder %s134, %s135
    %p146 = scmp.eq.s32.totalorder %s16, 0
    %p147 = por %p145, %p146
    %p148 = scmp.ne.s32.totalorder %s134, %s135
    %p149 = scmp.eq.s32.totalorder %s17, 1
    %p150 = por %p148, %p149
    %p152 = scmp.ne.s32.totalorder %s135, %s151
    %p153 = scmp.eq.s32.totalorder %s17, 0
    %p154 = por %p152, %p153
    %p155 = scmp.le.s32.totalorder 1, %s11
    %p156 = scmp.lt.s32.totalorder %s11, 3
    %p157 = pnand %p155, %p156
    %p158 = pneg %p157
    // Predicated region
    $region9: #{_lambda_.5} parent=5 // pred_check
      _
    $region10: #{_lambda_.5} parent=5 // pred_check_branch
      %160 = sbr.rel (%p157) target = $region12
    $region11: #{_lambda_.5} parent=5 // pred_region
      %s161 = ssub.s32 %s11, 1
      // Predicated region
      $region13: #{_lambda_.5} parent=11 // pred_check
        %p162 = pneg %p58
      $region14: #{_lambda_.5} parent=11 // pred_check_branch
        %164 = sbr.rel (%p162) target = $region16
      $region15: #{_lambda_.5} parent=11 // pred_region
        _
      $region16: #{_lambda_.5} parent=11 // pred_fallthru
        _
      // Predicated region
      $region17: #{_lambda_.5} parent=11 // pred_check
        %p165 = pneg %p79
      $region18: #{_lambda_.5} parent=11 // pred_check_branch
        %167 = sbr.rel (%p165) target = $region20
      $region19: #{_lambda_.5} parent=11 // pred_region
        _
      $region20: #{_lambda_.5} parent=11 // pred_fallthru
        _
      // Predicated region
      $region21: #{_lambda_.5} parent=11 // pred_check
        %p168 = pneg %p100
      $region22: #{_lambda_.5} parent=11 // pred_check_branch
        %170 = sbr.rel (%p168) target = $region24
      $region23: #{_lambda_.5} parent=11 // pred_region
        _
      $region24: #{_lambda_.5} parent=11 // pred_fallthru
        _
      // Predicated region
      $region25: #{_lambda_.5} parent=11 // pred_check
        %p171 = pneg %p121
      $region26: #{_lambda_.5} parent=11 // pred_check_branch
        %173 = sbr.rel (%p171) target = $region28
      $region27: #{_lambda_.5} parent=11 // pred_region
        _
      $region28: #{_lambda_.5} parent=11 // pred_fallthru
        _
    $region12: #{_lambda_.5} parent=5 // pred_fallthru
      _
    %p174 = scmp.lt.s32.totalorder %s11, 2
    // Predicated region
    $region29: #{_lambda_.5} parent=5 // pred_check
      %p175 = pneg %p174
    $region30: #{_lambda_.5} parent=5 // pred_check_branch
      %177 = sbr.rel (%p175) target = $region32
    $region31: #{_lambda_.5} parent=5 // pred_region
      // Predicated region
      $region33: #{_lambda_.5} parent=31 // pred_check
        %p178 = pneg %p31
      $region34: #{_lambda_.5} parent=31 // pred_check_branch
        %180 = sbr.rel (%p178) target = $region36
      $region35: #{_lambda_.5} parent=31 // pred_region
        %p181 = scmp.lt.s32.totalorder %s11, 1
        %s182 = scalar_select %p181, %s11, 1
        %s183 = smul.addr %s182, 4
        %s184 = smul.addr %s183, 8
        %s185 = scalar_lea.vmem %s0, %s184
      $region36: #{_lambda_.5} parent=31 // pred_fallthru
        _
    $region32: #{_lambda_.5} parent=5 // pred_fallthru
      _
    %p186 = scmp.le.s32.totalorder 1, %s11
    %p187 = scmp.lt.s32.totalorder %s11, 3
    %p188 = pnand %p186, %p187
    %p189 = pneg %p188
    // Predicated region
    $region37: #{_lambda_.5} parent=5 // pred_check
      _
    $region38: #{_lambda_.5} parent=5 // pred_check_branch
      %191 = sbr.rel (%p188) target = $region40
    $region39: #{_lambda_.5} parent=5 // pred_region
      %s192 = ssub.s32 %s11, 1
      %p193 = scmp.lt.s32.totalorder %s16, 1
      %s194 = scalar_select %p193, %s16, 1
      %s195 = smul.addr %s194, 4
      %s196 = smul.addr %s195, 8
      %s197 = scalar_lea.vmem %s0, %s196
      %p198 = pneg %p37
      %p199 = pneg %p34
      %p200 = pneg %p58
      %p201 = pneg %p55
      %p202 = pneg %p79
      %p203 = pneg %p76
      %p204 = pneg %p100
      %p205 = pneg %p97
      %p206 = pneg %p121
      %p207 = pneg %p118
      %p208 = pneg %p147
      %p209 = pneg %p144
      %p210 = scmp.lt.s32.totalorder %s16, 1
      %s211 = scalar_select %p210, %s16, 1
      %s212 = smul.addr %s211, 4
      %s213 = smul.addr %s212, 8
      %s214 = scalar_lea.vmem %s5, %s213
      %p215 = scmp.lt.s32.totalorder %s16, 1
      %s216 = scalar_select %p215, %s16, 1
      %s217 = smul.addr %s216, 4
      %s218 = smul.addr %s217, 8
      %s219 = scalar_lea.vmem %s0, %s218
      %p220 = scmp.lt.s32.totalorder %s16, 1
      %s221 = scalar_select %p220, %s16, 1
      %s222 = smul.addr %s221, 4
      %s223 = smul.addr %s222, 8
      %s224 = scalar_lea.vmem %s5, %s223
      %v225 = vld [vmem:[%s219] sm:$0xff]
      %v226 = vld [vmem:[%s219 + $0x8] sm:$0xff]
      %v227 = vld [vmem:[%s219 + $0x10] sm:$0xff]
      %v228 = vld [vmem:[%s219 + $0x18] sm:$0xff]
      %233 = vrot.lane.b32.xlu0 %v225, 1
      %v234 = vpop.permute.xlu0 %233
      %235 = vrot.lane.b32.xlu0 %v226, 1
      %v236 = vpop.permute.xlu0 %235
      %237 = vrot.lane.b32.xlu0 %v227, 1
      %v238 = vpop.permute.xlu0 %237
      %239 = vrot.lane.b32.xlu0 %v228, 1
      %v240 = vpop.permute.xlu0 %239
      %vm245 = vcmask 138248
      %246 = vst.msk [vmem:[#allocation2] sm:$0xff] %vm245, %v234
      %247 = vst.msk [vmem:[#allocation2 + $0x8] sm:$0xff] %vm245, %v236
      %248 = vst.msk [vmem:[#allocation2 + $0x10] sm:$0xff] %vm245, %v238
      %249 = vst.msk [vmem:[#allocation2 + $0x18] sm:$0xff] %vm245, %v240
      %250 = vrot.lane.b32.xlu0 %v225, 127
      %v251 = vpop.permute.xlu0 %250
      %252 = vrot.lane.b32.xlu0 %v226, 127
      %v253 = vpop.permute.xlu0 %252
      %254 = vrot.lane.b32.xlu0 %v227, 127
      %v255 = vpop.permute.xlu0 %254
      %256 = vrot.lane.b32.xlu0 %v228, 127
      %v257 = vpop.permute.xlu0 %256
      %vm262 = vcmask 7168
      %263 = vst.msk [vmem:[#allocation2] sm:$0xff] %vm262, %v251
      %264 = vst.msk [vmem:[#allocation2 + $0x8] sm:$0xff] %vm262, %v253
      %265 = vst.msk [vmem:[#allocation2 + $0x10] sm:$0xff] %vm262, %v255
      %266 = vst.msk [vmem:[#allocation2 + $0x18] sm:$0xff] %vm262, %v257
      %267 = vrot.lane.b32.xlu0 %v225, 3
      %v268 = vpop.permute.xlu0 %267
      %269 = vrot.lane.b32.xlu0 %v226, 3
      %v270 = vpop.permute.xlu0 %269
      %271 = vrot.lane.b32.xlu0 %v227, 3
      %v272 = vpop.permute.xlu0 %271
      %273 = vrot.lane.b32.xlu0 %v228, 3
      %v274 = vpop.permute.xlu0 %273
      %vm279 = vcmask 146568
      %280 = vst.msk [vmem:[#allocation2] sm:$0xff] %vm279, %v268
      %281 = vst.msk [vmem:[#allocation2 + $0x8] sm:$0xff] %vm279, %v270
      %282 = vst.msk [vmem:[#allocation2 + $0x10] sm:$0xff] %vm279, %v272
      %283 = vst.msk [vmem:[#allocation2 + $0x18] sm:$0xff] %vm279, %v274
      %v284 = vld [vmem:[%s2] sm:$0xff]
      %v285 = vld [vmem:[%s2 + $0x8] sm:$0xff]
      %v286 = vld [vmem:[%s2 + $0x10] sm:$0xff]
      %v287 = vld [vmem:[%s2 + $0x18] sm:$0xff]
      %289 = vset.pattern.permute.xlu0 0
      %290 = vperm.xlu0 %289, %v284
      %v291 = vpop.permute.xlu0 %290
      %294 = vset.pattern.permute.xlu0 0
      %295 = vperm.xlu0 %294, %v285
      %v296 = vpop.permute.xlu0 %295
      %299 = vset.pattern.permute.xlu0 0
      %300 = vperm.xlu0 %299, %v286
      %v301 = vpop.permute.xlu0 %300
      %304 = vset.pattern.permute.xlu0 0
      %305 = vperm.xlu0 %304, %v287
      %v306 = vpop.permute.xlu0 %305
      %v308 = vld [vmem:[%s1] sm:$0xff]
      %v309 = vld [vmem:[%s1 + $0x8] sm:$0xff]
      %v310 = vld [vmem:[%s1 + $0x10] sm:$0xff]
      %v311 = vld [vmem:[%s1 + $0x18] sm:$0xff]
      %v312 = vld [vmem:[#allocation2] sm:$0xff]
      %v313 = vld [vmem:[#allocation2 + $0x8] sm:$0xff]
      %v314 = vld [vmem:[#allocation2 + $0x10] sm:$0xff]
      %v315 = vld [vmem:[#allocation2 + $0x18] sm:$0xff]
      %vm316 = vcmask 261120
      %v318 = vsel %vm316, %v308, 0
      %v321 = vsel %vm316, %v309, 0
      %v324 = vsel %vm316, %v310, 0
      %v327 = vsel %vm316, %v311, 0
      %329 = vmatpush.msra.mxu0 0.0
      %330 = vmatpush.msra.mxu0 0.0
      %331 = vmatpush.msra.mxu0 0.0
      %332 = vmatpush.msra.mxu0 0.0
      %333 = vmatpush.msra.mxu0 0.0
      %334 = vmatpush.msra.mxu0 0.0
      %335 = vmatpush.msra.mxu0 0.0
      %336 = vmatpush.msra.mxu0 0.0
      %337 = vmatpush.msra.mxu0 0.0
      %338 = vmatpush.msra.mxu0 0.0
      %339 = vmatpush.msra.mxu0 0.0
      %340 = vmatpush.msra.mxu0 0.0
      %341 = vmatpush.msra.mxu0 %v315
      %342 = vmatpush.msra.mxu0 %v314
      %343 = vmatpush.msra.mxu0 %v313
      %344 = vmatpush.msra.mxu0 %v312
      %345 = vmatmul.f32.gmra.mxu0 %v318
      %v346 = vpop.f32.mrf.mxu0
      %v347 = vadd.f32 0.0, %v346
      %348 = vmatmul.f32.gmra.mxu0 %v321
      %v349 = vpop.f32.mrf.mxu0
      %v350 = vadd.f32 0.0, %v349
      %351 = vmatmul.f32.gmra.mxu0 %v324
      %v352 = vpop.f32.mrf.mxu0
      %v353 = vadd.f32 0.0, %v352
      %354 = vmatmul.f32.gmra.mxu0 %v327
      %v355 = vpop.f32.mrf.mxu0
      %v356 = vadd.f32 0.0, %v355
      %357 = vdwg.mxu0
      %v358 = vadd.f32 %v291, %v347
      %v359 = vadd.f32 %v296, %v350
      %v360 = vadd.f32 %v301, %v353
      %v361 = vadd.f32 %v306, %v356
      %s362 = scalar_lea.vmem %s1, 32
      %v363 = vld [vmem:[%s362] sm:$0xff]
      %v364 = vld [vmem:[%s362 + $0x8] sm:$0xff]
      %v365 = vld [vmem:[%s362 + $0x10] sm:$0xff]
      %v366 = vld [vmem:[%s362 + $0x18] sm:$0xff]
      %371 = vrot.lane.b32.xlu0 %v312, 127
      %v372 = vpop.permute.xlu0 %371
      %373 = vrot.lane.b32.xlu0 %v313, 127
      %v374 = vpop.permute.xlu0 %373
      %375 = vrot.lane.b32.xlu0 %v314, 127
      %v376 = vpop.permute.xlu0 %375
      %377 = vrot.lane.b32.xlu0 %v315, 127
      %v378 = vpop.permute.xlu0 %377
      %v384 = vsel %vm316, %v363, 0
      %v387 = vsel %vm316, %v364, 0
      %v390 = vsel %vm316, %v365, 0
      %v393 = vsel %vm316, %v366, 0
      %395 = vmatpush.msra.mxu0 0.0
      %396 = vmatpush.msra.mxu0 0.0
      %397 = vmatpush.msra.mxu0 0.0
      %398 = vmatpush.msra.mxu0 0.0
      %399 = vmatpush.msra.mxu0 0.0
      %400 = vmatpush.msra.mxu0 0.0
      %401 = vmatpush.msra.mxu0 0.0
      %402 = vmatpush.msra.mxu0 0.0
      %403 = vmatpush.msra.mxu0 0.0
      %404 = vmatpush.msra.mxu0 0.0
      %405 = vmatpush.msra.mxu0 0.0
      %406 = vmatpush.msra.mxu0 0.0
      %407 = vmatpush.msra.mxu0 %v378
      %408 = vmatpush.msra.mxu0 %v376
      %409 = vmatpush.msra.mxu0 %v374
      %410 = vmatpush.msra.mxu0 %v372
      %411 = vmatmul.f32.gmra.mxu0 %v384
      %v412 = vpop.f32.mrf.mxu0
      %v413 = vadd.f32 0.0, %v412
      %414 = vmatmul.f32.gmra.mxu0 %v387
      %v415 = vpop.f32.mrf.mxu0
      %v416 = vadd.f32 0.0, %v415
      %417 = vmatmul.f32.gmra.mxu0 %v390
      %v418 = vpop.f32.mrf.mxu0
      %v419 = vadd.f32 0.0, %v418
      %420 = vmatmul.f32.gmra.mxu0 %v393
      %v421 = vpop.f32.mrf.mxu0
      %v422 = vadd.f32 0.0, %v421
      %423 = vdwg.mxu0
      %v424 = vadd.f32 %v358, %v413
      %v425 = vadd.f32 %v359, %v416
      %v426 = vadd.f32 %v360, %v419
      %v427 = vadd.f32 %v361, %v422
      %s428 = scalar_lea.vmem %s1, 64
      %v429 = vld [vmem:[%s428] sm:$0xff]
      %v430 = vld [vmem:[%s428 + $0x8] sm:$0xff]
      %v431 = vld [vmem:[%s428 + $0x10] sm:$0xff]
      %v432 = vld [vmem:[%s428 + $0x18] sm:$0xff]
      %433 = vrot.lane.b32.xlu0 %v312, 126
      %v434 = vpop.permute.xlu0 %433
      %435 = vrot.lane.b32.xlu0 %v313, 126
      %v436 = vpop.permute.xlu0 %435
      %437 = vrot.lane.b32.xlu0 %v314, 126
      %v438 = vpop.permute.xlu0 %437
      %439 = vrot.lane.b32.xlu0 %v315, 126
      %v440 = vpop.permute.xlu0 %439
      %v446 = vsel %vm316, %v429, 0
      %v449 = vsel %vm316, %v430, 0
      %v452 = vsel %vm316, %v431, 0
      %v455 = vsel %vm316, %v432, 0
      %457 = vmatpush.msra.mxu0 0.0
      %458 = vmatpush.msra.mxu0 0.0
      %459 = vmatpush.msra.mxu0 0.0
      %460 = vmatpush.msra.mxu0 0.0
      %461 = vmatpush.msra.mxu0 0.0
      %462 = vmatpush.msra.mxu0 0.0
      %463 = vmatpush.msra.mxu0 0.0
      %464 = vmatpush.msra.mxu0 0.0
      %465 = vmatpush.msra.mxu0 0.0
      %466 = vmatpush.msra.mxu0 0.0
      %467 = vmatpush.msra.mxu0 0.0
      %468 = vmatpush.msra.mxu0 0.0
      %469 = vmatpush.msra.mxu0 %v440
      %470 = vmatpush.msra.mxu0 %v438
      %471 = vmatpush.msra.mxu0 %v436
      %472 = vmatpush.msra.mxu0 %v434
      %473 = vmatmul.f32.gmra.mxu0 %v446
      %v474 = vpop.f32.mrf.mxu0
      %v475 = vadd.f32 0.0, %v474
      %476 = vmatmul.f32.gmra.mxu0 %v449
      %v477 = vpop.f32.mrf.mxu0
      %v478 = vadd.f32 0.0, %v477
      %479 = vmatmul.f32.gmra.mxu0 %v452
      %v480 = vpop.f32.mrf.mxu0
      %v481 = vadd.f32 0.0, %v480
      %482 = vmatmul.f32.gmra.mxu0 %v455
      %v483 = vpop.f32.mrf.mxu0
      %v484 = vadd.f32 0.0, %v483
      %485 = vdwg.mxu0
      %v486 = vadd.f32 %v424, %v475
      %v487 = vadd.f32 %v425, %v478
      %v488 = vadd.f32 %v426, %v481
      %v489 = vadd.f32 %v427, %v484
      %vm490 = vcmp.ge.f32.partialorder %v486, 0.0
      %vm491 = vcmp.ge.f32.partialorder %v487, 0.0
      %vm492 = vcmp.ge.f32.partialorder %v488, 0.0
      %vm493 = vcmp.ge.f32.partialorder %v489, 0.0
      %v494 = vmul.f32 %v486, 0.01
      %v495 = vmul.f32 %v487, 0.01
      %v496 = vmul.f32 %v488, 0.01
      %v497 = vmul.f32 %v489, 0.01
      %v498 = vsel %vm490, %v486, %v494
      %v499 = vsel %vm491, %v487, %v495
      %v500 = vsel %vm492, %v488, %v496
      %v501 = vsel %vm493, %v489, %v497
      %506 = vrot.lane.b32.xlu0 %v498, 1
      %v507 = vpop.permute.xlu0 %506
      %508 = vrot.lane.b32.xlu0 %v499, 1
      %v509 = vpop.permute.xlu0 %508
      %510 = vrot.lane.b32.xlu0 %v500, 1
      %v511 = vpop.permute.xlu0 %510
      %512 = vrot.lane.b32.xlu0 %v501, 1
      %v513 = vpop.permute.xlu0 %512
      %518 = vst.msk [vmem:[#allocation2] sm:$0xff] %vm245, %v507
      %519 = vst.msk [vmem:[#allocation2 + $0x8] sm:$0xff] %vm245, %v509
      %520 = vst.msk [vmem:[#allocation2 + $0x10] sm:$0xff] %vm245, %v511
      %521 = vst.msk [vmem:[#allocation2 + $0x18] sm:$0xff] %vm245, %v513
      %522 = vrot.lane.b32.xlu0 %v498, 127
      %v523 = vpop.permute.xlu0 %522
      %524 = vrot.lane.b32.xlu0 %v499, 127
      %v525 = vpop.permute.xlu0 %524
      %526 = vrot.lane.b32.xlu0 %v500, 127
      %v527 = vpop.permute.xlu0 %526
      %528 = vrot.lane.b32.xlu0 %v501, 127
      %v529 = vpop.permute.xlu0 %528
      %534 = vst.msk [vmem:[#allocation2] sm:$0xff] %vm262, %v523
      %535 = vst.msk [vmem:[#allocation2 + $0x8] sm:$0xff] %vm262, %v525
      %536 = vst.msk [vmem:[#allocation2 + $0x10] sm:$0xff] %vm262, %v527
      %537 = vst.msk [vmem:[#allocation2 + $0x18] sm:$0xff] %vm262, %v529
      %538 = vrot.lane.b32.xlu0 %v498, 3
      %v539 = vpop.permute.xlu0 %538
      %540 = vrot.lane.b32.xlu0 %v499, 3
      %v541 = vpop.permute.xlu0 %540
      %542 = vrot.lane.b32.xlu0 %v500, 3
      %v543 = vpop.permute.xlu0 %542
      %544 = vrot.lane.b32.xlu0 %v501, 3
      %v545 = vpop.permute.xlu0 %544
      %550 = vst.msk [vmem:[#allocation2] sm:$0xff] %vm279, %v539
      %551 = vst.msk [vmem:[#allocation2 + $0x8] sm:$0xff] %vm279, %v541
      %552 = vst.msk [vmem:[#allocation2 + $0x10] sm:$0xff] %vm279, %v543
      %553 = vst.msk [vmem:[#allocation2 + $0x18] sm:$0xff] %vm279, %v545
      %v554 = vld [vmem:[%s4] sm:$0xff]
      %v555 = vld [vmem:[%s4 + $0x8] sm:$0xff]
      %v556 = vld [vmem:[%s4 + $0x10] sm:$0xff]
      %v557 = vld [vmem:[%s4 + $0x18] sm:$0xff]
      %559 = vset.pattern.permute.xlu0 0
      %560 = vperm.xlu0 %559, %v554
      %v561 = vpop.permute.xlu0 %560
      %564 = vset.pattern.permute.xlu0 0
      %565 = vperm.xlu0 %564, %v555
      %v566 = vpop.permute.xlu0 %565
      %569 = vset.pattern.permute.xlu0 0
      %570 = vperm.xlu0 %569, %v556
      %v571 = vpop.permute.xlu0 %570
      %574 = vset.pattern.permute.xlu0 0
      %575 = vperm.xlu0 %574, %v557
      %v576 = vpop.permute.xlu0 %575
      %v578 = vld [vmem:[%s3] sm:$0xff]
      %v579 = vld [vmem:[%s3 + $0x8] sm:$0xff]
      %v580 = vld [vmem:[%s3 + $0x10] sm:$0xff]
      %v581 = vld [vmem:[%s3 + $0x18] sm:$0xff]
      %v582 = vld [vmem:[#allocation2] sm:$0xff]
      %v583 = vld [vmem:[#allocation2 + $0x8] sm:$0xff]
      %v584 = vld [vmem:[#allocation2 + $0x10] sm:$0xff]
      %v585 = vld [vmem:[#allocation2 + $0x18] sm:$0xff]
      %v587 = vsel %vm316, %v578, 0
      %v590 = vsel %vm316, %v579, 0
      %v593 = vsel %vm316, %v580, 0
      %v596 = vsel %vm316, %v581, 0
      %598 = vmatpush.msra.mxu0 0.0
      %599 = vmatpush.msra.mxu0 0.0
      %600 = vmatpush.msra.mxu0 0.0
      %601 = vmatpush.msra.mxu0 0.0
      %602 = vmatpush.msra.mxu0 0.0
      %603 = vmatpush.msra.mxu0 0.0
      %604 = vmatpush.msra.mxu0 0.0
      %605 = vmatpush.msra.mxu0 0.0
      %606 = vmatpush.msra.mxu0 0.0
      %607 = vmatpush.msra.mxu0 0.0
      %608 = vmatpush.msra.mxu0 0.0
      %609 = vmatpush.msra.mxu0 0.0
      %610 = vmatpush.msra.mxu0 %v585
      %611 = vmatpush.msra.mxu0 %v584
      %612 = vmatpush.msra.mxu0 %v583
      %613 = vmatpush.msra.mxu0 %v582
      %614 = vmatmul.f32.gmra.mxu0 %v587
      %v615 = vpop.f32.mrf.mxu0
      %v616 = vadd.f32 0.0, %v615
      %617 = vmatmul.f32.gmra.mxu0 %v590
      %v618 = vpop.f32.mrf.mxu0
      %v619 = vadd.f32 0.0, %v618
      %620 = vmatmul.f32.gmra.mxu0 %v593
      %v621 = vpop.f32.mrf.mxu0
      %v622 = vadd.f32 0.0, %v621
      %623 = vmatmul.f32.gmra.mxu0 %v596
      %v624 = vpop.f32.mrf.mxu0
      %v625 = vadd.f32 0.0, %v624
      %626 = vdwg.mxu0
      %v627 = vadd.f32 %v561, %v616
      %v628 = vadd.f32 %v566, %v619
      %v629 = vadd.f32 %v571, %v622
      %v630 = vadd.f32 %v576, %v625
      %s631 = scalar_lea.vmem %s3, 32
      %v632 = vld [vmem:[%s631] sm:$0xff]
      %v633 = vld [vmem:[%s631 + $0x8] sm:$0xff]
      %v634 = vld [vmem:[%s631 + $0x10] sm:$0xff]
      %v635 = vld [vmem:[%s631 + $0x18] sm:$0xff]
      %640 = vrot.lane.b32.xlu0 %v582, 127
      %v641 = vpop.permute.xlu0 %640
      %642 = vrot.lane.b32.xlu0 %v583, 127
      %v643 = vpop.permute.xlu0 %642
      %644 = vrot.lane.b32.xlu0 %v584, 127
      %v645 = vpop.permute.xlu0 %644
      %646 = vrot.lane.b32.xlu0 %v585, 127
      %v647 = vpop.permute.xlu0 %646
      %v653 = vsel %vm316, %v632, 0
      %v656 = vsel %vm316, %v633, 0
      %v659 = vsel %vm316, %v634, 0
      %v662 = vsel %vm316, %v635, 0
      %664 = vmatpush.msra.mxu0 0.0
      %665 = vmatpush.msra.mxu0 0.0
      %666 = vmatpush.msra.mxu0 0.0
      %667 = vmatpush.msra.mxu0 0.0
      %668 = vmatpush.msra.mxu0 0.0
      %669 = vmatpush.msra.mxu0 0.0
      %670 = vmatpush.msra.mxu0 0.0
      %671 = vmatpush.msra.mxu0 0.0
      %672 = vmatpush.msra.mxu0 0.0
      %673 = vmatpush.msra.mxu0 0.0
      %674 = vmatpush.msra.mxu0 0.0
      %675 = vmatpush.msra.mxu0 0.0
      %676 = vmatpush.msra.mxu0 %v647
      %677 = vmatpush.msra.mxu0 %v645
      %678 = vmatpush.msra.mxu0 %v643
      %679 = vmatpush.msra.mxu0 %v641
      %680 = vmatmul.f32.gmra.mxu0 %v653
      %v681 = vpop.f32.mrf.mxu0
      %v682 = vadd.f32 0.0, %v681
      %683 = vmatmul.f32.gmra.mxu0 %v656
      %v684 = vpop.f32.mrf.mxu0
      %v685 = vadd.f32 0.0, %v684
      %686 = vmatmul.f32.gmra.mxu0 %v659
      %v687 = vpop.f32.mrf.mxu0
      %v688 = vadd.f32 0.0, %v687
      %689 = vmatmul.f32.gmra.mxu0 %v662
      %v690 = vpop.f32.mrf.mxu0
      %v691 = vadd.f32 0.0, %v690
      %692 = vdwg.mxu0
      %v693 = vadd.f32 %v627, %v682
      %v694 = vadd.f32 %v628, %v685
      %v695 = vadd.f32 %v629, %v688
      %v696 = vadd.f32 %v630, %v691
      %s697 = scalar_lea.vmem %s3, 64
      %v698 = vld [vmem:[%s697] sm:$0xff]
      %v699 = vld [vmem:[%s697 + $0x8] sm:$0xff]
      %v700 = vld [vmem:[%s697 + $0x10] sm:$0xff]
      %v701 = vld [vmem:[%s697 + $0x18] sm:$0xff]
      %702 = vrot.lane.b32.xlu0 %v582, 126
      %v703 = vpop.permute.xlu0 %702
      %704 = vrot.lane.b32.xlu0 %v583, 126
      %v705 = vpop.permute.xlu0 %704
      %706 = vrot.lane.b32.xlu0 %v584, 126
      %v707 = vpop.permute.xlu0 %706
      %708 = vrot.lane.b32.xlu0 %v585, 126
      %v709 = vpop.permute.xlu0 %708
      %v715 = vsel %vm316, %v698, 0
      %v718 = vsel %vm316, %v699, 0
      %v721 = vsel %vm316, %v700, 0
      %v724 = vsel %vm316, %v701, 0
      %726 = vmatpush.msra.mxu0 0.0
      %727 = vmatpush.msra.mxu0 0.0
      %728 = vmatpush.msra.mxu0 0.0
      %729 = vmatpush.msra.mxu0 0.0
      %730 = vmatpush.msra.mxu0 0.0
      %731 = vmatpush.msra.mxu0 0.0
      %732 = vmatpush.msra.mxu0 0.0
      %733 = vmatpush.msra.mxu0 0.0
      %734 = vmatpush.msra.mxu0 0.0
      %735 = vmatpush.msra.mxu0 0.0
      %736 = vmatpush.msra.mxu0 0.0
      %737 = vmatpush.msra.mxu0 0.0
      %738 = vmatpush.msra.mxu0 %v709
      %739 = vmatpush.msra.mxu0 %v707
      %740 = vmatpush.msra.mxu0 %v705
      %741 = vmatpush.msra.mxu0 %v703
      %742 = vmatmul.f32.gmra.mxu0 %v715
      %v743 = vpop.f32.mrf.mxu0
      %v744 = vadd.f32 0.0, %v743
      %745 = vmatmul.f32.gmra.mxu0 %v718
      %v746 = vpop.f32.mrf.mxu0
      %v747 = vadd.f32 0.0, %v746
      %748 = vmatmul.f32.gmra.mxu0 %v721
      %v749 = vpop.f32.mrf.mxu0
      %v750 = vadd.f32 0.0, %v749
      %751 = vmatmul.f32.gmra.mxu0 %v724
      %v752 = vpop.f32.mrf.mxu0
      %v753 = vadd.f32 0.0, %v752
      %754 = vdwg.mxu0
      %v755 = vadd.f32 %v693, %v744
      %v756 = vadd.f32 %v694, %v747
      %v757 = vadd.f32 %v695, %v750
      %v758 = vadd.f32 %v696, %v753
      %vm759 = vcmp.ge.f32.partialorder %v755, 0.0
      %vm760 = vcmp.ge.f32.partialorder %v756, 0.0
      %vm761 = vcmp.ge.f32.partialorder %v757, 0.0
      %vm762 = vcmp.ge.f32.partialorder %v758, 0.0
      %v763 = vmul.f32 %v755, 0.01
      %v764 = vmul.f32 %v756, 0.01
      %v765 = vmul.f32 %v757, 0.01
      %v766 = vmul.f32 %v758, 0.01
      %v767 = vsel %vm759, %v755, %v763
      %v768 = vsel %vm760, %v756, %v764
      %v769 = vsel %vm761, %v757, %v765
      %v770 = vsel %vm762, %v758, %v766
      %v771 = vadd.f32 %v767, %v225
      %v772 = vadd.f32 %v768, %v226
      %v773 = vadd.f32 %v769, %v227
      %v774 = vadd.f32 %v770, %v228
      %vm775 = vcmask 130048
      %776 = vst.msk [vmem:[%s224] sm:$0xff] %vm775, %v771
      %777 = vst.msk [vmem:[%s224 + $0x8] sm:$0xff] %vm775, %v772
      %778 = vst.msk [vmem:[%s224 + $0x10] sm:$0xff] %vm775, %v773
      %779 = vst.msk [vmem:[%s224 + $0x18] sm:$0xff] %vm775, %v774
      %p780 = scmp.lt.s32.totalorder %s16, 1
      %s781 = scalar_select %p780, %s16, 1
      %s782 = smul.addr %s781, 4
      %s783 = smul.addr %s782, 8
      %s784 = scalar_lea.vmem %s5, %s783
      // Predicated region
      $region41: #{_lambda_.5} parent=39 // pred_check
        %p785 = pneg %p144
      $region42: #{_lambda_.5} parent=39 // pred_check_branch
        %787 = sbr.rel (%p785) target = $region44
      $region43: #{_lambda_.5} parent=39 // pred_region
        _
      $region44: #{_lambda_.5} parent=39 // pred_fallthru
        _
    $region40: #{_lambda_.5} parent=5 // pred_fallthru
      _
    %p788 = scmp.le.s32.totalorder 2, %s11
    // Predicated region
    $region45: #{_lambda_.5} parent=5 // pred_check
      %p789 = pneg %p788
    $region46: #{_lambda_.5} parent=5 // pred_check_branch
      %791 = sbr.rel (%p789) target = $region48
    $region47: #{_lambda_.5} parent=5 // pred_region
      %s792 = ssub.s32 %s11, 2
      // Predicated region
      $region49: #{_lambda_.5} parent=47 // pred_check
        %p793 = pneg %p150
      $region50: #{_lambda_.5} parent=47 // pred_check_branch
        %795 = sbr.rel (%p793) target = $region52
      $region51: #{_lambda_.5} parent=47 // pred_region
        %p796 = scmp.lt.s32.totalorder %s17, 1
        %s797 = scalar_select %p796, %s17, 1
        %s798 = smul.addr %s797, 4
        %s799 = smul.addr %s798, 8
        %s800 = scalar_lea.vmem %s5, %s799
      $region52: #{_lambda_.5} parent=47 // pred_fallthru
        _
    $region48: #{_lambda_.5} parent=5 // pred_fallthru
      _
  $region6: #{_lambda_.5} parent=0 // loop_footer
    %s15 = sadd.s32 1, %s11
  $region7: #{_lambda_.5} parent=0 // loop_footer_branch
    %10 = sbr.rel target = $region3
  $region8: #{_lambda_.5} parent=0 // loop_exit
    _

</llo_original>
